<compile_context>
chip_gen: v5e
topology: v5e:2x2
jax: 0.10.0
libtpu: 0.0.40
codegen_flags: <defaults>
</compile_context>

<pallas_src>
import math

import jax
import jax.numpy as jnp
from jax import lax
from jax.experimental import pallas as pl
from jax.experimental.pallas import tpu as pltpu

# ----------------------------- model config ---------------------------------
BATCH = 2
SEQ = 8          # target sequence length
SEQ_ENC = 8      # encoder (source) sequence length
D_MODEL = 32
N_HEAD = 4
D_HEAD = D_MODEL // N_HEAD
FFN_HIDDEN = 64
N_LAYERS = 2
VOCAB = 50
VOCAB_PAD = 128  # lane-dense padded vocab; sliced back to VOCAB in the wrapper
EPS = 1e-5       # nn.LayerNorm default eps
NEG_INF = -10000.0
SCALE = 1.0 / math.sqrt(D_HEAD)

# ----------------------------- packed slab layout ----------------------------
# Weight slab (bf16), shape (W_ROWS, 128):
#   per attention a in [0 .. 2*N_LAYERS):  rows [a*32, a*32+32)
#       lanes 0:32 = Wq | 32:64 = Wk | 64:96 = Wv | 96:128 = Wo
#   per layer l: ffn W1 rows [W1_OFF + l*32, +32), lanes 0:64 (rest zero)
#   per layer l: ffn W2 rows [W2_OFF + l*128, +128): rows 0:64 lanes 0:32 (rest zero)
#   output head: rows [OUT_OFF, +32), lanes 0:VOCAB (rest zero)
N_ATTN = N_LAYERS * 2
W1_OFF = N_ATTN * D_MODEL                       # 128
W2_OFF = W1_OFF + N_LAYERS * D_MODEL            # 192
OUT_OFF = W2_OFF + N_LAYERS * 128               # 448
W_ROWS = OUT_OFF + D_MODEL                      # 480

# Parameter slab (f32), shape (P_ROWS, 128): one parameter vector per row.
#   per layer l, base = l*12:
#     +0 self qkv bias (q 0:32 | k 32:64 | v 64:96)   +1 self o bias (0:32)
#     +2 cross qkv bias                                +3 cross o bias
#     +4 ln1 g  +5 ln1 b  +6 ln2 g  +7 ln2 b  +8 ln3 g  +9 ln3 b
#     +10 ffn b1 (0:64)   +11 ffn b2 (0:32)
#   row OUT_B_ROW: output-head bias (0:VOCAB)
P_PER_LAYER = 12
OUT_B_ROW = N_LAYERS * P_PER_LAYER              # 24
P_ROWS = 32                                     # padded to sublane multiple


# ----------------------------- kernel helpers --------------------------------
def _layernorm(x, g, b):
    # single-pass statistics: var = E[x^2] - mu^2
    mu = jnp.mean(x, axis=-1, keepdims=True)
    ms = jnp.mean(x * x, axis=-1, keepdims=True)
    var = ms - mu * mu
    return (x - mu) * lax.rsqrt(var + EPS) * g + b


def _attention(q_bf, kv_bf, bias, w, b_qkv, b_o, is_self):
    """Multi-head attention over the flattened [B*seq, D] activation slab.

    q_bf  : (B*SEQ,  D) bf16
    kv_bf : (B*s_kv, D) bf16
    bias  : (B*SEQ, B*s_kv) f32 block-diagonal additive mask bias (0 keep / NEG_INF)
    w     : (D, 128) bf16 fused weight slab [Wq | Wk | Wv | Wo]
    b_qkv : (1, 128) f32 fused q/k/v bias row
    b_o   : (1, D)   f32 output-projection bias
    """
    kv_proj = jnp.dot(kv_bf, w, preferred_element_type=jnp.float32)      # (Nkv, 128)
    k = kv_proj[:, D_MODEL:2 * D_MODEL] + b_qkv[:, D_MODEL:2 * D_MODEL]
    v = kv_proj[:, 2 * D_MODEL:3 * D_MODEL] + b_qkv[:, 2 * D_MODEL:3 * D_MODEL]
    if is_self:
        q_proj = kv_proj
    else:
        q_proj = jnp.dot(q_bf, w, preferred_element_type=jnp.float32)    # (Nq, 128)
    q = q_proj[:, 0:D_MODEL] + b_qkv[:, 0:D_MODEL]

    # whole-tensor bf16 casts, hoisted out of the head loop
    qh = q.astype(jnp.bfloat16)
    kh = k.astype(jnp.bfloat16)
    vh = v.astype(jnp.bfloat16)

    ctx_heads = []
    for h in range(N_HEAD):
        hc = slice(h * D_HEAD, (h + 1) * D_HEAD)
        # batched over BATCH via the block-diagonal bias: one score matmul per head
        s = lax.dot_general(qh[:, hc], kh[:, hc], (((1,), (1,)), ((), ())),
                            preferred_element_type=jnp.float32)          # (Nq, Nkv)
        s = s * SCALE + bias
        m = jnp.max(s, axis=-1, keepdims=True)
        p = jnp.exp(s - m)
        denom = jnp.sum(p, axis=-1, keepdims=True)
        p = p * pl.reciprocal(denom, approx=True)
        ctx_heads.append(jnp.dot(p.astype(jnp.bfloat16), vh[:, hc],
                                 preferred_element_type=jnp.float32))    # (Nq, Dh)

    ctx = jnp.concatenate(ctx_heads, axis=-1)                            # (Nq, D)
    # single fused output projection per MHA
    out = jnp.dot(ctx.astype(jnp.bfloat16), w[:, 3 * D_MODEL:4 * D_MODEL],
                  preferred_element_type=jnp.float32) + b_o
    return out


def _ffn(x_bf, w1, w2, b1, b2):
    h = jnp.dot(x_bf, w1, preferred_element_type=jnp.float32)            # (N, 128)
    h = jnp.maximum(h + b1, 0.0)                                         # lanes 64: stay 0
    y = jnp.dot(h.astype(jnp.bfloat16), w2, preferred_element_type=jnp.float32)
    return y[:, 0:D_MODEL] + b2


# ----------------------------- fused decoder kernel ---------------------------
def decoder_kernel(trg_ref, enc_ref, tbias_ref, sbias_ref, w_ref, p_ref, logits_ref):
    x = trg_ref[...]                                  # (B*S,  D) f32
    enc_bf = enc_ref[...].astype(jnp.bfloat16)        # (B*Se, D) bf16, cast once
    tbias = tbias_ref[...]                            # (B*S, B*S)  additive mask bias
    sbias = sbias_ref[...]                            # (B*S, B*Se) additive mask bias

    for l in range(N_LAYERS):
        pb = l * P_PER_LAYER

        # --- self attention + residual + norm1 (dropout1 = identity) ---
        resid = x
        x_bf = x.astype(jnp.bfloat16)
        w_self = w_ref[(l * 2 + 0) * D_MODEL:(l * 2 + 1) * D_MODEL, :]
        a = _attention(x_bf, x_bf, tbias, w_self,
                       p_ref[pb + 0:pb + 1, :], p_ref[pb + 1:pb + 2, 0:D_MODEL],
                       is_self=True)
        x = _layernorm(a + resid,
                       p_ref[pb + 4:pb + 5, 0:D_MODEL], p_ref[pb + 5:pb + 6, 0:D_MODEL])

        # --- encoder-decoder attention + residual + norm2 (dropout2 = identity) ---
        resid = x
        x_bf = x.astype(jnp.bfloat16)
        w_cross = w_ref[(l * 2 + 1) * D_MODEL:(l * 2 + 2) * D_MODEL, :]
        a = _attention(x_bf, enc_bf, sbias, w_cross,
                       p_ref[pb + 2:pb + 3, :], p_ref[pb + 3:pb + 4, 0:D_MODEL],
                       is_self=False)
        x = _layernorm(a + resid,
                       p_ref[pb + 6:pb + 7, 0:D_MODEL], p_ref[pb + 7:pb + 8, 0:D_MODEL])

        # --- position-wise FFN + residual + norm3 (dropout3 = identity) ---
        resid = x
        w1 = w_ref[W1_OFF + l * D_MODEL:W1_OFF + (l + 1) * D_MODEL, :]
        w2 = w_ref[W2_OFF + l * 128:W2_OFF + (l + 1) * 128, :]
        y = _ffn(x.astype(jnp.bfloat16), w1, w2,
                 p_ref[pb + 10:pb + 11, :], p_ref[pb + 11:pb + 12, 0:D_MODEL])
        x = _layernorm(y + resid,
                       p_ref[pb + 8:pb + 9, 0:D_MODEL], p_ref[pb + 9:pb + 10, 0:D_MODEL])

    # output head -> lane-dense padded vocab
    logits_ref[...] = jnp.dot(x.astype(jnp.bfloat16),
                              w_ref[OUT_OFF:OUT_OFF + D_MODEL, :],
                              preferred_element_type=jnp.float32) \
        + p_ref[OUT_B_ROW:OUT_B_ROW + 1, :]


# ----------------------------- wrapper -----------------------------------------
def _full_spec(shape):
    nd = len(shape)
    return pl.BlockSpec(shape, lambda i, _nd=nd: (0,) * _nd)


def _block_diag_bias(mask):
    """mask (B, sq, skv) with 1=attend -> (B*sq, B*skv) additive bias, NEG_INF off-block."""
    B, sq, skv = mask.shape
    blocks = jnp.where(mask == 0.0, NEG_INF, 0.0).astype(jnp.float32)
    big = jnp.full((B * sq, B * skv), NEG_INF, jnp.float32)
    for b in range(B):
        big = big.at[b * sq:(b + 1) * sq, b * skv:(b + 1) * skv].set(blocks[b])
    return big


def decoder_forward(trg, enc_src, trg_mask, src_mask, params):
    B, S, D = trg.shape
    Se = enc_src.shape[1]
    trg2 = trg.reshape(B * S, D)
    enc2 = enc_src.reshape(B * Se, D)
    tbias = _block_diag_bias(trg_mask)
    sbias = _block_diag_bias(src_mask)
    inputs = (trg2, enc2, tbias, sbias, params["w"], params["p"])
    logits_pad = pl.pallas_call(
        decoder_kernel,
        out_shape=jax.ShapeDtypeStruct((B * S, VOCAB_PAD), jnp.float32),
        grid=(1,),                                 # single step: whole problem fits VMEM
        in_specs=[_full_spec(a.shape) for a in inputs],
        out_specs=_full_spec((B * S, VOCAB_PAD)),
        compiler_params=pltpu.CompilerParams(
            dimension_semantics=("arbitrary",)),
    )(*inputs)
    return logits_pad[:, :VOCAB].reshape(B, S, VOCAB)


# ----------------------------- parameter init / packing ------------------------
def _init_linear(key, d_in, d_out):
    kw, kb = jax.random.split(key)
    bound = 1.0 / math.sqrt(d_in)
    w = jax.random.uniform(kw, (d_in, d_out), jnp.float32, -bound, bound)
    b = jax.random.uniform(kb, (d_out,), jnp.float32, -bound, bound)
    return w, b


def init_params(key):
    n_linear = N_LAYERS * (8 + 2) + 1          # 8 attn + 2 ffn per layer, + output head
    keys = iter(jax.random.split(key, n_linear))

    w_slab = jnp.zeros((W_ROWS, 128), jnp.float32)
    p_slab = jnp.zeros((P_ROWS, 128), jnp.float32)

    for l in range(N_LAYERS):
        pb = l * P_PER_LAYER
        for a_idx, prow_qkv, prow_o in ((0, pb + 0, pb + 1), (1, pb + 2, pb + 3)):
            attn = l * 2 + a_idx
            wrow = attn * D_MODEL
            ws, bs = [], []
            for _ in range(4):                 # q, k, v, o
                w, b = _init_linear(next(keys), D_MODEL, D_MODEL)
                ws.append(w)
                bs.append(b)
            w_slab = w_slab.at[wrow:wrow + D_MODEL, :].set(jnp.concatenate(ws, axis=1))
            p_slab = p_slab.at[prow_qkv, 0:3 * D_MODEL].set(jnp.concatenate(bs[:3]))
            p_slab = p_slab.at[prow_o, 0:D_MODEL].set(bs[3])
        for j in range(3):                     # norm1, norm2, norm3: gamma=1, beta=0
            p_slab = p_slab.at[pb + 4 + 2 * j, 0:D_MODEL].set(1.0)
        w1, b1 = _init_linear(next(keys), D_MODEL, FFN_HIDDEN)
        w2, b2 = _init_linear(next(keys), FFN_HIDDEN, D_MODEL)
        w_slab = w_slab.at[W1_OFF + l * D_MODEL:W1_OFF + (l + 1) * D_MODEL,
                           0:FFN_HIDDEN].set(w1)
        w_slab = w_slab.at[W2_OFF + l * 128:W2_OFF + l * 128 + FFN_HIDDEN,
                           0:D_MODEL].set(w2)
        p_slab = p_slab.at[pb + 10, 0:FFN_HIDDEN].set(b1)
        p_slab = p_slab.at[pb + 11, 0:D_MODEL].set(b2)

    ow, ob = _init_linear(next(keys), D_MODEL, VOCAB)
    w_slab = w_slab.at[OUT_OFF:OUT_OFF + D_MODEL, 0:VOCAB].set(ow)
    p_slab = p_slab.at[OUT_B_ROW, 0:VOCAB].set(ob)

    return {"w": w_slab.astype(jnp.bfloat16),   # (480, 128) bf16: all matmul weights
            "p": p_slab}                        # (32, 128)  f32 : all biases / LN params


# TODO(synk): kan=True (KAN feed-forward variant) not implemented; kan=False path used.

if __name__ == "__main__":
    root = jax.random.PRNGKey(0)
    k_trg, k_enc, k_params = jax.random.split(root, 3)

    trg = jax.random.normal(k_trg, (BATCH, SEQ, D_MODEL), jnp.float32)
    enc_src = jax.random.normal(k_enc, (BATCH, SEQ_ENC, D_MODEL), jnp.float32)

    # causal target mask, full source mask (1 = attend, 0 = masked)
    trg_mask = jnp.broadcast_to(
        jnp.tril(jnp.ones((SEQ, SEQ), jnp.float32)), (BATCH, SEQ, SEQ))
    src_mask = jnp.ones((BATCH, SEQ, SEQ_ENC), jnp.float32)

    params = init_params(k_params)

    logits = decoder_forward(trg, enc_src, trg_mask, src_mask, params)
    jax.block_until_ready(logits)
    assert logits.shape == (BATCH, SEQ, VOCAB)
    print("KERNEL_OK")
</pallas_src>

<mosaic_0001>
module attributes {stable_mosaic.version = 11 : i64} {
  func.func @decoder_kernel(%arg0: i32, %arg1: memref<16x32xf32, #tpu.memory_space<vmem>>, %arg2: memref<16x32xf32, #tpu.memory_space<vmem>>, %arg3: memref<16x16xf32, #tpu.memory_space<vmem>>, %arg4: memref<16x16xf32, #tpu.memory_space<vmem>>, %arg5: memref<480x128xbf16, #tpu.memory_space<vmem>>, %arg6: memref<32x128xf32, #tpu.memory_space<vmem>>, %arg7: memref<16x128xf32, #tpu.memory_space<vmem>>) attributes {dimension_semantics = [#tpu.dimension_semantics<arbitrary>], iteration_bounds = array<i64: 1>, scalar_prefetch = 0 : i64, scratch_operands = 0 : i64, tpu.core_type = #tpu.core_type<tc>, window_params = [{pipeline_mode = #tpu.pipeline_mode<synchronous>, transform_indices = @transform_0, window_bounds = array<i64: 16, 32>}, {pipeline_mode = #tpu.pipeline_mode<synchronous>, transform_indices = @transform_1, window_bounds = array<i64: 16, 32>}, {pipeline_mode = #tpu.pipeline_mode<synchronous>, transform_indices = @transform_2, window_bounds = array<i64: 16, 16>}, {pipeline_mode = #tpu.pipeline_mode<synchronous>, transform_indices = @transform_3, window_bounds = array<i64: 16, 16>}, {pipeline_mode = #tpu.pipeline_mode<synchronous>, transform_indices = @transform_4, window_bounds = array<i64: 480, 128>}, {pipeline_mode = #tpu.pipeline_mode<synchronous>, transform_indices = @transform_5, window_bounds = array<i64: 32, 128>}, {pipeline_mode = #tpu.pipeline_mode<synchronous>, transform_indices = @transform_6, window_bounds = array<i64: 16, 128>}]} {
    %c0 = arith.constant 0 : index
    %c0_0 = arith.constant 0 : index
    %0 = vector.load %arg1[%c0, %c0_0] : memref<16x32xf32, #tpu.memory_space<vmem>>, vector<16x32xf32>
    %c0_1 = arith.constant 0 : index
    %c0_2 = arith.constant 0 : index
    %1 = vector.load %arg2[%c0_1, %c0_2] : memref<16x32xf32, #tpu.memory_space<vmem>>, vector<16x32xf32>
    %2 = arith.truncf %1 : vector<16x32xf32> to vector<16x32xbf16>
    %c0_3 = arith.constant 0 : index
    %c0_4 = arith.constant 0 : index
    %3 = vector.load %arg3[%c0_3, %c0_4] : memref<16x16xf32, #tpu.memory_space<vmem>>, vector<16x16xf32>
    %c0_5 = arith.constant 0 : index
    %c0_6 = arith.constant 0 : index
    %4 = vector.load %arg4[%c0_5, %c0_6] : memref<16x16xf32, #tpu.memory_space<vmem>>, vector<16x16xf32>
    %5 = arith.truncf %0 : vector<16x32xf32> to vector<16x32xbf16>
    %c0_7 = arith.constant 0 : index
    %c0_8 = arith.constant 0 : index
    %6 = vector.load %arg5[%c0_7, %c0_8] : memref<480x128xbf16, #tpu.memory_space<vmem>>, vector<32x128xbf16>
    %c0_9 = arith.constant 0 : index
    %c0_10 = arith.constant 0 : index
    %7 = vector.load %arg6[%c0_9, %c0_10] : memref<32x128xf32, #tpu.memory_space<vmem>>, vector<1x128xf32>
    %c1 = arith.constant 1 : index
    %c0_11 = arith.constant 0 : index
    %8 = vector.load %arg6[%c1, %c0_11] : memref<32x128xf32, #tpu.memory_space<vmem>>, vector<1x32xf32>
    %cst = arith.constant dense<0.000000e+00> : vector<16x128xf32>
    %9 = tpu.matmul %5, %6, %cst {dimension_numbers = #tpu.dot_dimension_numbers<[1], [0], [0], [1], [0, 0, 1, 1], [], []>} : vector<16x32xbf16>, vector<32x128xbf16>, vector<16x128xf32> -> vector<16x128xf32>
    %10 = vector.extract_strided_slice %9 {offsets = [0, 32], sizes = [16, 32], strides = [1, 1]} : vector<16x128xf32> to vector<16x32xf32>
    %11 = vector.extract_strided_slice %7 {offsets = [0, 32], sizes = [1, 32], strides = [1, 1]} : vector<1x128xf32> to vector<1x32xf32>
    %12 = vector.broadcast %11 : vector<1x32xf32> to vector<16x32xf32>
    %13 = arith.addf %10, %12 : vector<16x32xf32>
    %14 = vector.extract_strided_slice %9 {offsets = [0, 64], sizes = [16, 32], strides = [1, 1]} : vector<16x128xf32> to vector<16x32xf32>
    %15 = vector.extract_strided_slice %7 {offsets = [0, 64], sizes = [1, 32], strides = [1, 1]} : vector<1x128xf32> to vector<1x32xf32>
    %16 = vector.broadcast %15 : vector<1x32xf32> to vector<16x32xf32>
    %17 = arith.addf %14, %16 : vector<16x32xf32>
    %18 = vector.extract_strided_slice %9 {offsets = [0, 0], sizes = [16, 32], strides = [1, 1]} : vector<16x128xf32> to vector<16x32xf32>
    %19 = vector.extract_strided_slice %7 {offsets = [0, 0], sizes = [1, 32], strides = [1, 1]} : vector<1x128xf32> to vector<1x32xf32>
    %20 = vector.broadcast %19 : vector<1x32xf32> to vector<16x32xf32>
    %21 = arith.addf %18, %20 : vector<16x32xf32>
    %22 = arith.truncf %21 : vector<16x32xf32> to vector<16x32xbf16>
    %23 = arith.truncf %13 : vector<16x32xf32> to vector<16x32xbf16>
    %24 = arith.truncf %17 : vector<16x32xf32> to vector<16x32xbf16>
    %25 = vector.extract_strided_slice %22 {offsets = [0, 0], sizes = [16, 8], strides = [1, 1]} : vector<16x32xbf16> to vector<16x8xbf16>
    %26 = vector.extract_strided_slice %23 {offsets = [0, 0], sizes = [16, 8], strides = [1, 1]} : vector<16x32xbf16> to vector<16x8xbf16>
    %cst_12 = arith.constant dense<0.000000e+00> : vector<16x16xf32>
    %27 = tpu.matmul %25, %26, %cst_12 {dimension_numbers = #tpu.dot_dimension_numbers<[1], [1], [0], [0], [0, 0, 1, 0], [], []>} : vector<16x8xbf16>, vector<16x8xbf16>, vector<16x16xf32> -> vector<16x16xf32>
    %cst_13 = arith.constant 0.353553385 : f32
    %28 = vector.broadcast %cst_13 : f32 to vector<16x16xf32>
    %29 = arith.mulf %27, %28 : vector<16x16xf32>
    %30 = arith.addf %29, %3 : vector<16x16xf32>
    %cst_14 = arith.constant dense<0xFF800000> : vector<16xf32>
    %31 = vector.multi_reduction <maximumf>, %30, %cst_14 [1] : vector<16x16xf32> to vector<16xf32>
    %32 = vector.shape_cast %31 : vector<16xf32> to vector<16x1xf32>
    %33 = vector.broadcast %32 : vector<16x1xf32> to vector<16x16xf32>
    %34 = arith.subf %30, %33 : vector<16x16xf32>
    %35 = math.exp %34 : vector<16x16xf32>
    %cst_15 = arith.constant dense<0.000000e+00> : vector<16xf32>
    %36 = vector.multi_reduction <add>, %35, %cst_15 [1] : vector<16x16xf32> to vector<16xf32>
    %37 = vector.shape_cast %36 : vector<16xf32> to vector<16x1xf32>
    %38 = tpu.reciprocal %37 {approx = true} : vector<16x1xf32> -> vector<16x1xf32>
    %39 = vector.broadcast %38 : vector<16x1xf32> to vector<16x16xf32>
    %40 = arith.mulf %35, %39 : vector<16x16xf32>
    %41 = arith.truncf %40 : vector<16x16xf32> to vector<16x16xbf16>
    %42 = vector.extract_strided_slice %24 {offsets = [0, 0], sizes = [16, 8], strides = [1, 1]} : vector<16x32xbf16> to vector<16x8xbf16>
    %cst_16 = arith.constant dense<0.000000e+00> : vector<16x8xf32>
    %43 = tpu.matmul %41, %42, %cst_16 {dimension_numbers = #tpu.dot_dimension_numbers<[1], [0], [0], [1], [0, 0, 1, 1], [], []>} : vector<16x16xbf16>, vector<16x8xbf16>, vector<16x8xf32> -> vector<16x8xf32>
    %44 = vector.extract_strided_slice %22 {offsets = [0, 8], sizes = [16, 8], strides = [1, 1]} : vector<16x32xbf16> to vector<16x8xbf16>
    %45 = vector.extract_strided_slice %23 {offsets = [0, 8], sizes = [16, 8], strides = [1, 1]} : vector<16x32xbf16> to vector<16x8xbf16>
    %cst_17 = arith.constant dense<0.000000e+00> : vector<16x16xf32>
    %46 = tpu.matmul %44, %45, %cst_17 {dimension_numbers = #tpu.dot_dimension_numbers<[1], [1], [0], [0], [0, 0, 1, 0], [], []>} : vector<16x8xbf16>, vector<16x8xbf16>, vector<16x16xf32> -> vector<16x16xf32>
    %cst_18 = arith.constant 0.353553385 : f32
    %47 = vector.broadcast %cst_18 : f32 to vector<16x16xf32>
    %48 = arith.mulf %46, %47 : vector<16x16xf32>
    %49 = arith.addf %48, %3 : vector<16x16xf32>
    %cst_19 = arith.constant dense<0xFF800000> : vector<16xf32>
    %50 = vector.multi_reduction <maximumf>, %49, %cst_19 [1] : vector<16x16xf32> to vector<16xf32>
    %51 = vector.shape_cast %50 : vector<16xf32> to vector<16x1xf32>
    %52 = vector.broadcast %51 : vector<16x1xf32> to vector<16x16xf32>
    %53 = arith.subf %49, %52 : vector<16x16xf32>
    %54 = math.exp %53 : vector<16x16xf32>
    %cst_20 = arith.constant dense<0.000000e+00> : vector<16xf32>
    %55 = vector.multi_reduction <add>, %54, %cst_20 [1] : vector<16x16xf32> to vector<16xf32>
    %56 = vector.shape_cast %55 : vector<16xf32> to vector<16x1xf32>
    %57 = tpu.reciprocal %56 {approx = true} : vector<16x1xf32> -> vector<16x1xf32>
    %58 = vector.broadcast %57 : vector<16x1xf32> to vector<16x16xf32>
    %59 = arith.mulf %54, %58 : vector<16x16xf32>
    %60 = arith.truncf %59 : vector<16x16xf32> to vector<16x16xbf16>
    %61 = vector.extract_strided_slice %24 {offsets = [0, 8], sizes = [16, 8], strides = [1, 1]} : vector<16x32xbf16> to vector<16x8xbf16>
    %cst_21 = arith.constant dense<0.000000e+00> : vector<16x8xf32>
    %62 = tpu.matmul %60, %61, %cst_21 {dimension_numbers = #tpu.dot_dimension_numbers<[1], [0], [0], [1], [0, 0, 1, 1], [], []>} : vector<16x16xbf16>, vector<16x8xbf16>, vector<16x8xf32> -> vector<16x8xf32>
    %63 = vector.extract_strided_slice %22 {offsets = [0, 16], sizes = [16, 8], strides = [1, 1]} : vector<16x32xbf16> to vector<16x8xbf16>
    %64 = vector.extract_strided_slice %23 {offsets = [0, 16], sizes = [16, 8], strides = [1, 1]} : vector<16x32xbf16> to vector<16x8xbf16>
    %cst_22 = arith.constant dense<0.000000e+00> : vector<16x16xf32>
    %65 = tpu.matmul %63, %64, %cst_22 {dimension_numbers = #tpu.dot_dimension_numbers<[1], [1], [0], [0], [0, 0, 1, 0], [], []>} : vector<16x8xbf16>, vector<16x8xbf16>, vector<16x16xf32> -> vector<16x16xf32>
    %cst_23 = arith.constant 0.353553385 : f32
    %66 = vector.broadcast %cst_23 : f32 to vector<16x16xf32>
    %67 = arith.mulf %65, %66 : vector<16x16xf32>
    %68 = arith.addf %67, %3 : vector<16x16xf32>
    %cst_24 = arith.constant dense<0xFF800000> : vector<16xf32>
    %69 = vector.multi_reduction <maximumf>, %68, %cst_24 [1] : vector<16x16xf32> to vector<16xf32>
    %70 = vector.shape_cast %69 : vector<16xf32> to vector<16x1xf32>
    %71 = vector.broadcast %70 : vector<16x1xf32> to vector<16x16xf32>
    %72 = arith.subf %68, %71 : vector<16x16xf32>
    %73 = math.exp %72 : vector<16x16xf32>
    %cst_25 = arith.constant dense<0.000000e+00> : vector<16xf32>
    %74 = vector.multi_reduction <add>, %73, %cst_25 [1] : vector<16x16xf32> to vector<16xf32>
    %75 = vector.shape_cast %74 : vector<16xf32> to vector<16x1xf32>
    %76 = tpu.reciprocal %75 {approx = true} : vector<16x1xf32> -> vector<16x1xf32>
    %77 = vector.broadcast %76 : vector<16x1xf32> to vector<16x16xf32>
    %78 = arith.mulf %73, %77 : vector<16x16xf32>
    %79 = arith.truncf %78 : vector<16x16xf32> to vector<16x16xbf16>
    %80 = vector.extract_strided_slice %24 {offsets = [0, 16], sizes = [16, 8], strides = [1, 1]} : vector<16x32xbf16> to vector<16x8xbf16>
    %cst_26 = arith.constant dense<0.000000e+00> : vector<16x8xf32>
    %81 = tpu.matmul %79, %80, %cst_26 {dimension_numbers = #tpu.dot_dimension_numbers<[1], [0], [0], [1], [0, 0, 1, 1], [], []>} : vector<16x16xbf16>, vector<16x8xbf16>, vector<16x8xf32> -> vector<16x8xf32>
    %82 = vector.extract_strided_slice %22 {offsets = [0, 24], sizes = [16, 8], strides = [1, 1]} : vector<16x32xbf16> to vector<16x8xbf16>
    %83 = vector.extract_strided_slice %23 {offsets = [0, 24], sizes = [16, 8], strides = [1, 1]} : vector<16x32xbf16> to vector<16x8xbf16>
    %cst_27 = arith.constant dense<0.000000e+00> : vector<16x16xf32>
    %84 = tpu.matmul %82, %83, %cst_27 {dimension_numbers = #tpu.dot_dimension_numbers<[1], [1], [0], [0], [0, 0, 1, 0], [], []>} : vector<16x8xbf16>, vector<16x8xbf16>, vector<16x16xf32> -> vector<16x16xf32>
    %cst_28 = arith.constant 0.353553385 : f32
    %85 = vector.broadcast %cst_28 : f32 to vector<16x16xf32>
    %86 = arith.mulf %84, %85 : vector<16x16xf32>
    %87 = arith.addf %86, %3 : vector<16x16xf32>
    %cst_29 = arith.constant dense<0xFF800000> : vector<16xf32>
    %88 = vector.multi_reduction <maximumf>, %87, %cst_29 [1] : vector<16x16xf32> to vector<16xf32>
    %89 = vector.shape_cast %88 : vector<16xf32> to vector<16x1xf32>
    %90 = vector.broadcast %89 : vector<16x1xf32> to vector<16x16xf32>
    %91 = arith.subf %87, %90 : vector<16x16xf32>
    %92 = math.exp %91 : vector<16x16xf32>
    %cst_30 = arith.constant dense<0.000000e+00> : vector<16xf32>
    %93 = vector.multi_reduction <add>, %92, %cst_30 [1] : vector<16x16xf32> to vector<16xf32>
    %94 = vector.shape_cast %93 : vector<16xf32> to vector<16x1xf32>
    %95 = tpu.reciprocal %94 {approx = true} : vector<16x1xf32> -> vector<16x1xf32>
    %96 = vector.broadcast %95 : vector<16x1xf32> to vector<16x16xf32>
    %97 = arith.mulf %92, %96 : vector<16x16xf32>
    %98 = arith.truncf %97 : vector<16x16xf32> to vector<16x16xbf16>
    %99 = vector.extract_strided_slice %24 {offsets = [0, 24], sizes = [16, 8], strides = [1, 1]} : vector<16x32xbf16> to vector<16x8xbf16>
    %cst_31 = arith.constant dense<0.000000e+00> : vector<16x8xf32>
    %100 = tpu.matmul %98, %99, %cst_31 {dimension_numbers = #tpu.dot_dimension_numbers<[1], [0], [0], [1], [0, 0, 1, 1], [], []>} : vector<16x16xbf16>, vector<16x8xbf16>, vector<16x8xf32> -> vector<16x8xf32>
    %101 = tpu.concatenate %43, %62, %81, %100 in 1 : vector<16x8xf32>, vector<16x8xf32>, vector<16x8xf32>, vector<16x8xf32> -> vector<16x32xf32>
    %102 = arith.truncf %101 : vector<16x32xf32> to vector<16x32xbf16>
    %103 = vector.extract_strided_slice %6 {offsets = [0, 96], sizes = [32, 32], strides = [1, 1]} : vector<32x128xbf16> to vector<32x32xbf16>
    %cst_32 = arith.constant dense<0.000000e+00> : vector<16x32xf32>
    %104 = tpu.matmul %102, %103, %cst_32 {dimension_numbers = #tpu.dot_dimension_numbers<[1], [0], [0], [1], [0, 0, 1, 1], [], []>} : vector<16x32xbf16>, vector<32x32xbf16>, vector<16x32xf32> -> vector<16x32xf32>
    %105 = vector.broadcast %8 : vector<1x32xf32> to vector<16x32xf32>
    %106 = arith.addf %104, %105 : vector<16x32xf32>
    %107 = arith.addf %106, %0 : vector<16x32xf32>
    %c4 = arith.constant 4 : index
    %c0_33 = arith.constant 0 : index
    %108 = vector.load %arg6[%c4, %c0_33] : memref<32x128xf32, #tpu.memory_space<vmem>>, vector<1x32xf32>
    %c5 = arith.constant 5 : index
    %c0_34 = arith.constant 0 : index
    %109 = vector.load %arg6[%c5, %c0_34] : memref<32x128xf32, #tpu.memory_space<vmem>>, vector<1x32xf32>
    %cst_35 = arith.constant dense<0.000000e+00> : vector<16xf32>
    %110 = vector.multi_reduction <add>, %107, %cst_35 [1] : vector<16x32xf32> to vector<16xf32>
    %111 = vector.shape_cast %110 : vector<16xf32> to vector<16x1xf32>
    %cst_36 = arith.constant 3.200000e+01 : f32
    %112 = vector.broadcast %cst_36 : f32 to vector<16x1xf32>
    %113 = arith.divf %111, %112 : vector<16x1xf32>
    %114 = arith.mulf %107, %107 : vector<16x32xf32>
    %cst_37 = arith.constant dense<0.000000e+00> : vector<16xf32>
    %115 = vector.multi_reduction <add>, %114, %cst_37 [1] : vector<16x32xf32> to vector<16xf32>
    %116 = vector.shape_cast %115 : vector<16xf32> to vector<16x1xf32>
    %cst_38 = arith.constant 3.200000e+01 : f32
    %117 = vector.broadcast %cst_38 : f32 to vector<16x1xf32>
    %118 = arith.divf %116, %117 : vector<16x1xf32>
    %119 = arith.mulf %113, %113 : vector<16x1xf32>
    %120 = arith.subf %118, %119 : vector<16x1xf32>
    %121 = vector.broadcast %113 : vector<16x1xf32> to vector<16x32xf32>
    %122 = arith.subf %107, %121 : vector<16x32xf32>
    %cst_39 = arith.constant 9.99999974E-6 : f32
    %123 = vector.broadcast %cst_39 : f32 to vector<16x1xf32>
    %124 = arith.addf %120, %123 : vector<16x1xf32>
    %125 = math.rsqrt %124 : vector<16x1xf32>
    %126 = vector.broadcast %125 : vector<16x1xf32> to vector<16x32xf32>
    %127 = arith.mulf %122, %126 : vector<16x32xf32>
    %128 = vector.broadcast %108 : vector<1x32xf32> to vector<16x32xf32>
    %129 = arith.mulf %127, %128 : vector<16x32xf32>
    %130 = vector.broadcast %109 : vector<1x32xf32> to vector<16x32xf32>
    %131 = arith.addf %129, %130 : vector<16x32xf32>
    %132 = arith.truncf %131 : vector<16x32xf32> to vector<16x32xbf16>
    %c32 = arith.constant 32 : index
    %c0_40 = arith.constant 0 : index
    %133 = vector.load %arg5[%c32, %c0_40] : memref<480x128xbf16, #tpu.memory_space<vmem>>, vector<32x128xbf16>
    %c2 = arith.constant 2 : index
    %c0_41 = arith.constant 0 : index
    %134 = vector.load %arg6[%c2, %c0_41] : memref<32x128xf32, #tpu.memory_space<vmem>>, vector<1x128xf32>
    %c3 = arith.constant 3 : index
    %c0_42 = arith.constant 0 : index
    %135 = vector.load %arg6[%c3, %c0_42] : memref<32x128xf32, #tpu.memory_space<vmem>>, vector<1x32xf32>
    %cst_43 = arith.constant dense<0.000000e+00> : vector<16x128xf32>
    %136 = tpu.matmul %2, %133, %cst_43 {dimension_numbers = #tpu.dot_dimension_numbers<[1], [0], [0], [1], [0, 0, 1, 1], [], []>} : vector<16x32xbf16>, vector<32x128xbf16>, vector<16x128xf32> -> vector<16x128xf32>
    %137 = vector.extract_strided_slice %136 {offsets = [0, 32], sizes = [16, 32], strides = [1, 1]} : vector<16x128xf32> to vector<16x32xf32>
    %138 = vector.extract_strided_slice %134 {offsets = [0, 32], sizes = [1, 32], strides = [1, 1]} : vector<1x128xf32> to vector<1x32xf32>
    %139 = vector.broadcast %138 : vector<1x32xf32> to vector<16x32xf32>
    %140 = arith.addf %137, %139 : vector<16x32xf32>
    %141 = vector.extract_strided_slice %136 {offsets = [0, 64], sizes = [16, 32], strides = [1, 1]} : vector<16x128xf32> to vector<16x32xf32>
    %142 = vector.extract_strided_slice %134 {offsets = [0, 64], sizes = [1, 32], strides = [1, 1]} : vector<1x128xf32> to vector<1x32xf32>
    %143 = vector.broadcast %142 : vector<1x32xf32> to vector<16x32xf32>
    %144 = arith.addf %141, %143 : vector<16x32xf32>
    %cst_44 = arith.constant dense<0.000000e+00> : vector<16x128xf32>
    %145 = tpu.matmul %132, %133, %cst_44 {dimension_numbers = #tpu.dot_dimension_numbers<[1], [0], [0], [1], [0, 0, 1, 1], [], []>} : vector<16x32xbf16>, vector<32x128xbf16>, vector<16x128xf32> -> vector<16x128xf32>
    %146 = vector.extract_strided_slice %145 {offsets = [0, 0], sizes = [16, 32], strides = [1, 1]} : vector<16x128xf32> to vector<16x32xf32>
    %147 = vector.extract_strided_slice %134 {offsets = [0, 0], sizes = [1, 32], strides = [1, 1]} : vector<1x128xf32> to vector<1x32xf32>
    %148 = vector.broadcast %147 : vector<1x32xf32> to vector<16x32xf32>
    %149 = arith.addf %146, %148 : vector<16x32xf32>
    %150 = arith.truncf %149 : vector<16x32xf32> to vector<16x32xbf16>
    %151 = arith.truncf %140 : vector<16x32xf32> to vector<16x32xbf16>
    %152 = arith.truncf %144 : vector<16x32xf32> to vector<16x32xbf16>
    %153 = vector.extract_strided_slice %150 {offsets = [0, 0], sizes = [16, 8], strides = [1, 1]} : vector<16x32xbf16> to vector<16x8xbf16>
    %154 = vector.extract_strided_slice %151 {offsets = [0, 0], sizes = [16, 8], strides = [1, 1]} : vector<16x32xbf16> to vector<16x8xbf16>
    %cst_45 = arith.constant dense<0.000000e+00> : vector<16x16xf32>
    %155 = tpu.matmul %153, %154, %cst_45 {dimension_numbers = #tpu.dot_dimension_numbers<[1], [1], [0], [0], [0, 0, 1, 0], [], []>} : vector<16x8xbf16>, vector<16x8xbf16>, vector<16x16xf32> -> vector<16x16xf32>
    %cst_46 = arith.constant 0.353553385 : f32
    %156 = vector.broadcast %cst_46 : f32 to vector<16x16xf32>
    %157 = arith.mulf %155, %156 : vector<16x16xf32>
    %158 = arith.addf %157, %4 : vector<16x16xf32>
    %cst_47 = arith.constant dense<0xFF800000> : vector<16xf32>
    %159 = vector.multi_reduction <maximumf>, %158, %cst_47 [1] : vector<16x16xf32> to vector<16xf32>
    %160 = vector.shape_cast %159 : vector<16xf32> to vector<16x1xf32>
    %161 = vector.broadcast %160 : vector<16x1xf32> to vector<16x16xf32>
    %162 = arith.subf %158, %161 : vector<16x16xf32>
    %163 = math.exp %162 : vector<16x16xf32>
    %cst_48 = arith.constant dense<0.000000e+00> : vector<16xf32>
    %164 = vector.multi_reduction <add>, %163, %cst_48 [1] : vector<16x16xf32> to vector<16xf32>
    %165 = vector.shape_cast %164 : vector<16xf32> to vector<16x1xf32>
    %166 = tpu.reciprocal %165 {approx = true} : vector<16x1xf32> -> vector<16x1xf32>
    %167 = vector.broadcast %166 : vector<16x1xf32> to vector<16x16xf32>
    %168 = arith.mulf %163, %167 : vector<16x16xf32>
    %169 = arith.truncf %168 : vector<16x16xf32> to vector<16x16xbf16>
    %170 = vector.extract_strided_slice %152 {offsets = [0, 0], sizes = [16, 8], strides = [1, 1]} : vector<16x32xbf16> to vector<16x8xbf16>
    %cst_49 = arith.constant dense<0.000000e+00> : vector<16x8xf32>
    %171 = tpu.matmul %169, %170, %cst_49 {dimension_numbers = #tpu.dot_dimension_numbers<[1], [0], [0], [1], [0, 0, 1, 1], [], []>} : vector<16x16xbf16>, vector<16x8xbf16>, vector<16x8xf32> -> vector<16x8xf32>
    %172 = vector.extract_strided_slice %150 {offsets = [0, 8], sizes = [16, 8], strides = [1, 1]} : vector<16x32xbf16> to vector<16x8xbf16>
    %173 = vector.extract_strided_slice %151 {offsets = [0, 8], sizes = [16, 8], strides = [1, 1]} : vector<16x32xbf16> to vector<16x8xbf16>
    %cst_50 = arith.constant dense<0.000000e+00> : vector<16x16xf32>
    %174 = tpu.matmul %172, %173, %cst_50 {dimension_numbers = #tpu.dot_dimension_numbers<[1], [1], [0], [0], [0, 0, 1, 0], [], []>} : vector<16x8xbf16>, vector<16x8xbf16>, vector<16x16xf32> -> vector<16x16xf32>
    %cst_51 = arith.constant 0.353553385 : f32
    %175 = vector.broadcast %cst_51 : f32 to vector<16x16xf32>
    %176 = arith.mulf %174, %175 : vector<16x16xf32>
    %177 = arith.addf %176, %4 : vector<16x16xf32>
    %cst_52 = arith.constant dense<0xFF800000> : vector<16xf32>
    %178 = vector.multi_reduction <maximumf>, %177, %cst_52 [1] : vector<16x16xf32> to vector<16xf32>
    %179 = vector.shape_cast %178 : vector<16xf32> to vector<16x1xf32>
    %180 = vector.broadcast %179 : vector<16x1xf32> to vector<16x16xf32>
    %181 = arith.subf %177, %180 : vector<16x16xf32>
    %182 = math.exp %181 : vector<16x16xf32>
    %cst_53 = arith.constant dense<0.000000e+00> : vector<16xf32>
    %183 = vector.multi_reduction <add>, %182, %cst_53 [1] : vector<16x16xf32> to vector<16xf32>
    %184 = vector.shape_cast %183 : vector<16xf32> to vector<16x1xf32>
    %185 = tpu.reciprocal %184 {approx = true} : vector<16x1xf32> -> vector<16x1xf32>
    %186 = vector.broadcast %185 : vector<16x1xf32> to vector<16x16xf32>
    %187 = arith.mulf %182, %186 : vector<16x16xf32>
    %188 = arith.truncf %187 : vector<16x16xf32> to vector<16x16xbf16>
    %189 = vector.extract_strided_slice %152 {offsets = [0, 8], sizes = [16, 8], strides = [1, 1]} : vector<16x32xbf16> to vector<16x8xbf16>
    %cst_54 = arith.constant dense<0.000000e+00> : vector<16x8xf32>
    %190 = tpu.matmul %188, %189, %cst_54 {dimension_numbers = #tpu.dot_dimension_numbers<[1], [0], [0], [1], [0, 0, 1, 1], [], []>} : vector<16x16xbf16>, vector<16x8xbf16>, vector<16x8xf32> -> vector<16x8xf32>
    %191 = vector.extract_strided_slice %150 {offsets = [0, 16], sizes = [16, 8], strides = [1, 1]} : vector<16x32xbf16> to vector<16x8xbf16>
    %192 = vector.extract_strided_slice %151 {offsets = [0, 16], sizes = [16, 8], strides = [1, 1]} : vector<16x32xbf16> to vector<16x8xbf16>
    %cst_55 = arith.constant dense<0.000000e+00> : vector<16x16xf32>
    %193 = tpu.matmul %191, %192, %cst_55 {dimension_numbers = #tpu.dot_dimension_numbers<[1], [1], [0], [0], [0, 0, 1, 0], [], []>} : vector<16x8xbf16>, vector<16x8xbf16>, vector<16x16xf32> -> vector<16x16xf32>
    %cst_56 = arith.constant 0.353553385 : f32
    %194 = vector.broadcast %cst_56 : f32 to vector<16x16xf32>
    %195 = arith.mulf %193, %194 : vector<16x16xf32>
    %196 = arith.addf %195, %4 : vector<16x16xf32>
    %cst_57 = arith.constant dense<0xFF800000> : vector<16xf32>
    %197 = vector.multi_reduction <maximumf>, %196, %cst_57 [1] : vector<16x16xf32> to vector<16xf32>
    %198 = vector.shape_cast %197 : vector<16xf32> to vector<16x1xf32>
    %199 = vector.broadcast %198 : vector<16x1xf32> to vector<16x16xf32>
    %200 = arith.subf %196, %199 : vector<16x16xf32>
    %201 = math.exp %200 : vector<16x16xf32>
    %cst_58 = arith.constant dense<0.000000e+00> : vector<16xf32>
    %202 = vector.multi_reduction <add>, %201, %cst_58 [1] : vector<16x16xf32> to vector<16xf32>
    %203 = vector.shape_cast %202 : vector<16xf32> to vector<16x1xf32>
    %204 = tpu.reciprocal %203 {approx = true} : vector<16x1xf32> -> vector<16x1xf32>
    %205 = vector.broadcast %204 : vector<16x1xf32> to vector<16x16xf32>
    %206 = arith.mulf %201, %205 : vector<16x16xf32>
    %207 = arith.truncf %206 : vector<16x16xf32> to vector<16x16xbf16>
    %208 = vector.extract_strided_slice %152 {offsets = [0, 16], sizes = [16, 8], strides = [1, 1]} : vector<16x32xbf16> to vector<16x8xbf16>
    %cst_59 = arith.constant dense<0.000000e+00> : vector<16x8xf32>
    %209 = tpu.matmul %207, %208, %cst_59 {dimension_numbers = #tpu.dot_dimension_numbers<[1], [0], [0], [1], [0, 0, 1, 1], [], []>} : vector<16x16xbf16>, vector<16x8xbf16>, vector<16x8xf32> -> vector<16x8xf32>
    %210 = vector.extract_strided_slice %150 {offsets = [0, 24], sizes = [16, 8], strides = [1, 1]} : vector<16x32xbf16> to vector<16x8xbf16>
    %211 = vector.extract_strided_slice %151 {offsets = [0, 24], sizes = [16, 8], strides = [1, 1]} : vector<16x32xbf16> to vector<16x8xbf16>
    %cst_60 = arith.constant dense<0.000000e+00> : vector<16x16xf32>
    %212 = tpu.matmul %210, %211, %cst_60 {dimension_numbers = #tpu.dot_dimension_numbers<[1], [1], [0], [0], [0, 0, 1, 0], [], []>} : vector<16x8xbf16>, vector<16x8xbf16>, vector<16x16xf32> -> vector<16x16xf32>
    %cst_61 = arith.constant 0.353553385 : f32
    %213 = vector.broadcast %cst_61 : f32 to vector<16x16xf32>
    %214 = arith.mulf %212, %213 : vector<16x16xf32>
    %215 = arith.addf %214, %4 : vector<16x16xf32>
    %cst_62 = arith.constant dense<0xFF800000> : vector<16xf32>
    %216 = vector.multi_reduction <maximumf>, %215, %cst_62 [1] : vector<16x16xf32> to vector<16xf32>
    %217 = vector.shape_cast %216 : vector<16xf32> to vector<16x1xf32>
    %218 = vector.broadcast %217 : vector<16x1xf32> to vector<16x16xf32>
    %219 = arith.subf %215, %218 : vector<16x16xf32>
    %220 = math.exp %219 : vector<16x16xf32>
    %cst_63 = arith.constant dense<0.000000e+00> : vector<16xf32>
    %221 = vector.multi_reduction <add>, %220, %cst_63 [1] : vector<16x16xf32> to vector<16xf32>
    %222 = vector.shape_cast %221 : vector<16xf32> to vector<16x1xf32>
    %223 = tpu.reciprocal %222 {approx = true} : vector<16x1xf32> -> vector<16x1xf32>
    %224 = vector.broadcast %223 : vector<16x1xf32> to vector<16x16xf32>
    %225 = arith.mulf %220, %224 : vector<16x16xf32>
    %226 = arith.truncf %225 : vector<16x16xf32> to vector<16x16xbf16>
    %227 = vector.extract_strided_slice %152 {offsets = [0, 24], sizes = [16, 8], strides = [1, 1]} : vector<16x32xbf16> to vector<16x8xbf16>
    %cst_64 = arith.constant dense<0.000000e+00> : vector<16x8xf32>
    %228 = tpu.matmul %226, %227, %cst_64 {dimension_numbers = #tpu.dot_dimension_numbers<[1], [0], [0], [1], [0, 0, 1, 1], [], []>} : vector<16x16xbf16>, vector<16x8xbf16>, vector<16x8xf32> -> vector<16x8xf32>
    %229 = tpu.concatenate %171, %190, %209, %228 in 1 : vector<16x8xf32>, vector<16x8xf32>, vector<16x8xf32>, vector<16x8xf32> -> vector<16x32xf32>
    %230 = arith.truncf %229 : vector<16x32xf32> to vector<16x32xbf16>
    %231 = vector.extract_strided_slice %133 {offsets = [0, 96], sizes = [32, 32], strides = [1, 1]} : vector<32x128xbf16> to vector<32x32xbf16>
    %cst_65 = arith.constant dense<0.000000e+00> : vector<16x32xf32>
    %232 = tpu.matmul %230, %231, %cst_65 {dimension_numbers = #tpu.dot_dimension_numbers<[1], [0], [0], [1], [0, 0, 1, 1], [], []>} : vector<16x32xbf16>, vector<32x32xbf16>, vector<16x32xf32> -> vector<16x32xf32>
    %233 = vector.broadcast %135 : vector<1x32xf32> to vector<16x32xf32>
    %234 = arith.addf %232, %233 : vector<16x32xf32>
    %235 = arith.addf %234, %131 : vector<16x32xf32>
    %c6 = arith.constant 6 : index
    %c0_66 = arith.constant 0 : index
    %236 = vector.load %arg6[%c6, %c0_66] : memref<32x128xf32, #tpu.memory_space<vmem>>, vector<1x32xf32>
    %c7 = arith.constant 7 : index
    %c0_67 = arith.constant 0 : index
    %237 = vector.load %arg6[%c7, %c0_67] : memref<32x128xf32, #tpu.memory_space<vmem>>, vector<1x32xf32>
    %cst_68 = arith.constant dense<0.000000e+00> : vector<16xf32>
    %238 = vector.multi_reduction <add>, %235, %cst_68 [1] : vector<16x32xf32> to vector<16xf32>
    %239 = vector.shape_cast %238 : vector<16xf32> to vector<16x1xf32>
    %cst_69 = arith.constant 3.200000e+01 : f32
    %240 = vector.broadcast %cst_69 : f32 to vector<16x1xf32>
    %241 = arith.divf %239, %240 : vector<16x1xf32>
    %242 = arith.mulf %235, %235 : vector<16x32xf32>
    %cst_70 = arith.constant dense<0.000000e+00> : vector<16xf32>
    %243 = vector.multi_reduction <add>, %242, %cst_70 [1] : vector<16x32xf32> to vector<16xf32>
    %244 = vector.shape_cast %243 : vector<16xf32> to vector<16x1xf32>
    %cst_71 = arith.constant 3.200000e+01 : f32
    %245 = vector.broadcast %cst_71 : f32 to vector<16x1xf32>
    %246 = arith.divf %244, %245 : vector<16x1xf32>
    %247 = arith.mulf %241, %241 : vector<16x1xf32>
    %248 = arith.subf %246, %247 : vector<16x1xf32>
    %249 = vector.broadcast %241 : vector<16x1xf32> to vector<16x32xf32>
    %250 = arith.subf %235, %249 : vector<16x32xf32>
    %cst_72 = arith.constant 9.99999974E-6 : f32
    %251 = vector.broadcast %cst_72 : f32 to vector<16x1xf32>
    %252 = arith.addf %248, %251 : vector<16x1xf32>
    %253 = math.rsqrt %252 : vector<16x1xf32>
    %254 = vector.broadcast %253 : vector<16x1xf32> to vector<16x32xf32>
    %255 = arith.mulf %250, %254 : vector<16x32xf32>
    %256 = vector.broadcast %236 : vector<1x32xf32> to vector<16x32xf32>
    %257 = arith.mulf %255, %256 : vector<16x32xf32>
    %258 = vector.broadcast %237 : vector<1x32xf32> to vector<16x32xf32>
    %259 = arith.addf %257, %258 : vector<16x32xf32>
    %c128 = arith.constant 128 : index
    %c0_73 = arith.constant 0 : index
    %260 = vector.load %arg5[%c128, %c0_73] : memref<480x128xbf16, #tpu.memory_space<vmem>>, vector<32x128xbf16>
    %c192 = arith.constant 192 : index
    %c0_74 = arith.constant 0 : index
    %261 = vector.load %arg5[%c192, %c0_74] : memref<480x128xbf16, #tpu.memory_space<vmem>>, vector<128x128xbf16>
    %262 = arith.truncf %259 : vector<16x32xf32> to vector<16x32xbf16>
    %c10 = arith.constant 10 : index
    %c0_75 = arith.constant 0 : index
    %263 = vector.load %arg6[%c10, %c0_75] : memref<32x128xf32, #tpu.memory_space<vmem>>, vector<1x128xf32>
    %c11 = arith.constant 11 : index
    %c0_76 = arith.constant 0 : index
    %264 = vector.load %arg6[%c11, %c0_76] : memref<32x128xf32, #tpu.memory_space<vmem>>, vector<1x32xf32>
    %cst_77 = arith.constant dense<0.000000e+00> : vector<16x128xf32>
    %265 = tpu.matmul %262, %260, %cst_77 {dimension_numbers = #tpu.dot_dimension_numbers<[1], [0], [0], [1], [0, 0, 1, 1], [], []>} : vector<16x32xbf16>, vector<32x128xbf16>, vector<16x128xf32> -> vector<16x128xf32>
    %266 = vector.broadcast %263 : vector<1x128xf32> to vector<16x128xf32>
    %267 = arith.addf %265, %266 : vector<16x128xf32>
    %cst_78 = arith.constant 0.000000e+00 : f32
    %268 = vector.broadcast %cst_78 : f32 to vector<16x128xf32>
    %269 = arith.maximumf %267, %268 : vector<16x128xf32>
    %270 = arith.truncf %269 : vector<16x128xf32> to vector<16x128xbf16>
    %cst_79 = arith.constant dense<0.000000e+00> : vector<16x128xf32>
    %271 = tpu.matmul %270, %261, %cst_79 {dimension_numbers = #tpu.dot_dimension_numbers<[1], [0], [0], [1], [0, 0, 1, 1], [], []>} : vector<16x128xbf16>, vector<128x128xbf16>, vector<16x128xf32> -> vector<16x128xf32>
    %272 = vector.extract_strided_slice %271 {offsets = [0, 0], sizes = [16, 32], strides = [1, 1]} : vector<16x128xf32> to vector<16x32xf32>
    %273 = vector.broadcast %264 : vector<1x32xf32> to vector<16x32xf32>
    %274 = arith.addf %272, %273 : vector<16x32xf32>
    %275 = arith.addf %274, %259 : vector<16x32xf32>
    %c8 = arith.constant 8 : index
    %c0_80 = arith.constant 0 : index
    %276 = vector.load %arg6[%c8, %c0_80] : memref<32x128xf32, #tpu.memory_space<vmem>>, vector<1x32xf32>
    %c9 = arith.constant 9 : index
    %c0_81 = arith.constant 0 : index
    %277 = vector.load %arg6[%c9, %c0_81] : memref<32x128xf32, #tpu.memory_space<vmem>>, vector<1x32xf32>
    %cst_82 = arith.constant dense<0.000000e+00> : vector<16xf32>
    %278 = vector.multi_reduction <add>, %275, %cst_82 [1] : vector<16x32xf32> to vector<16xf32>
    %279 = vector.shape_cast %278 : vector<16xf32> to vector<16x1xf32>
    %cst_83 = arith.constant 3.200000e+01 : f32
    %280 = vector.broadcast %cst_83 : f32 to vector<16x1xf32>
    %281 = arith.divf %279, %280 : vector<16x1xf32>
    %282 = arith.mulf %275, %275 : vector<16x32xf32>
    %cst_84 = arith.constant dense<0.000000e+00> : vector<16xf32>
    %283 = vector.multi_reduction <add>, %282, %cst_84 [1] : vector<16x32xf32> to vector<16xf32>
    %284 = vector.shape_cast %283 : vector<16xf32> to vector<16x1xf32>
    %cst_85 = arith.constant 3.200000e+01 : f32
    %285 = vector.broadcast %cst_85 : f32 to vector<16x1xf32>
    %286 = arith.divf %284, %285 : vector<16x1xf32>
    %287 = arith.mulf %281, %281 : vector<16x1xf32>
    %288 = arith.subf %286, %287 : vector<16x1xf32>
    %289 = vector.broadcast %281 : vector<16x1xf32> to vector<16x32xf32>
    %290 = arith.subf %275, %289 : vector<16x32xf32>
    %cst_86 = arith.constant 9.99999974E-6 : f32
    %291 = vector.broadcast %cst_86 : f32 to vector<16x1xf32>
    %292 = arith.addf %288, %291 : vector<16x1xf32>
    %293 = math.rsqrt %292 : vector<16x1xf32>
    %294 = vector.broadcast %293 : vector<16x1xf32> to vector<16x32xf32>
    %295 = arith.mulf %290, %294 : vector<16x32xf32>
    %296 = vector.broadcast %276 : vector<1x32xf32> to vector<16x32xf32>
    %297 = arith.mulf %295, %296 : vector<16x32xf32>
    %298 = vector.broadcast %277 : vector<1x32xf32> to vector<16x32xf32>
    %299 = arith.addf %297, %298 : vector<16x32xf32>
    %300 = arith.truncf %299 : vector<16x32xf32> to vector<16x32xbf16>
    %c64 = arith.constant 64 : index
    %c0_87 = arith.constant 0 : index
    %301 = vector.load %arg5[%c64, %c0_87] : memref<480x128xbf16, #tpu.memory_space<vmem>>, vector<32x128xbf16>
    %c12 = arith.constant 12 : index
    %c0_88 = arith.constant 0 : index
    %302 = vector.load %arg6[%c12, %c0_88] : memref<32x128xf32, #tpu.memory_space<vmem>>, vector<1x128xf32>
    %c13 = arith.constant 13 : index
    %c0_89 = arith.constant 0 : index
    %303 = vector.load %arg6[%c13, %c0_89] : memref<32x128xf32, #tpu.memory_space<vmem>>, vector<1x32xf32>
    %cst_90 = arith.constant dense<0.000000e+00> : vector<16x128xf32>
    %304 = tpu.matmul %300, %301, %cst_90 {dimension_numbers = #tpu.dot_dimension_numbers<[1], [0], [0], [1], [0, 0, 1, 1], [], []>} : vector<16x32xbf16>, vector<32x128xbf16>, vector<16x128xf32> -> vector<16x128xf32>
    %305 = vector.extract_strided_slice %304 {offsets = [0, 32], sizes = [16, 32], strides = [1, 1]} : vector<16x128xf32> to vector<16x32xf32>
    %306 = vector.extract_strided_slice %302 {offsets = [0, 32], sizes = [1, 32], strides = [1, 1]} : vector<1x128xf32> to vector<1x32xf32>
    %307 = vector.broadcast %306 : vector<1x32xf32> to vector<16x32xf32>
    %308 = arith.addf %305, %307 : vector<16x32xf32>
    %309 = vector.extract_strided_slice %304 {offsets = [0, 64], sizes = [16, 32], strides = [1, 1]} : vector<16x128xf32> to vector<16x32xf32>
    %310 = vector.extract_strided_slice %302 {offsets = [0, 64], sizes = [1, 32], strides = [1, 1]} : vector<1x128xf32> to vector<1x32xf32>
    %311 = vector.broadcast %310 : vector<1x32xf32> to vector<16x32xf32>
    %312 = arith.addf %309, %311 : vector<16x32xf32>
    %313 = vector.extract_strided_slice %304 {offsets = [0, 0], sizes = [16, 32], strides = [1, 1]} : vector<16x128xf32> to vector<16x32xf32>
    %314 = vector.extract_strided_slice %302 {offsets = [0, 0], sizes = [1, 32], strides = [1, 1]} : vector<1x128xf32> to vector<1x32xf32>
    %315 = vector.broadcast %314 : vector<1x32xf32> to vector<16x32xf32>
    %316 = arith.addf %313, %315 : vector<16x32xf32>
    %317 = arith.truncf %316 : vector<16x32xf32> to vector<16x32xbf16>
    %318 = arith.truncf %308 : vector<16x32xf32> to vector<16x32xbf16>
    %319 = arith.truncf %312 : vector<16x32xf32> to vector<16x32xbf16>
    %320 = vector.extract_strided_slice %317 {offsets = [0, 0], sizes = [16, 8], strides = [1, 1]} : vector<16x32xbf16> to vector<16x8xbf16>
    %321 = vector.extract_strided_slice %318 {offsets = [0, 0], sizes = [16, 8], strides = [1, 1]} : vector<16x32xbf16> to vector<16x8xbf16>
    %cst_91 = arith.constant dense<0.000000e+00> : vector<16x16xf32>
    %322 = tpu.matmul %320, %321, %cst_91 {dimension_numbers = #tpu.dot_dimension_numbers<[1], [1], [0], [0], [0, 0, 1, 0], [], []>} : vector<16x8xbf16>, vector<16x8xbf16>, vector<16x16xf32> -> vector<16x16xf32>
    %cst_92 = arith.constant 0.353553385 : f32
    %323 = vector.broadcast %cst_92 : f32 to vector<16x16xf32>
    %324 = arith.mulf %322, %323 : vector<16x16xf32>
    %325 = arith.addf %324, %3 : vector<16x16xf32>
    %cst_93 = arith.constant dense<0xFF800000> : vector<16xf32>
    %326 = vector.multi_reduction <maximumf>, %325, %cst_93 [1] : vector<16x16xf32> to vector<16xf32>
    %327 = vector.shape_cast %326 : vector<16xf32> to vector<16x1xf32>
    %328 = vector.broadcast %327 : vector<16x1xf32> to vector<16x16xf32>
    %329 = arith.subf %325, %328 : vector<16x16xf32>
    %330 = math.exp %329 : vector<16x16xf32>
    %cst_94 = arith.constant dense<0.000000e+00> : vector<16xf32>
    %331 = vector.multi_reduction <add>, %330, %cst_94 [1] : vector<16x16xf32> to vector<16xf32>
    %332 = vector.shape_cast %331 : vector<16xf32> to vector<16x1xf32>
    %333 = tpu.reciprocal %332 {approx = true} : vector<16x1xf32> -> vector<16x1xf32>
    %334 = vector.broadcast %333 : vector<16x1xf32> to vector<16x16xf32>
    %335 = arith.mulf %330, %334 : vector<16x16xf32>
    %336 = arith.truncf %335 : vector<16x16xf32> to vector<16x16xbf16>
    %337 = vector.extract_strided_slice %319 {offsets = [0, 0], sizes = [16, 8], strides = [1, 1]} : vector<16x32xbf16> to vector<16x8xbf16>
    %cst_95 = arith.constant dense<0.000000e+00> : vector<16x8xf32>
    %338 = tpu.matmul %336, %337, %cst_95 {dimension_numbers = #tpu.dot_dimension_numbers<[1], [0], [0], [1], [0, 0, 1, 1], [], []>} : vector<16x16xbf16>, vector<16x8xbf16>, vector<16x8xf32> -> vector<16x8xf32>
    %339 = vector.extract_strided_slice %317 {offsets = [0, 8], sizes = [16, 8], strides = [1, 1]} : vector<16x32xbf16> to vector<16x8xbf16>
    %340 = vector.extract_strided_slice %318 {offsets = [0, 8], sizes = [16, 8], strides = [1, 1]} : vector<16x32xbf16> to vector<16x8xbf16>
    %cst_96 = arith.constant dense<0.000000e+00> : vector<16x16xf32>
    %341 = tpu.matmul %339, %340, %cst_96 {dimension_numbers = #tpu.dot_dimension_numbers<[1], [1], [0], [0], [0, 0, 1, 0], [], []>} : vector<16x8xbf16>, vector<16x8xbf16>, vector<16x16xf32> -> vector<16x16xf32>
    %cst_97 = arith.constant 0.353553385 : f32
    %342 = vector.broadcast %cst_97 : f32 to vector<16x16xf32>
    %343 = arith.mulf %341, %342 : vector<16x16xf32>
    %344 = arith.addf %343, %3 : vector<16x16xf32>
    %cst_98 = arith.constant dense<0xFF800000> : vector<16xf32>
    %345 = vector.multi_reduction <maximumf>, %344, %cst_98 [1] : vector<16x16xf32> to vector<16xf32>
    %346 = vector.shape_cast %345 : vector<16xf32> to vector<16x1xf32>
    %347 = vector.broadcast %346 : vector<16x1xf32> to vector<16x16xf32>
    %348 = arith.subf %344, %347 : vector<16x16xf32>
    %349 = math.exp %348 : vector<16x16xf32>
    %cst_99 = arith.constant dense<0.000000e+00> : vector<16xf32>
    %350 = vector.multi_reduction <add>, %349, %cst_99 [1] : vector<16x16xf32> to vector<16xf32>
    %351 = vector.shape_cast %350 : vector<16xf32> to vector<16x1xf32>
    %352 = tpu.reciprocal %351 {approx = true} : vector<16x1xf32> -> vector<16x1xf32>
    %353 = vector.broadcast %352 : vector<16x1xf32> to vector<16x16xf32>
    %354 = arith.mulf %349, %353 : vector<16x16xf32>
    %355 = arith.truncf %354 : vector<16x16xf32> to vector<16x16xbf16>
    %356 = vector.extract_strided_slice %319 {offsets = [0, 8], sizes = [16, 8], strides = [1, 1]} : vector<16x32xbf16> to vector<16x8xbf16>
    %cst_100 = arith.constant dense<0.000000e+00> : vector<16x8xf32>
    %357 = tpu.matmul %355, %356, %cst_100 {dimension_numbers = #tpu.dot_dimension_numbers<[1], [0], [0], [1], [0, 0, 1, 1], [], []>} : vector<16x16xbf16>, vector<16x8xbf16>, vector<16x8xf32> -> vector<16x8xf32>
    %358 = vector.extract_strided_slice %317 {offsets = [0, 16], sizes = [16, 8], strides = [1, 1]} : vector<16x32xbf16> to vector<16x8xbf16>
    %359 = vector.extract_strided_slice %318 {offsets = [0, 16], sizes = [16, 8], strides = [1, 1]} : vector<16x32xbf16> to vector<16x8xbf16>
    %cst_101 = arith.constant dense<0.000000e+00> : vector<16x16xf32>
    %360 = tpu.matmul %358, %359, %cst_101 {dimension_numbers = #tpu.dot_dimension_numbers<[1], [1], [0], [0], [0, 0, 1, 0], [], []>} : vector<16x8xbf16>, vector<16x8xbf16>, vector<16x16xf32> -> vector<16x16xf32>
    %cst_102 = arith.constant 0.353553385 : f32
    %361 = vector.broadcast %cst_102 : f32 to vector<16x16xf32>
    %362 = arith.mulf %360, %361 : vector<16x16xf32>
    %363 = arith.addf %362, %3 : vector<16x16xf32>
    %cst_103 = arith.constant dense<0xFF800000> : vector<16xf32>
    %364 = vector.multi_reduction <maximumf>, %363, %cst_103 [1] : vector<16x16xf32> to vector<16xf32>
    %365 = vector.shape_cast %364 : vector<16xf32> to vector<16x1xf32>
    %366 = vector.broadcast %365 : vector<16x1xf32> to vector<16x16xf32>
    %367 = arith.subf %363, %366 : vector<16x16xf32>
    %368 = math.exp %367 : vector<16x16xf32>
    %cst_104 = arith.constant dense<0.000000e+00> : vector<16xf32>
    %369 = vector.multi_reduction <add>, %368, %cst_104 [1] : vector<16x16xf32> to vector<16xf32>
    %370 = vector.shape_cast %369 : vector<16xf32> to vector<16x1xf32>
    %371 = tpu.reciprocal %370 {approx = true} : vector<16x1xf32> -> vector<16x1xf32>
    %372 = vector.broadcast %371 : vector<16x1xf32> to vector<16x16xf32>
    %373 = arith.mulf %368, %372 : vector<16x16xf32>
    %374 = arith.truncf %373 : vector<16x16xf32> to vector<16x16xbf16>
    %375 = vector.extract_strided_slice %319 {offsets = [0, 16], sizes = [16, 8], strides = [1, 1]} : vector<16x32xbf16> to vector<16x8xbf16>
    %cst_105 = arith.constant dense<0.000000e+00> : vector<16x8xf32>
    %376 = tpu.matmul %374, %375, %cst_105 {dimension_numbers = #tpu.dot_dimension_numbers<[1], [0], [0], [1], [0, 0, 1, 1], [], []>} : vector<16x16xbf16>, vector<16x8xbf16>, vector<16x8xf32> -> vector<16x8xf32>
    %377 = vector.extract_strided_slice %317 {offsets = [0, 24], sizes = [16, 8], strides = [1, 1]} : vector<16x32xbf16> to vector<16x8xbf16>
    %378 = vector.extract_strided_slice %318 {offsets = [0, 24], sizes = [16, 8], strides = [1, 1]} : vector<16x32xbf16> to vector<16x8xbf16>
    %cst_106 = arith.constant dense<0.000000e+00> : vector<16x16xf32>
    %379 = tpu.matmul %377, %378, %cst_106 {dimension_numbers = #tpu.dot_dimension_numbers<[1], [1], [0], [0], [0, 0, 1, 0], [], []>} : vector<16x8xbf16>, vector<16x8xbf16>, vector<16x16xf32> -> vector<16x16xf32>
    %cst_107 = arith.constant 0.353553385 : f32
    %380 = vector.broadcast %cst_107 : f32 to vector<16x16xf32>
    %381 = arith.mulf %379, %380 : vector<16x16xf32>
    %382 = arith.addf %381, %3 : vector<16x16xf32>
    %cst_108 = arith.constant dense<0xFF800000> : vector<16xf32>
    %383 = vector.multi_reduction <maximumf>, %382, %cst_108 [1] : vector<16x16xf32> to vector<16xf32>
    %384 = vector.shape_cast %383 : vector<16xf32> to vector<16x1xf32>
    %385 = vector.broadcast %384 : vector<16x1xf32> to vector<16x16xf32>
    %386 = arith.subf %382, %385 : vector<16x16xf32>
    %387 = math.exp %386 : vector<16x16xf32>
    %cst_109 = arith.constant dense<0.000000e+00> : vector<16xf32>
    %388 = vector.multi_reduction <add>, %387, %cst_109 [1] : vector<16x16xf32> to vector<16xf32>
    %389 = vector.shape_cast %388 : vector<16xf32> to vector<16x1xf32>
    %390 = tpu.reciprocal %389 {approx = true} : vector<16x1xf32> -> vector<16x1xf32>
    %391 = vector.broadcast %390 : vector<16x1xf32> to vector<16x16xf32>
    %392 = arith.mulf %387, %391 : vector<16x16xf32>
    %393 = arith.truncf %392 : vector<16x16xf32> to vector<16x16xbf16>
    %394 = vector.extract_strided_slice %319 {offsets = [0, 24], sizes = [16, 8], strides = [1, 1]} : vector<16x32xbf16> to vector<16x8xbf16>
    %cst_110 = arith.constant dense<0.000000e+00> : vector<16x8xf32>
    %395 = tpu.matmul %393, %394, %cst_110 {dimension_numbers = #tpu.dot_dimension_numbers<[1], [0], [0], [1], [0, 0, 1, 1], [], []>} : vector<16x16xbf16>, vector<16x8xbf16>, vector<16x8xf32> -> vector<16x8xf32>
    %396 = tpu.concatenate %338, %357, %376, %395 in 1 : vector<16x8xf32>, vector<16x8xf32>, vector<16x8xf32>, vector<16x8xf32> -> vector<16x32xf32>
    %397 = arith.truncf %396 : vector<16x32xf32> to vector<16x32xbf16>
    %398 = vector.extract_strided_slice %301 {offsets = [0, 96], sizes = [32, 32], strides = [1, 1]} : vector<32x128xbf16> to vector<32x32xbf16>
    %cst_111 = arith.constant dense<0.000000e+00> : vector<16x32xf32>
    %399 = tpu.matmul %397, %398, %cst_111 {dimension_numbers = #tpu.dot_dimension_numbers<[1], [0], [0], [1], [0, 0, 1, 1], [], []>} : vector<16x32xbf16>, vector<32x32xbf16>, vector<16x32xf32> -> vector<16x32xf32>
    %400 = vector.broadcast %303 : vector<1x32xf32> to vector<16x32xf32>
    %401 = arith.addf %399, %400 : vector<16x32xf32>
    %402 = arith.addf %401, %299 : vector<16x32xf32>
    %c16 = arith.constant 16 : index
    %c0_112 = arith.constant 0 : index
    %403 = vector.load %arg6[%c16, %c0_112] : memref<32x128xf32, #tpu.memory_space<vmem>>, vector<1x32xf32>
    %c17 = arith.constant 17 : index
    %c0_113 = arith.constant 0 : index
    %404 = vector.load %arg6[%c17, %c0_113] : memref<32x128xf32, #tpu.memory_space<vmem>>, vector<1x32xf32>
    %cst_114 = arith.constant dense<0.000000e+00> : vector<16xf32>
    %405 = vector.multi_reduction <add>, %402, %cst_114 [1] : vector<16x32xf32> to vector<16xf32>
    %406 = vector.shape_cast %405 : vector<16xf32> to vector<16x1xf32>
    %cst_115 = arith.constant 3.200000e+01 : f32
    %407 = vector.broadcast %cst_115 : f32 to vector<16x1xf32>
    %408 = arith.divf %406, %407 : vector<16x1xf32>
    %409 = arith.mulf %402, %402 : vector<16x32xf32>
    %cst_116 = arith.constant dense<0.000000e+00> : vector<16xf32>
    %410 = vector.multi_reduction <add>, %409, %cst_116 [1] : vector<16x32xf32> to vector<16xf32>
    %411 = vector.shape_cast %410 : vector<16xf32> to vector<16x1xf32>
    %cst_117 = arith.constant 3.200000e+01 : f32
    %412 = vector.broadcast %cst_117 : f32 to vector<16x1xf32>
    %413 = arith.divf %411, %412 : vector<16x1xf32>
    %414 = arith.mulf %408, %408 : vector<16x1xf32>
    %415 = arith.subf %413, %414 : vector<16x1xf32>
    %416 = vector.broadcast %408 : vector<16x1xf32> to vector<16x32xf32>
    %417 = arith.subf %402, %416 : vector<16x32xf32>
    %cst_118 = arith.constant 9.99999974E-6 : f32
    %418 = vector.broadcast %cst_118 : f32 to vector<16x1xf32>
    %419 = arith.addf %415, %418 : vector<16x1xf32>
    %420 = math.rsqrt %419 : vector<16x1xf32>
    %421 = vector.broadcast %420 : vector<16x1xf32> to vector<16x32xf32>
    %422 = arith.mulf %417, %421 : vector<16x32xf32>
    %423 = vector.broadcast %403 : vector<1x32xf32> to vector<16x32xf32>
    %424 = arith.mulf %422, %423 : vector<16x32xf32>
    %425 = vector.broadcast %404 : vector<1x32xf32> to vector<16x32xf32>
    %426 = arith.addf %424, %425 : vector<16x32xf32>
    %427 = arith.truncf %426 : vector<16x32xf32> to vector<16x32xbf16>
    %c96 = arith.constant 96 : index
    %c0_119 = arith.constant 0 : index
    %428 = vector.load %arg5[%c96, %c0_119] : memref<480x128xbf16, #tpu.memory_space<vmem>>, vector<32x128xbf16>
    %c14 = arith.constant 14 : index
    %c0_120 = arith.constant 0 : index
    %429 = vector.load %arg6[%c14, %c0_120] : memref<32x128xf32, #tpu.memory_space<vmem>>, vector<1x128xf32>
    %c15 = arith.constant 15 : index
    %c0_121 = arith.constant 0 : index
    %430 = vector.load %arg6[%c15, %c0_121] : memref<32x128xf32, #tpu.memory_space<vmem>>, vector<1x32xf32>
    %cst_122 = arith.constant dense<0.000000e+00> : vector<16x128xf32>
    %431 = tpu.matmul %2, %428, %cst_122 {dimension_numbers = #tpu.dot_dimension_numbers<[1], [0], [0], [1], [0, 0, 1, 1], [], []>} : vector<16x32xbf16>, vector<32x128xbf16>, vector<16x128xf32> -> vector<16x128xf32>
    %432 = vector.extract_strided_slice %431 {offsets = [0, 32], sizes = [16, 32], strides = [1, 1]} : vector<16x128xf32> to vector<16x32xf32>
    %433 = vector.extract_strided_slice %429 {offsets = [0, 32], sizes = [1, 32], strides = [1, 1]} : vector<1x128xf32> to vector<1x32xf32>
    %434 = vector.broadcast %433 : vector<1x32xf32> to vector<16x32xf32>
    %435 = arith.addf %432, %434 : vector<16x32xf32>
    %436 = vector.extract_strided_slice %431 {offsets = [0, 64], sizes = [16, 32], strides = [1, 1]} : vector<16x128xf32> to vector<16x32xf32>
    %437 = vector.extract_strided_slice %429 {offsets = [0, 64], sizes = [1, 32], strides = [1, 1]} : vector<1x128xf32> to vector<1x32xf32>
    %438 = vector.broadcast %437 : vector<1x32xf32> to vector<16x32xf32>
    %439 = arith.addf %436, %438 : vector<16x32xf32>
    %cst_123 = arith.constant dense<0.000000e+00> : vector<16x128xf32>
    %440 = tpu.matmul %427, %428, %cst_123 {dimension_numbers = #tpu.dot_dimension_numbers<[1], [0], [0], [1], [0, 0, 1, 1], [], []>} : vector<16x32xbf16>, vector<32x128xbf16>, vector<16x128xf32> -> vector<16x128xf32>
    %441 = vector.extract_strided_slice %440 {offsets = [0, 0], sizes = [16, 32], strides = [1, 1]} : vector<16x128xf32> to vector<16x32xf32>
    %442 = vector.extract_strided_slice %429 {offsets = [0, 0], sizes = [1, 32], strides = [1, 1]} : vector<1x128xf32> to vector<1x32xf32>
    %443 = vector.broadcast %442 : vector<1x32xf32> to vector<16x32xf32>
    %444 = arith.addf %441, %443 : vector<16x32xf32>
    %445 = arith.truncf %444 : vector<16x32xf32> to vector<16x32xbf16>
    %446 = arith.truncf %435 : vector<16x32xf32> to vector<16x32xbf16>
    %447 = arith.truncf %439 : vector<16x32xf32> to vector<16x32xbf16>
    %448 = vector.extract_strided_slice %445 {offsets = [0, 0], sizes = [16, 8], strides = [1, 1]} : vector<16x32xbf16> to vector<16x8xbf16>
    %449 = vector.extract_strided_slice %446 {offsets = [0, 0], sizes = [16, 8], strides = [1, 1]} : vector<16x32xbf16> to vector<16x8xbf16>
    %cst_124 = arith.constant dense<0.000000e+00> : vector<16x16xf32>
    %450 = tpu.matmul %448, %449, %cst_124 {dimension_numbers = #tpu.dot_dimension_numbers<[1], [1], [0], [0], [0, 0, 1, 0], [], []>} : vector<16x8xbf16>, vector<16x8xbf16>, vector<16x16xf32> -> vector<16x16xf32>
    %cst_125 = arith.constant 0.353553385 : f32
    %451 = vector.broadcast %cst_125 : f32 to vector<16x16xf32>
    %452 = arith.mulf %450, %451 : vector<16x16xf32>
    %453 = arith.addf %452, %4 : vector<16x16xf32>
    %cst_126 = arith.constant dense<0xFF800000> : vector<16xf32>
    %454 = vector.multi_reduction <maximumf>, %453, %cst_126 [1] : vector<16x16xf32> to vector<16xf32>
    %455 = vector.shape_cast %454 : vector<16xf32> to vector<16x1xf32>
    %456 = vector.broadcast %455 : vector<16x1xf32> to vector<16x16xf32>
    %457 = arith.subf %453, %456 : vector<16x16xf32>
    %458 = math.exp %457 : vector<16x16xf32>
    %cst_127 = arith.constant dense<0.000000e+00> : vector<16xf32>
    %459 = vector.multi_reduction <add>, %458, %cst_127 [1] : vector<16x16xf32> to vector<16xf32>
    %460 = vector.shape_cast %459 : vector<16xf32> to vector<16x1xf32>
    %461 = tpu.reciprocal %460 {approx = true} : vector<16x1xf32> -> vector<16x1xf32>
    %462 = vector.broadcast %461 : vector<16x1xf32> to vector<16x16xf32>
    %463 = arith.mulf %458, %462 : vector<16x16xf32>
    %464 = arith.truncf %463 : vector<16x16xf32> to vector<16x16xbf16>
    %465 = vector.extract_strided_slice %447 {offsets = [0, 0], sizes = [16, 8], strides = [1, 1]} : vector<16x32xbf16> to vector<16x8xbf16>
    %cst_128 = arith.constant dense<0.000000e+00> : vector<16x8xf32>
    %466 = tpu.matmul %464, %465, %cst_128 {dimension_numbers = #tpu.dot_dimension_numbers<[1], [0], [0], [1], [0, 0, 1, 1], [], []>} : vector<16x16xbf16>, vector<16x8xbf16>, vector<16x8xf32> -> vector<16x8xf32>
    %467 = vector.extract_strided_slice %445 {offsets = [0, 8], sizes = [16, 8], strides = [1, 1]} : vector<16x32xbf16> to vector<16x8xbf16>
    %468 = vector.extract_strided_slice %446 {offsets = [0, 8], sizes = [16, 8], strides = [1, 1]} : vector<16x32xbf16> to vector<16x8xbf16>
    %cst_129 = arith.constant dense<0.000000e+00> : vector<16x16xf32>
    %469 = tpu.matmul %467, %468, %cst_129 {dimension_numbers = #tpu.dot_dimension_numbers<[1], [1], [0], [0], [0, 0, 1, 0], [], []>} : vector<16x8xbf16>, vector<16x8xbf16>, vector<16x16xf32> -> vector<16x16xf32>
    %cst_130 = arith.constant 0.353553385 : f32
    %470 = vector.broadcast %cst_130 : f32 to vector<16x16xf32>
    %471 = arith.mulf %469, %470 : vector<16x16xf32>
    %472 = arith.addf %471, %4 : vector<16x16xf32>
    %cst_131 = arith.constant dense<0xFF800000> : vector<16xf32>
    %473 = vector.multi_reduction <maximumf>, %472, %cst_131 [1] : vector<16x16xf32> to vector<16xf32>
    %474 = vector.shape_cast %473 : vector<16xf32> to vector<16x1xf32>
    %475 = vector.broadcast %474 : vector<16x1xf32> to vector<16x16xf32>
    %476 = arith.subf %472, %475 : vector<16x16xf32>
    %477 = math.exp %476 : vector<16x16xf32>
    %cst_132 = arith.constant dense<0.000000e+00> : vector<16xf32>
    %478 = vector.multi_reduction <add>, %477, %cst_132 [1] : vector<16x16xf32> to vector<16xf32>
    %479 = vector.shape_cast %478 : vector<16xf32> to vector<16x1xf32>
    %480 = tpu.reciprocal %479 {approx = true} : vector<16x1xf32> -> vector<16x1xf32>
    %481 = vector.broadcast %480 : vector<16x1xf32> to vector<16x16xf32>
    %482 = arith.mulf %477, %481 : vector<16x16xf32>
    %483 = arith.truncf %482 : vector<16x16xf32> to vector<16x16xbf16>
    %484 = vector.extract_strided_slice %447 {offsets = [0, 8], sizes = [16, 8], strides = [1, 1]} : vector<16x32xbf16> to vector<16x8xbf16>
    %cst_133 = arith.constant dense<0.000000e+00> : vector<16x8xf32>
    %485 = tpu.matmul %483, %484, %cst_133 {dimension_numbers = #tpu.dot_dimension_numbers<[1], [0], [0], [1], [0, 0, 1, 1], [], []>} : vector<16x16xbf16>, vector<16x8xbf16>, vector<16x8xf32> -> vector<16x8xf32>
    %486 = vector.extract_strided_slice %445 {offsets = [0, 16], sizes = [16, 8], strides = [1, 1]} : vector<16x32xbf16> to vector<16x8xbf16>
    %487 = vector.extract_strided_slice %446 {offsets = [0, 16], sizes = [16, 8], strides = [1, 1]} : vector<16x32xbf16> to vector<16x8xbf16>
    %cst_134 = arith.constant dense<0.000000e+00> : vector<16x16xf32>
    %488 = tpu.matmul %486, %487, %cst_134 {dimension_numbers = #tpu.dot_dimension_numbers<[1], [1], [0], [0], [0, 0, 1, 0], [], []>} : vector<16x8xbf16>, vector<16x8xbf16>, vector<16x16xf32> -> vector<16x16xf32>
    %cst_135 = arith.constant 0.353553385 : f32
    %489 = vector.broadcast %cst_135 : f32 to vector<16x16xf32>
    %490 = arith.mulf %488, %489 : vector<16x16xf32>
    %491 = arith.addf %490, %4 : vector<16x16xf32>
    %cst_136 = arith.constant dense<0xFF800000> : vector<16xf32>
    %492 = vector.multi_reduction <maximumf>, %491, %cst_136 [1] : vector<16x16xf32> to vector<16xf32>
    %493 = vector.shape_cast %492 : vector<16xf32> to vector<16x1xf32>
    %494 = vector.broadcast %493 : vector<16x1xf32> to vector<16x16xf32>
    %495 = arith.subf %491, %494 : vector<16x16xf32>
    %496 = math.exp %495 : vector<16x16xf32>
    %cst_137 = arith.constant dense<0.000000e+00> : vector<16xf32>
    %497 = vector.multi_reduction <add>, %496, %cst_137 [1] : vector<16x16xf32> to vector<16xf32>
    %498 = vector.shape_cast %497 : vector<16xf32> to vector<16x1xf32>
    %499 = tpu.reciprocal %498 {approx = true} : vector<16x1xf32> -> vector<16x1xf32>
    %500 = vector.broadcast %499 : vector<16x1xf32> to vector<16x16xf32>
    %501 = arith.mulf %496, %500 : vector<16x16xf32>
    %502 = arith.truncf %501 : vector<16x16xf32> to vector<16x16xbf16>
    %503 = vector.extract_strided_slice %447 {offsets = [0, 16], sizes = [16, 8], strides = [1, 1]} : vector<16x32xbf16> to vector<16x8xbf16>
    %cst_138 = arith.constant dense<0.000000e+00> : vector<16x8xf32>
    %504 = tpu.matmul %502, %503, %cst_138 {dimension_numbers = #tpu.dot_dimension_numbers<[1], [0], [0], [1], [0, 0, 1, 1], [], []>} : vector<16x16xbf16>, vector<16x8xbf16>, vector<16x8xf32> -> vector<16x8xf32>
    %505 = vector.extract_strided_slice %445 {offsets = [0, 24], sizes = [16, 8], strides = [1, 1]} : vector<16x32xbf16> to vector<16x8xbf16>
    %506 = vector.extract_strided_slice %446 {offsets = [0, 24], sizes = [16, 8], strides = [1, 1]} : vector<16x32xbf16> to vector<16x8xbf16>
    %cst_139 = arith.constant dense<0.000000e+00> : vector<16x16xf32>
    %507 = tpu.matmul %505, %506, %cst_139 {dimension_numbers = #tpu.dot_dimension_numbers<[1], [1], [0], [0], [0, 0, 1, 0], [], []>} : vector<16x8xbf16>, vector<16x8xbf16>, vector<16x16xf32> -> vector<16x16xf32>
    %cst_140 = arith.constant 0.353553385 : f32
    %508 = vector.broadcast %cst_140 : f32 to vector<16x16xf32>
    %509 = arith.mulf %507, %508 : vector<16x16xf32>
    %510 = arith.addf %509, %4 : vector<16x16xf32>
    %cst_141 = arith.constant dense<0xFF800000> : vector<16xf32>
    %511 = vector.multi_reduction <maximumf>, %510, %cst_141 [1] : vector<16x16xf32> to vector<16xf32>
    %512 = vector.shape_cast %511 : vector<16xf32> to vector<16x1xf32>
    %513 = vector.broadcast %512 : vector<16x1xf32> to vector<16x16xf32>
    %514 = arith.subf %510, %513 : vector<16x16xf32>
    %515 = math.exp %514 : vector<16x16xf32>
    %cst_142 = arith.constant dense<0.000000e+00> : vector<16xf32>
    %516 = vector.multi_reduction <add>, %515, %cst_142 [1] : vector<16x16xf32> to vector<16xf32>
    %517 = vector.shape_cast %516 : vector<16xf32> to vector<16x1xf32>
    %518 = tpu.reciprocal %517 {approx = true} : vector<16x1xf32> -> vector<16x1xf32>
    %519 = vector.broadcast %518 : vector<16x1xf32> to vector<16x16xf32>
    %520 = arith.mulf %515, %519 : vector<16x16xf32>
    %521 = arith.truncf %520 : vector<16x16xf32> to vector<16x16xbf16>
    %522 = vector.extract_strided_slice %447 {offsets = [0, 24], sizes = [16, 8], strides = [1, 1]} : vector<16x32xbf16> to vector<16x8xbf16>
    %cst_143 = arith.constant dense<0.000000e+00> : vector<16x8xf32>
    %523 = tpu.matmul %521, %522, %cst_143 {dimension_numbers = #tpu.dot_dimension_numbers<[1], [0], [0], [1], [0, 0, 1, 1], [], []>} : vector<16x16xbf16>, vector<16x8xbf16>, vector<16x8xf32> -> vector<16x8xf32>
    %524 = tpu.concatenate %466, %485, %504, %523 in 1 : vector<16x8xf32>, vector<16x8xf32>, vector<16x8xf32>, vector<16x8xf32> -> vector<16x32xf32>
    %525 = arith.truncf %524 : vector<16x32xf32> to vector<16x32xbf16>
    %526 = vector.extract_strided_slice %428 {offsets = [0, 96], sizes = [32, 32], strides = [1, 1]} : vector<32x128xbf16> to vector<32x32xbf16>
    %cst_144 = arith.constant dense<0.000000e+00> : vector<16x32xf32>
    %527 = tpu.matmul %525, %526, %cst_144 {dimension_numbers = #tpu.dot_dimension_numbers<[1], [0], [0], [1], [0, 0, 1, 1], [], []>} : vector<16x32xbf16>, vector<32x32xbf16>, vector<16x32xf32> -> vector<16x32xf32>
    %528 = vector.broadcast %430 : vector<1x32xf32> to vector<16x32xf32>
    %529 = arith.addf %527, %528 : vector<16x32xf32>
    %530 = arith.addf %529, %426 : vector<16x32xf32>
    %c18 = arith.constant 18 : index
    %c0_145 = arith.constant 0 : index
    %531 = vector.load %arg6[%c18, %c0_145] : memref<32x128xf32, #tpu.memory_space<vmem>>, vector<1x32xf32>
    %c19 = arith.constant 19 : index
    %c0_146 = arith.constant 0 : index
    %532 = vector.load %arg6[%c19, %c0_146] : memref<32x128xf32, #tpu.memory_space<vmem>>, vector<1x32xf32>
    %cst_147 = arith.constant dense<0.000000e+00> : vector<16xf32>
    %533 = vector.multi_reduction <add>, %530, %cst_147 [1] : vector<16x32xf32> to vector<16xf32>
    %534 = vector.shape_cast %533 : vector<16xf32> to vector<16x1xf32>
    %cst_148 = arith.constant 3.200000e+01 : f32
    %535 = vector.broadcast %cst_148 : f32 to vector<16x1xf32>
    %536 = arith.divf %534, %535 : vector<16x1xf32>
    %537 = arith.mulf %530, %530 : vector<16x32xf32>
    %cst_149 = arith.constant dense<0.000000e+00> : vector<16xf32>
    %538 = vector.multi_reduction <add>, %537, %cst_149 [1] : vector<16x32xf32> to vector<16xf32>
    %539 = vector.shape_cast %538 : vector<16xf32> to vector<16x1xf32>
    %cst_150 = arith.constant 3.200000e+01 : f32
    %540 = vector.broadcast %cst_150 : f32 to vector<16x1xf32>
    %541 = arith.divf %539, %540 : vector<16x1xf32>
    %542 = arith.mulf %536, %536 : vector<16x1xf32>
    %543 = arith.subf %541, %542 : vector<16x1xf32>
    %544 = vector.broadcast %536 : vector<16x1xf32> to vector<16x32xf32>
    %545 = arith.subf %530, %544 : vector<16x32xf32>
    %cst_151 = arith.constant 9.99999974E-6 : f32
    %546 = vector.broadcast %cst_151 : f32 to vector<16x1xf32>
    %547 = arith.addf %543, %546 : vector<16x1xf32>
    %548 = math.rsqrt %547 : vector<16x1xf32>
    %549 = vector.broadcast %548 : vector<16x1xf32> to vector<16x32xf32>
    %550 = arith.mulf %545, %549 : vector<16x32xf32>
    %551 = vector.broadcast %531 : vector<1x32xf32> to vector<16x32xf32>
    %552 = arith.mulf %550, %551 : vector<16x32xf32>
    %553 = vector.broadcast %532 : vector<1x32xf32> to vector<16x32xf32>
    %554 = arith.addf %552, %553 : vector<16x32xf32>
    %c160 = arith.constant 160 : index
    %c0_152 = arith.constant 0 : index
    %555 = vector.load %arg5[%c160, %c0_152] : memref<480x128xbf16, #tpu.memory_space<vmem>>, vector<32x128xbf16>
    %c320 = arith.constant 320 : index
    %c0_153 = arith.constant 0 : index
    %556 = vector.load %arg5[%c320, %c0_153] : memref<480x128xbf16, #tpu.memory_space<vmem>>, vector<128x128xbf16>
    %557 = arith.truncf %554 : vector<16x32xf32> to vector<16x32xbf16>
    %c22 = arith.constant 22 : index
    %c0_154 = arith.constant 0 : index
    %558 = vector.load %arg6[%c22, %c0_154] : memref<32x128xf32, #tpu.memory_space<vmem>>, vector<1x128xf32>
    %c23 = arith.constant 23 : index
    %c0_155 = arith.constant 0 : index
    %559 = vector.load %arg6[%c23, %c0_155] : memref<32x128xf32, #tpu.memory_space<vmem>>, vector<1x32xf32>
    %cst_156 = arith.constant dense<0.000000e+00> : vector<16x128xf32>
    %560 = tpu.matmul %557, %555, %cst_156 {dimension_numbers = #tpu.dot_dimension_numbers<[1], [0], [0], [1], [0, 0, 1, 1], [], []>} : vector<16x32xbf16>, vector<32x128xbf16>, vector<16x128xf32> -> vector<16x128xf32>
    %561 = vector.broadcast %558 : vector<1x128xf32> to vector<16x128xf32>
    %562 = arith.addf %560, %561 : vector<16x128xf32>
    %cst_157 = arith.constant 0.000000e+00 : f32
    %563 = vector.broadcast %cst_157 : f32 to vector<16x128xf32>
    %564 = arith.maximumf %562, %563 : vector<16x128xf32>
    %565 = arith.truncf %564 : vector<16x128xf32> to vector<16x128xbf16>
    %cst_158 = arith.constant dense<0.000000e+00> : vector<16x128xf32>
    %566 = tpu.matmul %565, %556, %cst_158 {dimension_numbers = #tpu.dot_dimension_numbers<[1], [0], [0], [1], [0, 0, 1, 1], [], []>} : vector<16x128xbf16>, vector<128x128xbf16>, vector<16x128xf32> -> vector<16x128xf32>
    %567 = vector.extract_strided_slice %566 {offsets = [0, 0], sizes = [16, 32], strides = [1, 1]} : vector<16x128xf32> to vector<16x32xf32>
    %568 = vector.broadcast %559 : vector<1x32xf32> to vector<16x32xf32>
    %569 = arith.addf %567, %568 : vector<16x32xf32>
    %570 = arith.addf %569, %554 : vector<16x32xf32>
    %c20 = arith.constant 20 : index
    %c0_159 = arith.constant 0 : index
    %571 = vector.load %arg6[%c20, %c0_159] : memref<32x128xf32, #tpu.memory_space<vmem>>, vector<1x32xf32>
    %c21 = arith.constant 21 : index
    %c0_160 = arith.constant 0 : index
    %572 = vector.load %arg6[%c21, %c0_160] : memref<32x128xf32, #tpu.memory_space<vmem>>, vector<1x32xf32>
    %cst_161 = arith.constant dense<0.000000e+00> : vector<16xf32>
    %573 = vector.multi_reduction <add>, %570, %cst_161 [1] : vector<16x32xf32> to vector<16xf32>
    %574 = vector.shape_cast %573 : vector<16xf32> to vector<16x1xf32>
    %cst_162 = arith.constant 3.200000e+01 : f32
    %575 = vector.broadcast %cst_162 : f32 to vector<16x1xf32>
    %576 = arith.divf %574, %575 : vector<16x1xf32>
    %577 = arith.mulf %570, %570 : vector<16x32xf32>
    %cst_163 = arith.constant dense<0.000000e+00> : vector<16xf32>
    %578 = vector.multi_reduction <add>, %577, %cst_163 [1] : vector<16x32xf32> to vector<16xf32>
    %579 = vector.shape_cast %578 : vector<16xf32> to vector<16x1xf32>
    %cst_164 = arith.constant 3.200000e+01 : f32
    %580 = vector.broadcast %cst_164 : f32 to vector<16x1xf32>
    %581 = arith.divf %579, %580 : vector<16x1xf32>
    %582 = arith.mulf %576, %576 : vector<16x1xf32>
    %583 = arith.subf %581, %582 : vector<16x1xf32>
    %584 = vector.broadcast %576 : vector<16x1xf32> to vector<16x32xf32>
    %585 = arith.subf %570, %584 : vector<16x32xf32>
    %cst_165 = arith.constant 9.99999974E-6 : f32
    %586 = vector.broadcast %cst_165 : f32 to vector<16x1xf32>
    %587 = arith.addf %583, %586 : vector<16x1xf32>
    %588 = math.rsqrt %587 : vector<16x1xf32>
    %589 = vector.broadcast %588 : vector<16x1xf32> to vector<16x32xf32>
    %590 = arith.mulf %585, %589 : vector<16x32xf32>
    %591 = vector.broadcast %571 : vector<1x32xf32> to vector<16x32xf32>
    %592 = arith.mulf %590, %591 : vector<16x32xf32>
    %593 = vector.broadcast %572 : vector<1x32xf32> to vector<16x32xf32>
    %594 = arith.addf %592, %593 : vector<16x32xf32>
    %595 = arith.truncf %594 : vector<16x32xf32> to vector<16x32xbf16>
    %c448 = arith.constant 448 : index
    %c0_166 = arith.constant 0 : index
    %596 = vector.load %arg5[%c448, %c0_166] : memref<480x128xbf16, #tpu.memory_space<vmem>>, vector<32x128xbf16>
    %cst_167 = arith.constant dense<0.000000e+00> : vector<16x128xf32>
    %597 = tpu.matmul %595, %596, %cst_167 {dimension_numbers = #tpu.dot_dimension_numbers<[1], [0], [0], [1], [0, 0, 1, 1], [], []>} : vector<16x32xbf16>, vector<32x128xbf16>, vector<16x128xf32> -> vector<16x128xf32>
    %c24 = arith.constant 24 : index
    %c0_168 = arith.constant 0 : index
    %598 = vector.load %arg6[%c24, %c0_168] : memref<32x128xf32, #tpu.memory_space<vmem>>, vector<1x128xf32>
    %599 = vector.broadcast %598 : vector<1x128xf32> to vector<16x128xf32>
    %600 = arith.addf %597, %599 : vector<16x128xf32>
    %c0_169 = arith.constant 0 : index
    %c0_170 = arith.constant 0 : index
    %601 = vector.load %arg7[%c0_169, %c0_170] : memref<16x128xf32, #tpu.memory_space<vmem>>, vector<16x128xf32>
    tpu.vector_store %arg7[%c0_169, %c0_170], %600 {strides = array<i32>} : memref<16x128xf32, #tpu.memory_space<vmem>>, vector<16x128xf32>,
    return
  }
  func.func @transform_0(%arg0: i32) -> (i32, i32) {
    %c0_i32 = arith.constant 0 : i32
    %c0_i32_0 = arith.constant 0 : i32
    %c0_i32_1 = arith.constant 0 : i32
    return %c0_i32, %c0_i32_0 : i32, i32
  }
  func.func @transform_1(%arg0: i32) -> (i32, i32) {
    %c0_i32 = arith.constant 0 : i32
    %c0_i32_0 = arith.constant 0 : i32
    %c0_i32_1 = arith.constant 0 : i32
    return %c0_i32, %c0_i32_0 : i32, i32
  }
  func.func @transform_2(%arg0: i32) -> (i32, i32) {
    %c0_i32 = arith.constant 0 : i32
    %c0_i32_0 = arith.constant 0 : i32
    %c0_i32_1 = arith.constant 0 : i32
    return %c0_i32, %c0_i32_0 : i32, i32
  }
  func.func @transform_3(%arg0: i32) -> (i32, i32) {
    %c0_i32 = arith.constant 0 : i32
    %c0_i32_0 = arith.constant 0 : i32
    %c0_i32_1 = arith.constant 0 : i32
    return %c0_i32, %c0_i32_0 : i32, i32
  }
  func.func @transform_4(%arg0: i32) -> (i32, i32) {
    %c0_i32 = arith.constant 0 : i32
    %c0_i32_0 = arith.constant 0 : i32
    %c0_i32_1 = arith.constant 0 : i32
    return %c0_i32, %c0_i32_0 : i32, i32
  }
  func.func @transform_5(%arg0: i32) -> (i32, i32) {
    %c0_i32 = arith.constant 0 : i32
    %c0_i32_0 = arith.constant 0 : i32
    %c0_i32_1 = arith.constant 0 : i32
    return %c0_i32, %c0_i32_0 : i32, i32
  }
  func.func @transform_6(%arg0: i32) -> (i32, i32) {
    %c0_i32 = arith.constant 0 : i32
    %c0_i32_0 = arith.constant 0 : i32
    %c0_i32_1 = arith.constant 0 : i32
    return %c0_i32, %c0_i32_0 : i32, i32
  }
}

</mosaic_0001>

<llo_original>
// kernel: tpu_custom_call.1
$region0: #{tpu_custom_call.1}
  #allocation0 [shape = 'u32[]', space=smem, size = 0x4, offset = 0x4, fixed_abs, tag = 'smem constant byte address 0x4 - core index']
  #allocation1 [shape = 'u32[72,128]{1,0:T(1,128)}', space=vmem, size = 0x9000, scoped, tag = 'internal scratch']
  %s0 = inlined_call_operand.hbm [shape: f32[16,32], index: 0, kind: input, shape index: {}]
  %s1 = inlined_call_operand.hbm [shape: f32[16,32], index: 1, kind: input, shape index: {}]
  %s2 = inlined_call_operand.hbm [shape: f32[16,16], index: 2, kind: input, shape index: {}]
  %s3 = inlined_call_operand.hbm [shape: f32[16,16], index: 3, kind: input, shape index: {}]
  %s4 = inlined_call_operand.hbm [shape: bf16[480,128], index: 4, kind: input, shape index: {}]
  %s5 = inlined_call_operand.hbm [shape: f32[32,128], index: 5, kind: input, shape index: {}]
  %s6 = inlined_call_operand.hbm [shape: f32[16,128], index: 6, kind: output, shape index: {}]
  %s7 = sld [smem:[#allocation0]]
  $region58: #{tpu_custom_call.1} parent=0
    _
  %s9 = ssub.s32 1, %s7
  %s10 = scalar_select 0, %s9, %s7
  $region1: #{tpu_custom_call.1} parent=0
    #allocation2 [shape = 'u8[8192]{0}', space=vmem, size = 0x2000, scoped, tag = 'input window, operand 0, single buffered']
    #allocation3 [shape = 's32[1]{0}', space=sflag, size = 0x4, scoped, tag = 'scoped memory for tpu_custom_call.1']
    #allocation4 [shape = 's32[1]{0}', space=sflag, size = 0x4, scoped, tag = 'scoped memory for tpu_custom_call.1']
    #allocation5 [shape = 'u8[8192]{0}', space=vmem, size = 0x2000, scoped, tag = 'input window, operand 1, single buffered']
    #allocation6 [shape = 's32[1]{0}', space=sflag, size = 0x4, scoped, tag = 'scoped memory for tpu_custom_call.1']
    #allocation7 [shape = 'u8[8192]{0}', space=vmem, size = 0x2000, scoped, tag = 'input window, operand 2, single buffered']
    #allocation8 [shape = 'u8[8192]{0}', space=vmem, size = 0x2000, scoped, tag = 'input window, operand 3, single buffered']
    #allocation9 [shape = 's32[1]{0}', space=sflag, size = 0x4, scoped, tag = 'scoped memory for tpu_custom_call.1']
    #allocation10 [shape = 'u8[122880]{0}', space=vmem, size = 0x1e000, scoped, tag = 'input window, operand 4, single buffered']
    #allocation11 [shape = 'u8[16384]{0}', space=vmem, size = 0x4000, scoped, tag = 'input window, operand 5, single buffered']
    #allocation12 [shape = 's32[1]{0}', space=sflag, size = 0x4, scoped, tag = 'scoped memory for tpu_custom_call.1']
    #allocation13 [shape = 'u8[8192]{0}', space=vmem, size = 0x2000, scoped, tag = 'output window, operand 0, single buffered']
    %11 = vsyncpa [#allocation3], 0
    %12 = vsyncpa [#allocation6], 0
    %13 = vsyncpa [#allocation9], 0
    %14 = vsyncpa [#allocation12], 0
    %15 = vsyncpa [#allocation4], 0
    // Predicated region
    $region2: #{tpu_custom_call.1} parent=1 // pred_check
      _
    $region3: #{tpu_custom_call.1} parent=1 // pred_check_branch
      %17 = sbr.rel (0) target = $region5
    $region4: #{tpu_custom_call.1} parent=1 // pred_region
      %19 = vsyncadd [#allocation3], 0
      %s20 = sshll.u32 %s0, 4
      %s21 = int_to_ptr.hbm [resolvable:$true] %s20
      %s22 = sshll.u32 [#allocation2], 4
      %s23 = int_to_ptr.vmem [resolvable:$true] %s22
      %28 = dma.hbm_to_vmem [thread:$0]  %s21, 256, %s23, [#allocation3], 128, 128, 8
    $region5: #{tpu_custom_call.1} parent=1 // pred_fallthru
      _
    // Predicated region
    $region6: #{tpu_custom_call.1} parent=1 // pred_check
      _
    $region7: #{tpu_custom_call.1} parent=1 // pred_check_branch
      %30 = sbr.rel (0) target = $region9
    $region8: #{tpu_custom_call.1} parent=1 // pred_region
      %32 = vsyncadd [#allocation6], 0
      %s33 = sshll.u32 %s1, 4
      %s34 = int_to_ptr.hbm [resolvable:$true] %s33
      %s35 = sshll.u32 [#allocation5], 4
      %s36 = int_to_ptr.vmem [resolvable:$true] %s35
      %41 = dma.hbm_to_vmem [thread:$0]  %s34, 256, %s36, [#allocation6], 128, 128, 8
    $region9: #{tpu_custom_call.1} parent=1 // pred_fallthru
      _
    // Predicated region
    $region10: #{tpu_custom_call.1} parent=1 // pred_check
      _
    $region11: #{tpu_custom_call.1} parent=1 // pred_check_branch
      %43 = sbr.rel (0) target = $region13
    $region12: #{tpu_custom_call.1} parent=1 // pred_region
      %45 = vsyncadd [#allocation6], 0
      %s46 = sshll.u32 %s2, 4
      %s47 = int_to_ptr.hbm [resolvable:$true] %s46
      %s48 = sshll.u32 [#allocation7], 4
      %s49 = int_to_ptr.vmem [resolvable:$true] %s48
      %54 = dma.hbm_to_vmem [thread:$0]  %s47, 256, %s49, [#allocation6], 128, 128, 8
    $region13: #{tpu_custom_call.1} parent=1 // pred_fallthru
      _
    // Predicated region
    $region14: #{tpu_custom_call.1} parent=1 // pred_check
      _
    $region15: #{tpu_custom_call.1} parent=1 // pred_check_branch
      %56 = sbr.rel (0) target = $region17
    $region16: #{tpu_custom_call.1} parent=1 // pred_region
      %58 = vsyncadd [#allocation9], 0
      %s59 = sshll.u32 %s3, 4
      %s60 = int_to_ptr.hbm [resolvable:$true] %s59
      %s61 = sshll.u32 [#allocation8], 4
      %s62 = int_to_ptr.vmem [resolvable:$true] %s61
      %67 = dma.hbm_to_vmem [thread:$0]  %s60, 256, %s62, [#allocation9], 128, 128, 8
    $region17: #{tpu_custom_call.1} parent=1 // pred_fallthru
      _
    // Predicated region
    $region18: #{tpu_custom_call.1} parent=1 // pred_check
      _
    $region19: #{tpu_custom_call.1} parent=1 // pred_check_branch
      %69 = sbr.rel (0) target = $region21
    $region20: #{tpu_custom_call.1} parent=1 // pred_region
      %71 = vsyncadd [#allocation9], 0
      %s72 = sshll.u32 %s4, 4
      %s73 = int_to_ptr.hbm [resolvable:$true] %s72
      %s74 = sshll.u32 [#allocation10], 4
      %s75 = int_to_ptr.vmem [resolvable:$true] %s74
      %80 = dma.hbm_to_vmem [thread:$0]  %s73, 3840, %s75, [#allocation9], 64, 64, 4
    $region21: #{tpu_custom_call.1} parent=1 // pred_fallthru
      _
    // Predicated region
    $region22: #{tpu_custom_call.1} parent=1 // pred_check
      _
    $region23: #{tpu_custom_call.1} parent=1 // pred_check_branch
      %82 = sbr.rel (0) target = $region25
    $region24: #{tpu_custom_call.1} parent=1 // pred_region
      %84 = vsyncadd [#allocation12], 0
      %s85 = sshll.u32 %s5, 4
      %s86 = int_to_ptr.hbm [resolvable:$true] %s85
      %s87 = sshll.u32 [#allocation11], 4
      %s88 = int_to_ptr.vmem [resolvable:$true] %s87
      %93 = dma.hbm_to_vmem [thread:$0]  %s86, 512, %s88, [#allocation12], 128, 128, 8
    $region25: #{tpu_custom_call.1} parent=1 // pred_fallthru
      _
    // Predicated region
    $region26: #{tpu_custom_call.1} parent=1 // pred_check
      _
    $region27: #{tpu_custom_call.1} parent=1 // pred_check_branch
      %95 = sbr.rel (0) target = $region29
    $region28: #{tpu_custom_call.1} parent=1 // pred_region
      %97 = dma.done [#allocation3], 256
    $region29: #{tpu_custom_call.1} parent=1 // pred_fallthru
      _
    // Predicated region
    $region30: #{tpu_custom_call.1} parent=1 // pred_check
      _
    $region31: #{tpu_custom_call.1} parent=1 // pred_check_branch
      %99 = sbr.rel (0) target = $region33
    $region32: #{tpu_custom_call.1} parent=1 // pred_region
      %101 = dma.done [#allocation6], 256
    $region33: #{tpu_custom_call.1} parent=1 // pred_fallthru
      _
    // Predicated region
    $region34: #{tpu_custom_call.1} parent=1 // pred_check
      _
    $region35: #{tpu_custom_call.1} parent=1 // pred_check_branch
      %103 = sbr.rel (0) target = $region37
    $region36: #{tpu_custom_call.1} parent=1 // pred_region
      %105 = dma.done [#allocation6], 256
    $region37: #{tpu_custom_call.1} parent=1 // pred_fallthru
      _
    // Predicated region
    $region38: #{tpu_custom_call.1} parent=1 // pred_check
      _
    $region39: #{tpu_custom_call.1} parent=1 // pred_check_branch
      %107 = sbr.rel (0) target = $region41
    $region40: #{tpu_custom_call.1} parent=1 // pred_region
      %109 = dma.done [#allocation9], 256
    $region41: #{tpu_custom_call.1} parent=1 // pred_fallthru
      _
    // Predicated region
    $region42: #{tpu_custom_call.1} parent=1 // pred_check
      _
    $region43: #{tpu_custom_call.1} parent=1 // pred_check_branch
      %111 = sbr.rel (0) target = $region45
    $region44: #{tpu_custom_call.1} parent=1 // pred_region
      %113 = dma.done [#allocation9], 3840
    $region45: #{tpu_custom_call.1} parent=1 // pred_fallthru
      _
    // Predicated region
    $region46: #{tpu_custom_call.1} parent=1 // pred_check
      _
    $region47: #{tpu_custom_call.1} parent=1 // pred_check_branch
      %115 = sbr.rel (0) target = $region49
    $region48: #{tpu_custom_call.1} parent=1 // pred_region
      %117 = dma.done [#allocation12], 512
    $region49: #{tpu_custom_call.1} parent=1 // pred_fallthru
      _
    %v119 = vld [vmem:[#allocation2] sm:$0xff]
    %v120 = vld [vmem:[#allocation2 + $0x8] sm:$0xff]
    %v121 = vld [vmem:[#allocation5] sm:$0xff]
    %v122 = vld [vmem:[#allocation5 + $0x8] sm:$0xff]
    %v123 = vpack.c.bf16 %v122, %v121
    %v124 = vld [vmem:[#allocation7] sm:$0xff]
    %v125 = vld [vmem:[#allocation7 + $0x8] sm:$0xff]
    %v126 = vld [vmem:[#allocation8] sm:$0xff]
    %v127 = vld [vmem:[#allocation8 + $0x8] sm:$0xff]
    %v128 = vpack.c.bf16 %v120, %v119
    %v129 = vld [vmem:[#allocation10] sm:$0xf]
    %v130 = vld [vmem:[#allocation10 + $0x4] sm:$0xf]
    %v131 = vld [vmem:[#allocation10 + $0x8] sm:$0xf]
    %v132 = vld [vmem:[#allocation10 + $0xc] sm:$0xf]
    %v133 = vld [vmem:[#allocation11] sm:$0x1]
    %v134 = vld [vmem:[#allocation11 + $0x1] sm:$0x1]
    %v139 = vunpack.c.l.b16 %v129
    %v140 = vunpack.c.l.b16 %v130
    %v141 = vunpack.c.l.b16 %v131
    %v142 = vunpack.c.l.b16 %v132
    %v143 = vpack.c.b16 %v140, %v139
    %v144 = vpack.c.b16 %v142, %v141
    %vm147 = vcmask 261120
    %v149 = vsel %vm147, %v128, 0
    %151 = vmatpush.bf16.msra.mxu0 0
    %152 = vmatpush.bf16.msra.mxu0 0
    %153 = vmatpush.bf16.msra.mxu0 0
    %154 = vmatpush.bf16.msra.mxu0 0
    %155 = vmatpush.bf16.msra.mxu0 0
    %156 = vmatpush.bf16.msra.mxu0 0
    %157 = vmatpush.bf16.msra.mxu0 %v144
    %158 = vmatpush.bf16.msra.mxu0 %v143
    %159 = vmatmul.bf16.gmra.mxu0 %v149
    %v160 = vpop.f32.mrf.mxu0
    %v161 = vadd.f32 0.0, %v160
    %v162 = vpop.f32.mrf.mxu0
    %v163 = vadd.f32 0.0, %v162
    %164 = vdwg.mxu0
    %v165 = vperm.slane %v133, 0
    %v166 = vadd.f32 %v161, %v165
    %v167 = vadd.f32 %v163, %v165
    %v168 = vpack.c.bf16 %v166, %v166
    %v169 = vpack.c.bf16 %v167, %v167
    %v172 = vunpack.c.l.b16 %v168
    %v173 = vunpack.c.l.b16 %v169
    %v174 = vpack.c.b16 %v173, %v172
    %175 = vrot.lane.b32.xlu0 %v174, 96
    %v176 = vpop.permute.xlu0 %175
    %vm177 = vcmask 64512
    %v179 = vsel %vm177, %v174, 0
    %v182 = vsel %vm177, %v176, 0
    %184 = vmatpush.bf16.xpose.msra.mxu0 0
    %185 = vmatpush.bf16.xpose.msra.mxu0 0
    %186 = vmatpush.bf16.xpose.msra.mxu0 0
    %187 = vmatpush.bf16.xpose.msra.mxu0 0
    %188 = vmatpush.bf16.xpose.msra.mxu0 0
    %189 = vmatpush.bf16.xpose.msra.mxu0 0
    %190 = vmatpush.bf16.xpose.msra.mxu0 0
    %191 = vmatpush.bf16.xpose.msra.mxu0 %v182
    %192 = vmatmul.bf16.gmra.mxu0 %v179
    %v193 = vpop.f32.mrf.mxu0
    %v194 = vadd.f32 0.0, %v193
    %v195 = vpop.f32.mrf.mxu0
    %v196 = vadd.f32 0.0, %v195
    %197 = vdwg.mxu0
    %v198 = vmul.f32 %v194, 0.35355338
    %v199 = vmul.f32 %v196, 0.35355338
    %v200 = vadd.f32 %v198, %v124
    %v201 = vadd.f32 %v199, %v125
    %vm202 = vcmask 130048
    %v203 = vsel %vm202, %v200, -inf
    %204 = vmax.xlane.f32.xlu0 %v203
    %v205 = vpop.xlane.xlu0 %204
    %v206 = vsel %vm202, %v201, -inf
    %207 = vmax.xlane.f32.xlu0 %v206
    %v208 = vpop.xlane.xlu0 %207
    %v209 = vsub.f32 %v200, %v205
    %v210 = vsub.f32 %v201, %v208
    %v211 = vmul.f32 %v209, 1.442695
    %v212 = vpow.pop %v211
    %v213 = vmul.f32 %v210, 1.442695
    %v214 = vpow.pop %v213
    %v215 = vsel %vm202, %v212, 0.0
    %216 = vadd.xlane.f32.xlu0 %v215
    %v217 = vpop.xlane.xlu0 %216
    %v218 = vsel %vm202, %v214, 0.0
    %219 = vadd.xlane.f32.xlu0 %v218
    %v220 = vpop.xlane.xlu0 %219
    %v221 = vrcp.pop %v217
    %v222 = vrcp.pop %v220
    %v223 = vmul.f32 %v212, %v221
    %v224 = vmul.f32 %v214, %v222
    %v225 = vpack.c.bf16 %v224, %v223
    %226 = vrot.lane.b32.xlu0 %v174, 64
    %v227 = vpop.permute.xlu0 %226
    %v230 = vsel %vm202, %v225, 0
    %232 = vmatpush.bf16.msra.mxu0 0
    %233 = vmatpush.bf16.msra.mxu0 0
    %234 = vmatpush.bf16.msra.mxu0 0
    %235 = vmatpush.bf16.msra.mxu0 0
    %236 = vmatpush.bf16.msra.mxu0 0
    %237 = vmatpush.bf16.msra.mxu0 0
    %238 = vmatpush.bf16.msra.mxu0 0
    %239 = vmatpush.bf16.msra.mxu0 %v227
    %240 = vmatmul.bf16.gmra.mxu0 %v230
    %v241 = vpop.f32.mrf.mxu0
    %v242 = vadd.f32 0.0, %v241
    %v243 = vpop.f32.mrf.mxu0
    %v244 = vadd.f32 0.0, %v243
    %245 = vdwg.mxu0
    %246 = vrot.lane.b32.xlu0 %v174, 120
    %v247 = vpop.permute.xlu0 %246
    %248 = vrot.lane.b32.xlu0 %v174, 88
    %v249 = vpop.permute.xlu0 %248
    %v251 = vsel %vm177, %v247, 0
    %v254 = vsel %vm177, %v249, 0
    %256 = vmatpush.bf16.xpose.msra.mxu0 0
    %257 = vmatpush.bf16.xpose.msra.mxu0 0
    %258 = vmatpush.bf16.xpose.msra.mxu0 0
    %259 = vmatpush.bf16.xpose.msra.mxu0 0
    %260 = vmatpush.bf16.xpose.msra.mxu0 0
    %261 = vmatpush.bf16.xpose.msra.mxu0 0
    %262 = vmatpush.bf16.xpose.msra.mxu0 0
    %263 = vmatpush.bf16.xpose.msra.mxu0 %v254
    %264 = vmatmul.bf16.gmra.mxu0 %v251
    %v265 = vpop.f32.mrf.mxu0
    %v266 = vadd.f32 0.0, %v265
    %v267 = vpop.f32.mrf.mxu0
    %v268 = vadd.f32 0.0, %v267
    %269 = vdwg.mxu0
    %v270 = vmul.f32 %v266, 0.35355338
    %v271 = vmul.f32 %v268, 0.35355338
    %v272 = vadd.f32 %v270, %v124
    %v273 = vadd.f32 %v271, %v125
    %v274 = vsel %vm202, %v272, -inf
    %275 = vmax.xlane.f32.xlu0 %v274
    %v276 = vpop.xlane.xlu0 %275
    %v277 = vsel %vm202, %v273, -inf
    %278 = vmax.xlane.f32.xlu0 %v277
    %v279 = vpop.xlane.xlu0 %278
    %v280 = vsub.f32 %v272, %v276
    %v281 = vsub.f32 %v273, %v279
    %v282 = vmul.f32 %v280, 1.442695
    %v283 = vpow.pop %v282
    %v284 = vmul.f32 %v281, 1.442695
    %v285 = vpow.pop %v284
    %v286 = vsel %vm202, %v283, 0.0
    %287 = vadd.xlane.f32.xlu0 %v286
    %v288 = vpop.xlane.xlu0 %287
    %v289 = vsel %vm202, %v285, 0.0
    %290 = vadd.xlane.f32.xlu0 %v289
    %v291 = vpop.xlane.xlu0 %290
    %v292 = vrcp.pop %v288
    %v293 = vrcp.pop %v291
    %v294 = vmul.f32 %v283, %v292
    %v295 = vmul.f32 %v285, %v293
    %v296 = vpack.c.bf16 %v295, %v294
    %297 = vrot.lane.b32.xlu0 %v174, 56
    %v298 = vpop.permute.xlu0 %297
    %v301 = vsel %vm202, %v296, 0
    %303 = vmatpush.bf16.msra.mxu0 0
    %304 = vmatpush.bf16.msra.mxu0 0
    %305 = vmatpush.bf16.msra.mxu0 0
    %306 = vmatpush.bf16.msra.mxu0 0
    %307 = vmatpush.bf16.msra.mxu0 0
    %308 = vmatpush.bf16.msra.mxu0 0
    %309 = vmatpush.bf16.msra.mxu0 0
    %310 = vmatpush.bf16.msra.mxu0 %v298
    %311 = vmatmul.bf16.gmra.mxu0 %v301
    %v312 = vpop.f32.mrf.mxu0
    %v313 = vadd.f32 0.0, %v312
    %v314 = vpop.f32.mrf.mxu0
    %v315 = vadd.f32 0.0, %v314
    %316 = vdwg.mxu0
    %317 = vrot.lane.b32.xlu0 %v174, 112
    %v318 = vpop.permute.xlu0 %317
    %319 = vrot.lane.b32.xlu0 %v174, 80
    %v320 = vpop.permute.xlu0 %319
    %v322 = vsel %vm177, %v318, 0
    %v325 = vsel %vm177, %v320, 0
    %327 = vmatpush.bf16.xpose.msra.mxu0 0
    %328 = vmatpush.bf16.xpose.msra.mxu0 0
    %329 = vmatpush.bf16.xpose.msra.mxu0 0
    %330 = vmatpush.bf16.xpose.msra.mxu0 0
    %331 = vmatpush.bf16.xpose.msra.mxu0 0
    %332 = vmatpush.bf16.xpose.msra.mxu0 0
    %333 = vmatpush.bf16.xpose.msra.mxu0 0
    %334 = vmatpush.bf16.xpose.msra.mxu0 %v325
    %335 = vmatmul.bf16.gmra.mxu0 %v322
    %v336 = vpop.f32.mrf.mxu0
    %v337 = vadd.f32 0.0, %v336
    %v338 = vpop.f32.mrf.mxu0
    %v339 = vadd.f32 0.0, %v338
    %340 = vdwg.mxu0
    %v341 = vmul.f32 %v337, 0.35355338
    %v342 = vmul.f32 %v339, 0.35355338
    %v343 = vadd.f32 %v341, %v124
    %v344 = vadd.f32 %v342, %v125
    %v345 = vsel %vm202, %v343, -inf
    %346 = vmax.xlane.f32.xlu0 %v345
    %v347 = vpop.xlane.xlu0 %346
    %v348 = vsel %vm202, %v344, -inf
    %349 = vmax.xlane.f32.xlu0 %v348
    %v350 = vpop.xlane.xlu0 %349
    %v351 = vsub.f32 %v343, %v347
    %v352 = vsub.f32 %v344, %v350
    %v353 = vmul.f32 %v351, 1.442695
    %v354 = vpow.pop %v353
    %v355 = vmul.f32 %v352, 1.442695
    %v356 = vpow.pop %v355
    %v357 = vsel %vm202, %v354, 0.0
    %358 = vadd.xlane.f32.xlu0 %v357
    %v359 = vpop.xlane.xlu0 %358
    %v360 = vsel %vm202, %v356, 0.0
    %361 = vadd.xlane.f32.xlu0 %v360
    %v362 = vpop.xlane.xlu0 %361
    %v363 = vrcp.pop %v359
    %v364 = vrcp.pop %v362
    %v365 = vmul.f32 %v354, %v363
    %v366 = vmul.f32 %v356, %v364
    %v367 = vpack.c.bf16 %v366, %v365
    %368 = vrot.lane.b32.xlu0 %v174, 48
    %v369 = vpop.permute.xlu0 %368
    %v372 = vsel %vm202, %v367, 0
    %374 = vmatpush.bf16.msra.mxu0 0
    %375 = vmatpush.bf16.msra.mxu0 0
    %376 = vmatpush.bf16.msra.mxu0 0
    %377 = vmatpush.bf16.msra.mxu0 0
    %378 = vmatpush.bf16.msra.mxu0 0
    %379 = vmatpush.bf16.msra.mxu0 0
    %380 = vmatpush.bf16.msra.mxu0 0
    %381 = vmatpush.bf16.msra.mxu0 %v369
    %382 = vmatmul.bf16.gmra.mxu0 %v372
    %v383 = vpop.f32.mrf.mxu0
    %v384 = vadd.f32 0.0, %v383
    %v385 = vpop.f32.mrf.mxu0
    %v386 = vadd.f32 0.0, %v385
    %387 = vdwg.mxu0
    %388 = vrot.lane.b32.xlu0 %v174, 104
    %v389 = vpop.permute.xlu0 %388
    %390 = vrot.lane.b32.xlu0 %v174, 72
    %v391 = vpop.permute.xlu0 %390
    %v393 = vsel %vm177, %v389, 0
    %v396 = vsel %vm177, %v391, 0
    %398 = vmatpush.bf16.xpose.msra.mxu0 0
    %399 = vmatpush.bf16.xpose.msra.mxu0 0
    %400 = vmatpush.bf16.xpose.msra.mxu0 0
    %401 = vmatpush.bf16.xpose.msra.mxu0 0
    %402 = vmatpush.bf16.xpose.msra.mxu0 0
    %403 = vmatpush.bf16.xpose.msra.mxu0 0
    %404 = vmatpush.bf16.xpose.msra.mxu0 0
    %405 = vmatpush.bf16.xpose.msra.mxu0 %v396
    %406 = vmatmul.bf16.gmra.mxu0 %v393
    %v407 = vpop.f32.mrf.mxu0
    %v408 = vadd.f32 0.0, %v407
    %v409 = vpop.f32.mrf.mxu0
    %v410 = vadd.f32 0.0, %v409
    %411 = vdwg.mxu0
    %v412 = vmul.f32 %v408, 0.35355338
    %v413 = vmul.f32 %v410, 0.35355338
    %v414 = vadd.f32 %v412, %v124
    %v415 = vadd.f32 %v413, %v125
    %v416 = vsel %vm202, %v414, -inf
    %417 = vmax.xlane.f32.xlu0 %v416
    %v418 = vpop.xlane.xlu0 %417
    %v419 = vsel %vm202, %v415, -inf
    %420 = vmax.xlane.f32.xlu0 %v419
    %v421 = vpop.xlane.xlu0 %420
    %v422 = vsub.f32 %v414, %v418
    %v423 = vsub.f32 %v415, %v421
    %v424 = vmul.f32 %v422, 1.442695
    %v425 = vpow.pop %v424
    %v426 = vmul.f32 %v423, 1.442695
    %v427 = vpow.pop %v426
    %v428 = vsel %vm202, %v425, 0.0
    %429 = vadd.xlane.f32.xlu0 %v428
    %v430 = vpop.xlane.xlu0 %429
    %v431 = vsel %vm202, %v427, 0.0
    %432 = vadd.xlane.f32.xlu0 %v431
    %v433 = vpop.xlane.xlu0 %432
    %v434 = vrcp.pop %v430
    %v435 = vrcp.pop %v433
    %v436 = vmul.f32 %v425, %v434
    %v437 = vmul.f32 %v427, %v435
    %v438 = vpack.c.bf16 %v437, %v436
    %439 = vrot.lane.b32.xlu0 %v174, 40
    %v440 = vpop.permute.xlu0 %439
    %v443 = vsel %vm202, %v438, 0
    %445 = vmatpush.bf16.msra.mxu0 0
    %446 = vmatpush.bf16.msra.mxu0 0
    %447 = vmatpush.bf16.msra.mxu0 0
    %448 = vmatpush.bf16.msra.mxu0 0
    %449 = vmatpush.bf16.msra.mxu0 0
    %450 = vmatpush.bf16.msra.mxu0 0
    %451 = vmatpush.bf16.msra.mxu0 0
    %452 = vmatpush.bf16.msra.mxu0 %v440
    %453 = vmatmul.bf16.gmra.mxu0 %v443
    %v454 = vpop.f32.mrf.mxu0
    %v455 = vadd.f32 0.0, %v454
    %v456 = vpop.f32.mrf.mxu0
    %v457 = vadd.f32 0.0, %v456
    %458 = vdwg.mxu0
    %461 = vrot.lane.b32.xlu0 %v313, 8
    %v462 = vpop.permute.xlu0 %461
    %463 = vrot.lane.b32.xlu0 %v315, 8
    %v464 = vpop.permute.xlu0 %463
    %469 = vrot.lane.b32.xlu0 %v384, 16
    %v470 = vpop.permute.xlu0 %469
    %471 = vrot.lane.b32.xlu0 %v386, 16
    %v472 = vpop.permute.xlu0 %471
    %477 = vrot.lane.b32.xlu0 %v455, 24
    %v478 = vpop.permute.xlu0 %477
    %479 = vrot.lane.b32.xlu0 %v457, 24
    %v480 = vpop.permute.xlu0 %479
    %v483 = vsel %vm177, %v242, %v462
    %v484 = vsel %vm177, %v244, %v464
    %v485 = vsel %vm202, %v483, %v470
    %v486 = vsel %vm202, %v484, %v472
    %vm487 = vcmask 195584
    %v488 = vsel %vm487, %v485, %v478
    %v489 = vsel %vm487, %v486, %v480
    %v490 = vpack.c.bf16 %v489, %v488
    %v491 = vperm.slane %v134, 0
    %492 = vrot.lane.b32.xlu0 %v143, 32
    %v493 = vpop.permute.xlu0 %492
    %494 = vrot.lane.b32.xlu0 %v144, 32
    %v495 = vpop.permute.xlu0 %494
    %v499 = vsel %vm147, %v490, 0
    %501 = vmatpush.bf16.msra.mxu0 0
    %502 = vmatpush.bf16.msra.mxu0 0
    %503 = vmatpush.bf16.msra.mxu0 0
    %504 = vmatpush.bf16.msra.mxu0 0
    %505 = vmatpush.bf16.msra.mxu0 0
    %506 = vmatpush.bf16.msra.mxu0 0
    %507 = vmatpush.bf16.msra.mxu0 %v495
    %508 = vmatpush.bf16.msra.mxu0 %v493
    %509 = vmatmul.bf16.gmra.mxu0 %v499
    %v510 = vpop.f32.mrf.mxu0
    %v511 = vadd.f32 %v491, %v510
    %v512 = vpop.f32.mrf.mxu0
    %v513 = vadd.f32 %v491, %v512
    %514 = vdwg.mxu0
    %v515 = vadd.f32 %v511, %v119
    %v516 = vadd.f32 %v513, %v120
    %v517 = vld [vmem:[#allocation11 + $0x4] sm:$0x1]
    %v518 = vld [vmem:[#allocation11 + $0x5] sm:$0x1]
    %v519 = vsel %vm147, %v515, 0.0
    %520 = vadd.xlane.f32.xlu0 %v519
    %v521 = vpop.xlane.xlu0 %520
    %v522 = vsel %vm147, %v516, 0.0
    %523 = vadd.xlane.f32.xlu0 %v522
    %v524 = vpop.xlane.xlu0 %523
    %v525 = vrcp.pop 32.0
    %v526 = vmul.f32 32.0, %v525
    %v527 = vsub.f32 1.0, %v526
    %v528 = vmul.f32 %v525, %v527
    %v529 = vadd.f32 %v525, %v528
    %vm530 = vweird.f32 %v525
    %v531 = vsel %vm530, %v525, %v529
    %v532 = vmul.f32 %v521, %v531
    %v533 = vmul.f32 %v524, %v531
    %v534 = vmul.f32 %v515, %v515
    %v535 = vmul.f32 %v516, %v516
    %v536 = vsel %vm147, %v534, 0.0
    %537 = vadd.xlane.f32.xlu0 %v536
    %v538 = vpop.xlane.xlu0 %537
    %v539 = vsel %vm147, %v535, 0.0
    %540 = vadd.xlane.f32.xlu0 %v539
    %v541 = vpop.xlane.xlu0 %540
    %v542 = vmul.f32 %v538, %v531
    %v543 = vmul.f32 %v541, %v531
    %v544 = vmul.f32 %v532, %v532
    %v545 = vmul.f32 %v533, %v533
    %v546 = vsub.f32 %v542, %v544
    %v547 = vsub.f32 %v543, %v545
    %v548 = vsub.f32 %v515, %v532
    %v549 = vsub.f32 %v516, %v533
    %v550 = vadd.f32 %v546, 1e-05
    %v551 = vadd.f32 %v547, 1e-05
    %v552 = vrsqrt.pop %v550
    %v553 = vmul.f32 %v552, %v550
    %v554 = vmul.f32 %v553, %v552
    %v555 = vmul.f32 0.5, %v554
    %v556 = vsub.f32 1.5, %v555
    %v557 = vmul.f32 %v552, %v556
    %vm558 = vweird.f32 %v550
    %vm559 = vweird.f32 %v552
    %vm560 = vmor %vm558, %vm559
    %v561 = vsel %vm560, %v552, %v557
    %v562 = vrsqrt.pop %v551
    %v563 = vmul.f32 %v562, %v551
    %v564 = vmul.f32 %v563, %v562
    %v565 = vmul.f32 0.5, %v564
    %v566 = vsub.f32 1.5, %v565
    %v567 = vmul.f32 %v562, %v566
    %vm568 = vweird.f32 %v551
    %vm569 = vweird.f32 %v562
    %vm570 = vmor %vm568, %vm569
    %v571 = vsel %vm570, %v562, %v567
    %v572 = vmul.f32 %v548, %v561
    %v573 = vmul.f32 %v549, %v571
    %v574 = vperm.slane %v517, 0
    %v575 = vmul.f32 %v572, %v574
    %v576 = vmul.f32 %v573, %v574
    %v577 = vperm.slane %v518, 0
    %v578 = vadd.f32 %v575, %v577
    %v579 = vadd.f32 %v576, %v577
    %v580 = vpack.c.bf16 %v579, %v578
    %v581 = vld [vmem:[#allocation10 + $0x10] sm:$0xf]
    %v582 = vld [vmem:[#allocation10 + $0x14] sm:$0xf]
    %v583 = vld [vmem:[#allocation10 + $0x18] sm:$0xf]
    %v584 = vld [vmem:[#allocation10 + $0x1c] sm:$0xf]
    %v585 = vld [vmem:[#allocation11 + $0x2] sm:$0x1]
    %v586 = vld [vmem:[#allocation11 + $0x3] sm:$0x1]
    %v591 = vunpack.c.l.b16 %v581
    %v592 = vunpack.c.l.b16 %v582
    %v593 = vunpack.c.l.b16 %v583
    %v594 = vunpack.c.l.b16 %v584
    %v595 = vpack.c.b16 %v592, %v591
    %v596 = vpack.c.b16 %v594, %v593
    %v600 = vsel %vm147, %v123, 0
    %602 = vmatpush.bf16.msra.mxu0 0
    %603 = vmatpush.bf16.msra.mxu0 0
    %604 = vmatpush.bf16.msra.mxu0 0
    %605 = vmatpush.bf16.msra.mxu0 0
    %606 = vmatpush.bf16.msra.mxu0 0
    %607 = vmatpush.bf16.msra.mxu0 0
    %608 = vmatpush.bf16.msra.mxu0 %v596
    %609 = vmatpush.bf16.msra.mxu0 %v595
    %610 = vmatmul.bf16.gmra.mxu0 %v600
    %v611 = vpop.f32.mrf.mxu0
    %v612 = vadd.f32 0.0, %v611
    %v613 = vpop.f32.mrf.mxu0
    %v614 = vadd.f32 0.0, %v613
    %615 = vdwg.mxu0
    %v616 = vperm.slane %v585, 0
    %v617 = vadd.f32 %v612, %v616
    %v618 = vadd.f32 %v614, %v616
    %v620 = vsel %vm147, %v580, 0
    %622 = vmatpush.bf16.msra.mxu0 0
    %623 = vmatpush.bf16.msra.mxu0 0
    %624 = vmatpush.bf16.msra.mxu0 0
    %625 = vmatpush.bf16.msra.mxu0 0
    %626 = vmatpush.bf16.msra.mxu0 0
    %627 = vmatpush.bf16.msra.mxu0 0
    %628 = vmatpush.bf16.msra.mxu0 %v596
    %629 = vmatpush.bf16.msra.mxu0 %v595
    %630 = vmatmul.bf16.gmra.mxu0 %v620
    %v631 = vpop.f32.mrf.mxu0
    %v632 = vadd.f32 0.0, %v631
    %v633 = vpop.f32.mrf.mxu0
    %v634 = vadd.f32 0.0, %v633
    %635 = vdwg.mxu0
    %v636 = vadd.f32 %v632, %v616
    %v637 = vadd.f32 %v634, %v616
    %v638 = vpack.c.bf16 %v636, %v636
    %v639 = vpack.c.bf16 %v637, %v637
    %v640 = vpack.c.bf16 %v617, %v617
    %v641 = vpack.c.bf16 %v618, %v618
    %v644 = vunpack.c.l.b16 %v638
    %v645 = vunpack.c.l.b16 %v639
    %v646 = vpack.c.b16 %v645, %v644
    %v649 = vunpack.c.l.b16 %v640
    %v650 = vunpack.c.l.b16 %v641
    %v651 = vpack.c.b16 %v650, %v649
    %652 = vrot.lane.b32.xlu0 %v651, 96
    %v653 = vpop.permute.xlu0 %652
    %v655 = vsel %vm177, %v646, 0
    %v658 = vsel %vm177, %v653, 0
    %660 = vmatpush.bf16.xpose.msra.mxu0 0
    %661 = vmatpush.bf16.xpose.msra.mxu0 0
    %662 = vmatpush.bf16.xpose.msra.mxu0 0
    %663 = vmatpush.bf16.xpose.msra.mxu0 0
    %664 = vmatpush.bf16.xpose.msra.mxu0 0
    %665 = vmatpush.bf16.xpose.msra.mxu0 0
    %666 = vmatpush.bf16.xpose.msra.mxu0 0
    %667 = vmatpush.bf16.xpose.msra.mxu0 %v658
    %668 = vmatmul.bf16.gmra.mxu0 %v655
    %v669 = vpop.f32.mrf.mxu0
    %v670 = vadd.f32 0.0, %v669
    %v671 = vpop.f32.mrf.mxu0
    %v672 = vadd.f32 0.0, %v671
    %673 = vdwg.mxu0
    %v674 = vmul.f32 %v670, 0.35355338
    %v675 = vmul.f32 %v672, 0.35355338
    %v676 = vadd.f32 %v674, %v126
    %v677 = vadd.f32 %v675, %v127
    %v678 = vsel %vm202, %v676, -inf
    %679 = vmax.xlane.f32.xlu0 %v678
    %v680 = vpop.xlane.xlu0 %679
    %v681 = vsel %vm202, %v677, -inf
    %682 = vmax.xlane.f32.xlu0 %v681
    %v683 = vpop.xlane.xlu0 %682
    %v684 = vsub.f32 %v676, %v680
    %v685 = vsub.f32 %v677, %v683
    %v686 = vmul.f32 %v684, 1.442695
    %v687 = vpow.pop %v686
    %v688 = vmul.f32 %v685, 1.442695
    %v689 = vpow.pop %v688
    %v690 = vsel %vm202, %v687, 0.0
    %691 = vadd.xlane.f32.xlu0 %v690
    %v692 = vpop.xlane.xlu0 %691
    %v693 = vsel %vm202, %v689, 0.0
    %694 = vadd.xlane.f32.xlu0 %v693
    %v695 = vpop.xlane.xlu0 %694
    %v696 = vrcp.pop %v692
    %v697 = vrcp.pop %v695
    %v698 = vmul.f32 %v687, %v696
    %v699 = vmul.f32 %v689, %v697
    %v700 = vpack.c.bf16 %v699, %v698
    %701 = vrot.lane.b32.xlu0 %v651, 64
    %v702 = vpop.permute.xlu0 %701
    %v705 = vsel %vm202, %v700, 0
    %707 = vmatpush.bf16.msra.mxu0 0
    %708 = vmatpush.bf16.msra.mxu0 0
    %709 = vmatpush.bf16.msra.mxu0 0
    %710 = vmatpush.bf16.msra.mxu0 0
    %711 = vmatpush.bf16.msra.mxu0 0
    %712 = vmatpush.bf16.msra.mxu0 0
    %713 = vmatpush.bf16.msra.mxu0 0
    %714 = vmatpush.bf16.msra.mxu0 %v702
    %715 = vmatmul.bf16.gmra.mxu0 %v705
    %v716 = vpop.f32.mrf.mxu0
    %v717 = vadd.f32 0.0, %v716
    %v718 = vpop.f32.mrf.mxu0
    %v719 = vadd.f32 0.0, %v718
    %720 = vdwg.mxu0
    %721 = vrot.lane.b32.xlu0 %v646, 120
    %v722 = vpop.permute.xlu0 %721
    %723 = vrot.lane.b32.xlu0 %v651, 88
    %v724 = vpop.permute.xlu0 %723
    %v726 = vsel %vm177, %v722, 0
    %v729 = vsel %vm177, %v724, 0
    %731 = vmatpush.bf16.xpose.msra.mxu0 0
    %732 = vmatpush.bf16.xpose.msra.mxu0 0
    %733 = vmatpush.bf16.xpose.msra.mxu0 0
    %734 = vmatpush.bf16.xpose.msra.mxu0 0
    %735 = vmatpush.bf16.xpose.msra.mxu0 0
    %736 = vmatpush.bf16.xpose.msra.mxu0 0
    %737 = vmatpush.bf16.xpose.msra.mxu0 0
    %738 = vmatpush.bf16.xpose.msra.mxu0 %v729
    %739 = vmatmul.bf16.gmra.mxu0 %v726
    %v740 = vpop.f32.mrf.mxu0
    %v741 = vadd.f32 0.0, %v740
    %v742 = vpop.f32.mrf.mxu0
    %v743 = vadd.f32 0.0, %v742
    %744 = vdwg.mxu0
    %v745 = vmul.f32 %v741, 0.35355338
    %v746 = vmul.f32 %v743, 0.35355338
    %v747 = vadd.f32 %v745, %v126
    %v748 = vadd.f32 %v746, %v127
    %v749 = vsel %vm202, %v747, -inf
    %750 = vmax.xlane.f32.xlu0 %v749
    %v751 = vpop.xlane.xlu0 %750
    %v752 = vsel %vm202, %v748, -inf
    %753 = vmax.xlane.f32.xlu0 %v752
    %v754 = vpop.xlane.xlu0 %753
    %v755 = vsub.f32 %v747, %v751
    %v756 = vsub.f32 %v748, %v754
    %v757 = vmul.f32 %v755, 1.442695
    %v758 = vpow.pop %v757
    %v759 = vmul.f32 %v756, 1.442695
    %v760 = vpow.pop %v759
    %v761 = vsel %vm202, %v758, 0.0
    %762 = vadd.xlane.f32.xlu0 %v761
    %v763 = vpop.xlane.xlu0 %762
    %v764 = vsel %vm202, %v760, 0.0
    %765 = vadd.xlane.f32.xlu0 %v764
    %v766 = vpop.xlane.xlu0 %765
    %v767 = vrcp.pop %v763
    %v768 = vrcp.pop %v766
    %v769 = vmul.f32 %v758, %v767
    %v770 = vmul.f32 %v760, %v768
    %v771 = vpack.c.bf16 %v770, %v769
    %772 = vrot.lane.b32.xlu0 %v651, 56
    %v773 = vpop.permute.xlu0 %772
    %v776 = vsel %vm202, %v771, 0
    %778 = vmatpush.bf16.msra.mxu0 0
    %779 = vmatpush.bf16.msra.mxu0 0
    %780 = vmatpush.bf16.msra.mxu0 0
    %781 = vmatpush.bf16.msra.mxu0 0
    %782 = vmatpush.bf16.msra.mxu0 0
    %783 = vmatpush.bf16.msra.mxu0 0
    %784 = vmatpush.bf16.msra.mxu0 0
    %785 = vmatpush.bf16.msra.mxu0 %v773
    %786 = vmatmul.bf16.gmra.mxu0 %v776
    %v787 = vpop.f32.mrf.mxu0
    %v788 = vadd.f32 0.0, %v787
    %v789 = vpop.f32.mrf.mxu0
    %v790 = vadd.f32 0.0, %v789
    %791 = vdwg.mxu0
    %792 = vrot.lane.b32.xlu0 %v646, 112
    %v793 = vpop.permute.xlu0 %792
    %794 = vrot.lane.b32.xlu0 %v651, 80
    %v795 = vpop.permute.xlu0 %794
    %v797 = vsel %vm177, %v793, 0
    %v800 = vsel %vm177, %v795, 0
    %802 = vmatpush.bf16.xpose.msra.mxu0 0
    %803 = vmatpush.bf16.xpose.msra.mxu0 0
    %804 = vmatpush.bf16.xpose.msra.mxu0 0
    %805 = vmatpush.bf16.xpose.msra.mxu0 0
    %806 = vmatpush.bf16.xpose.msra.mxu0 0
    %807 = vmatpush.bf16.xpose.msra.mxu0 0
    %808 = vmatpush.bf16.xpose.msra.mxu0 0
    %809 = vmatpush.bf16.xpose.msra.mxu0 %v800
    %810 = vmatmul.bf16.gmra.mxu0 %v797
    %v811 = vpop.f32.mrf.mxu0
    %v812 = vadd.f32 0.0, %v811
    %v813 = vpop.f32.mrf.mxu0
    %v814 = vadd.f32 0.0, %v813
    %815 = vdwg.mxu0
    %v816 = vmul.f32 %v812, 0.35355338
    %v817 = vmul.f32 %v814, 0.35355338
    %v818 = vadd.f32 %v816, %v126
    %v819 = vadd.f32 %v817, %v127
    %v820 = vsel %vm202, %v818, -inf
    %821 = vmax.xlane.f32.xlu0 %v820
    %v822 = vpop.xlane.xlu0 %821
    %v823 = vsel %vm202, %v819, -inf
    %824 = vmax.xlane.f32.xlu0 %v823
    %v825 = vpop.xlane.xlu0 %824
    %v826 = vsub.f32 %v818, %v822
    %v827 = vsub.f32 %v819, %v825
    %v828 = vmul.f32 %v826, 1.442695
    %v829 = vpow.pop %v828
    %v830 = vmul.f32 %v827, 1.442695
    %v831 = vpow.pop %v830
    %v832 = vsel %vm202, %v829, 0.0
    %833 = vadd.xlane.f32.xlu0 %v832
    %v834 = vpop.xlane.xlu0 %833
    %v835 = vsel %vm202, %v831, 0.0
    %836 = vadd.xlane.f32.xlu0 %v835
    %v837 = vpop.xlane.xlu0 %836
    %v838 = vrcp.pop %v834
    %v839 = vrcp.pop %v837
    %v840 = vmul.f32 %v829, %v838
    %v841 = vmul.f32 %v831, %v839
    %v842 = vpack.c.bf16 %v841, %v840
    %843 = vrot.lane.b32.xlu0 %v651, 48
    %v844 = vpop.permute.xlu0 %843
    %v847 = vsel %vm202, %v842, 0
    %849 = vmatpush.bf16.msra.mxu0 0
    %850 = vmatpush.bf16.msra.mxu0 0
    %851 = vmatpush.bf16.msra.mxu0 0
    %852 = vmatpush.bf16.msra.mxu0 0
    %853 = vmatpush.bf16.msra.mxu0 0
    %854 = vmatpush.bf16.msra.mxu0 0
    %855 = vmatpush.bf16.msra.mxu0 0
    %856 = vmatpush.bf16.msra.mxu0 %v844
    %857 = vmatmul.bf16.gmra.mxu0 %v847
    %v858 = vpop.f32.mrf.mxu0
    %v859 = vadd.f32 0.0, %v858
    %v860 = vpop.f32.mrf.mxu0
    %v861 = vadd.f32 0.0, %v860
    %862 = vdwg.mxu0
    %863 = vrot.lane.b32.xlu0 %v646, 104
    %v864 = vpop.permute.xlu0 %863
    %865 = vrot.lane.b32.xlu0 %v651, 72
    %v866 = vpop.permute.xlu0 %865
    %v868 = vsel %vm177, %v864, 0
    %v871 = vsel %vm177, %v866, 0
    %873 = vmatpush.bf16.xpose.msra.mxu0 0
    %874 = vmatpush.bf16.xpose.msra.mxu0 0
    %875 = vmatpush.bf16.xpose.msra.mxu0 0
    %876 = vmatpush.bf16.xpose.msra.mxu0 0
    %877 = vmatpush.bf16.xpose.msra.mxu0 0
    %878 = vmatpush.bf16.xpose.msra.mxu0 0
    %879 = vmatpush.bf16.xpose.msra.mxu0 0
    %880 = vmatpush.bf16.xpose.msra.mxu0 %v871
    %881 = vmatmul.bf16.gmra.mxu0 %v868
    %v882 = vpop.f32.mrf.mxu0
    %v883 = vadd.f32 0.0, %v882
    %v884 = vpop.f32.mrf.mxu0
    %v885 = vadd.f32 0.0, %v884
    %886 = vdwg.mxu0
    %v887 = vmul.f32 %v883, 0.35355338
    %v888 = vmul.f32 %v885, 0.35355338
    %v889 = vadd.f32 %v887, %v126
    %v890 = vadd.f32 %v888, %v127
    %v891 = vsel %vm202, %v889, -inf
    %892 = vmax.xlane.f32.xlu0 %v891
    %v893 = vpop.xlane.xlu0 %892
    %v894 = vsel %vm202, %v890, -inf
    %895 = vmax.xlane.f32.xlu0 %v894
    %v896 = vpop.xlane.xlu0 %895
    %v897 = vsub.f32 %v889, %v893
    %v898 = vsub.f32 %v890, %v896
    %v899 = vmul.f32 %v897, 1.442695
    %v900 = vpow.pop %v899
    %v901 = vmul.f32 %v898, 1.442695
    %v902 = vpow.pop %v901
    %v903 = vsel %vm202, %v900, 0.0
    %904 = vadd.xlane.f32.xlu0 %v903
    %v905 = vpop.xlane.xlu0 %904
    %v906 = vsel %vm202, %v902, 0.0
    %907 = vadd.xlane.f32.xlu0 %v906
    %v908 = vpop.xlane.xlu0 %907
    %v909 = vrcp.pop %v905
    %v910 = vrcp.pop %v908
    %v911 = vmul.f32 %v900, %v909
    %v912 = vmul.f32 %v902, %v910
    %v913 = vpack.c.bf16 %v912, %v911
    %914 = vrot.lane.b32.xlu0 %v651, 40
    %v915 = vpop.permute.xlu0 %914
    %v918 = vsel %vm202, %v913, 0
    %920 = vmatpush.bf16.msra.mxu0 0
    %921 = vmatpush.bf16.msra.mxu0 0
    %922 = vmatpush.bf16.msra.mxu0 0
    %923 = vmatpush.bf16.msra.mxu0 0
    %924 = vmatpush.bf16.msra.mxu0 0
    %925 = vmatpush.bf16.msra.mxu0 0
    %926 = vmatpush.bf16.msra.mxu0 0
    %927 = vmatpush.bf16.msra.mxu0 %v915
    %928 = vmatmul.bf16.gmra.mxu0 %v918
    %v929 = vpop.f32.mrf.mxu0
    %v930 = vadd.f32 0.0, %v929
    %v931 = vpop.f32.mrf.mxu0
    %v932 = vadd.f32 0.0, %v931
    %933 = vdwg.mxu0
    %936 = vrot.lane.b32.xlu0 %v788, 8
    %v937 = vpop.permute.xlu0 %936
    %938 = vrot.lane.b32.xlu0 %v790, 8
    %v939 = vpop.permute.xlu0 %938
    %944 = vrot.lane.b32.xlu0 %v859, 16
    %v945 = vpop.permute.xlu0 %944
    %946 = vrot.lane.b32.xlu0 %v861, 16
    %v947 = vpop.permute.xlu0 %946
    %952 = vrot.lane.b32.xlu0 %v930, 24
    %v953 = vpop.permute.xlu0 %952
    %954 = vrot.lane.b32.xlu0 %v932, 24
    %v955 = vpop.permute.xlu0 %954
    %v958 = vsel %vm177, %v717, %v937
    %v959 = vsel %vm177, %v719, %v939
    %v960 = vsel %vm202, %v958, %v945
    %v961 = vsel %vm202, %v959, %v947
    %v962 = vsel %vm487, %v960, %v953
    %v963 = vsel %vm487, %v961, %v955
    %v964 = vpack.c.bf16 %v963, %v962
    %v965 = vperm.slane %v586, 0
    %966 = vrot.lane.b32.xlu0 %v595, 32
    %v967 = vpop.permute.xlu0 %966
    %968 = vrot.lane.b32.xlu0 %v596, 32
    %v969 = vpop.permute.xlu0 %968
    %v973 = vsel %vm147, %v964, 0
    %975 = vmatpush.bf16.msra.mxu0 0
    %976 = vmatpush.bf16.msra.mxu0 0
    %977 = vmatpush.bf16.msra.mxu0 0
    %978 = vmatpush.bf16.msra.mxu0 0
    %979 = vmatpush.bf16.msra.mxu0 0
    %980 = vmatpush.bf16.msra.mxu0 0
    %981 = vmatpush.bf16.msra.mxu0 %v969
    %982 = vmatpush.bf16.msra.mxu0 %v967
    %983 = vmatmul.bf16.gmra.mxu0 %v973
    %v984 = vpop.f32.mrf.mxu0
    %v985 = vadd.f32 %v965, %v984
    %v986 = vpop.f32.mrf.mxu0
    %v987 = vadd.f32 %v965, %v986
    %988 = vdwg.mxu0
    %v989 = vadd.f32 %v985, %v578
    %v990 = vadd.f32 %v987, %v579
    %v991 = vld [vmem:[#allocation11 + $0x6] sm:$0x1]
    %v992 = vld [vmem:[#allocation11 + $0x7] sm:$0x1]
    %v993 = vsel %vm147, %v989, 0.0
    %994 = vadd.xlane.f32.xlu0 %v993
    %v995 = vpop.xlane.xlu0 %994
    %v996 = vsel %vm147, %v990, 0.0
    %997 = vadd.xlane.f32.xlu0 %v996
    %v998 = vpop.xlane.xlu0 %997
    %v999 = vmul.f32 %v995, %v531
    %v1000 = vmul.f32 %v998, %v531
    %v1001 = vmul.f32 %v989, %v989
    %v1002 = vmul.f32 %v990, %v990
    %v1003 = vsel %vm147, %v1001, 0.0
    %1004 = vadd.xlane.f32.xlu0 %v1003
    %v1005 = vpop.xlane.xlu0 %1004
    %v1006 = vsel %vm147, %v1002, 0.0
    %1007 = vadd.xlane.f32.xlu0 %v1006
    %v1008 = vpop.xlane.xlu0 %1007
    %v1009 = vmul.f32 %v1005, %v531
    %v1010 = vmul.f32 %v1008, %v531
    %v1011 = vmul.f32 %v999, %v999
    %v1012 = vmul.f32 %v1000, %v1000
    %v1013 = vsub.f32 %v1009, %v1011
    %v1014 = vsub.f32 %v1010, %v1012
    %v1015 = vsub.f32 %v989, %v999
    %v1016 = vsub.f32 %v990, %v1000
    %v1017 = vadd.f32 %v1013, 1e-05
    %v1018 = vadd.f32 %v1014, 1e-05
    %v1019 = vrsqrt.pop %v1017
    %v1020 = vmul.f32 %v1019, %v1017
    %v1021 = vmul.f32 %v1020, %v1019
    %v1022 = vmul.f32 0.5, %v1021
    %v1023 = vsub.f32 1.5, %v1022
    %v1024 = vmul.f32 %v1019, %v1023
    %vm1025 = vweird.f32 %v1017
    %vm1026 = vweird.f32 %v1019
    %vm1027 = vmor %vm1025, %vm1026
    %v1028 = vsel %vm1027, %v1019, %v1024
    %v1029 = vrsqrt.pop %v1018
    %v1030 = vmul.f32 %v1029, %v1018
    %v1031 = vmul.f32 %v1030, %v1029
    %v1032 = vmul.f32 0.5, %v1031
    %v1033 = vsub.f32 1.5, %v1032
    %v1034 = vmul.f32 %v1029, %v1033
    %vm1035 = vweird.f32 %v1018
    %vm1036 = vweird.f32 %v1029
    %vm1037 = vmor %vm1035, %vm1036
    %v1038 = vsel %vm1037, %v1029, %v1034
    %v1039 = vmul.f32 %v1015, %v1028
    %v1040 = vmul.f32 %v1016, %v1038
    %v1041 = vperm.slane %v991, 0
    %v1042 = vmul.f32 %v1039, %v1041
    %v1043 = vmul.f32 %v1040, %v1041
    %v1044 = vperm.slane %v992, 0
    %v1045 = vadd.f32 %v1042, %v1044
    %v1046 = vadd.f32 %v1043, %v1044
    %v1047 = vld [vmem:[#allocation10 + $0x40] sm:$0xf]
    %v1048 = vld [vmem:[#allocation10 + $0x44] sm:$0xf]
    %v1049 = vld [vmem:[#allocation10 + $0x48] sm:$0xf]
    %v1050 = vld [vmem:[#allocation10 + $0x4c] sm:$0xf]
    %v1051 = vld [vmem:[#allocation10 + $0x60] sm:$0xf]
    %v1052 = vld [vmem:[#allocation10 + $0x64] sm:$0xf]
    %v1053 = vld [vmem:[#allocation10 + $0x68] sm:$0xf]
    %v1054 = vld [vmem:[#allocation10 + $0x6c] sm:$0xf]
    %v1055 = vld [vmem:[#allocation10 + $0x70] sm:$0xf]
    %v1056 = vld [vmem:[#allocation10 + $0x74] sm:$0xf]
    %v1057 = vld [vmem:[#allocation10 + $0x78] sm:$0xf]
    %v1058 = vld [vmem:[#allocation10 + $0x7c] sm:$0xf]
    %v1059 = vld [vmem:[#allocation10 + $0x80] sm:$0xf]
    %v1060 = vld [vmem:[#allocation10 + $0x84] sm:$0xf]
    %v1061 = vld [vmem:[#allocation10 + $0x88] sm:$0xf]
    %v1062 = vld [vmem:[#allocation10 + $0x8c] sm:$0xf]
    %v1063 = vld [vmem:[#allocation10 + $0x90] sm:$0xf]
    %v1064 = vld [vmem:[#allocation10 + $0x94] sm:$0xf]
    %v1065 = vld [vmem:[#allocation10 + $0x98] sm:$0xf]
    %v1066 = vld [vmem:[#allocation10 + $0x9c] sm:$0xf]
    %v1067 = vpack.c.bf16 %v1046, %v1045
    %v1068 = vld [vmem:[#allocation11 + $0xa] sm:$0x1]
    %v1069 = vld [vmem:[#allocation11 + $0xb] sm:$0x1]
    %v1070 = vperm.slane %v1068, 0
    %v1075 = vunpack.c.l.b16 %v1047
    %v1076 = vunpack.c.l.b16 %v1048
    %v1077 = vunpack.c.l.b16 %v1049
    %v1078 = vunpack.c.l.b16 %v1050
    %v1079 = vpack.c.b16 %v1076, %v1075
    %v1080 = vpack.c.b16 %v1078, %v1077
    %v1084 = vsel %vm147, %v1067, 0
    %1086 = vmatpush.bf16.msra.mxu0 0
    %1087 = vmatpush.bf16.msra.mxu0 0
    %1088 = vmatpush.bf16.msra.mxu0 0
    %1089 = vmatpush.bf16.msra.mxu0 0
    %1090 = vmatpush.bf16.msra.mxu0 0
    %1091 = vmatpush.bf16.msra.mxu0 0
    %1092 = vmatpush.bf16.msra.mxu0 %v1080
    %1093 = vmatpush.bf16.msra.mxu0 %v1079
    %1094 = vmatmul.bf16.gmra.mxu0 %v1084
    %v1095 = vpop.f32.mrf.mxu0
    %v1096 = vadd.f32 %v1070, %v1095
    %v1097 = vpop.f32.mrf.mxu0
    %v1098 = vadd.f32 %v1070, %v1097
    %1099 = vdwg.mxu0
    %v1100 = vmax.f32 %v1096, 0.0
    %v1101 = vmax.f32 %v1098, 0.0
    %v1102 = vpack.c.bf16 %v1101, %v1100
    %v1119 = vunpack.c.l.b16 %v1051
    %v1120 = vunpack.c.l.b16 %v1052
    %v1121 = vunpack.c.l.b16 %v1053
    %v1122 = vunpack.c.l.b16 %v1054
    %v1123 = vunpack.c.l.b16 %v1055
    %v1124 = vunpack.c.l.b16 %v1056
    %v1125 = vunpack.c.l.b16 %v1057
    %v1126 = vunpack.c.l.b16 %v1058
    %v1127 = vunpack.c.l.b16 %v1059
    %v1128 = vunpack.c.l.b16 %v1060
    %v1129 = vunpack.c.l.b16 %v1061
    %v1130 = vunpack.c.l.b16 %v1062
    %v1131 = vunpack.c.l.b16 %v1063
    %v1132 = vunpack.c.l.b16 %v1064
    %v1133 = vunpack.c.l.b16 %v1065
    %v1134 = vunpack.c.l.b16 %v1066
    %v1135 = vpack.c.b16 %v1120, %v1119
    %v1136 = vpack.c.b16 %v1122, %v1121
    %v1137 = vpack.c.b16 %v1124, %v1123
    %v1138 = vpack.c.b16 %v1126, %v1125
    %v1139 = vpack.c.b16 %v1128, %v1127
    %v1140 = vpack.c.b16 %v1130, %v1129
    %v1141 = vpack.c.b16 %v1132, %v1131
    %v1142 = vpack.c.b16 %v1134, %v1133
    %1151 = vmatpush.bf16.msra.mxu0 %v1142
    %1152 = vmatpush.bf16.msra.mxu0 %v1141
    %1153 = vmatpush.bf16.msra.mxu0 %v1140
    %1154 = vmatpush.bf16.msra.mxu0 %v1139
    %1155 = vmatpush.bf16.msra.mxu0 %v1138
    %1156 = vmatpush.bf16.msra.mxu0 %v1137
    %1157 = vmatpush.bf16.msra.mxu0 %v1136
    %1158 = vmatpush.bf16.msra.mxu0 %v1135
    %1159 = vmatmul.bf16.gmra.mxu0 %v1102
    %v1160 = vpop.f32.mrf.mxu0
    %v1161 = vadd.f32 0.0, %v1160
    %v1162 = vpop.f32.mrf.mxu0
    %v1163 = vadd.f32 0.0, %v1162
    %1164 = vdwg.mxu0
    %v1165 = vperm.slane %v1069, 0
    %v1166 = vadd.f32 %v1161, %v1165
    %v1167 = vadd.f32 %v1163, %v1165
    %v1168 = vadd.f32 %v1166, %v1045
    %v1169 = vadd.f32 %v1167, %v1046
    %v1170 = vld [vmem:[#allocation11 + $0x8] sm:$0x1]
    %v1171 = vld [vmem:[#allocation11 + $0x9] sm:$0x1]
    %v1172 = vsel %vm147, %v1168, 0.0
    %1173 = vadd.xlane.f32.xlu0 %v1172
    %v1174 = vpop.xlane.xlu0 %1173
    %v1175 = vsel %vm147, %v1169, 0.0
    %1176 = vadd.xlane.f32.xlu0 %v1175
    %v1177 = vpop.xlane.xlu0 %1176
    %v1178 = vmul.f32 %v1174, %v531
    %v1179 = vmul.f32 %v1177, %v531
    %v1180 = vmul.f32 %v1168, %v1168
    %v1181 = vmul.f32 %v1169, %v1169
    %v1182 = vsel %vm147, %v1180, 0.0
    %1183 = vadd.xlane.f32.xlu0 %v1182
    %v1184 = vpop.xlane.xlu0 %1183
    %v1185 = vsel %vm147, %v1181, 0.0
    %1186 = vadd.xlane.f32.xlu0 %v1185
    %v1187 = vpop.xlane.xlu0 %1186
    %v1188 = vmul.f32 %v1184, %v531
    %v1189 = vmul.f32 %v1187, %v531
    %v1190 = vmul.f32 %v1178, %v1178
    %v1191 = vmul.f32 %v1179, %v1179
    %v1192 = vsub.f32 %v1188, %v1190
    %v1193 = vsub.f32 %v1189, %v1191
    %v1194 = vsub.f32 %v1168, %v1178
    %v1195 = vsub.f32 %v1169, %v1179
    %v1196 = vadd.f32 %v1192, 1e-05
    %v1197 = vadd.f32 %v1193, 1e-05
    %v1198 = vrsqrt.pop %v1196
    %v1199 = vmul.f32 %v1198, %v1196
    %v1200 = vmul.f32 %v1199, %v1198
    %v1201 = vmul.f32 0.5, %v1200
    %v1202 = vsub.f32 1.5, %v1201
    %v1203 = vmul.f32 %v1198, %v1202
    %vm1204 = vweird.f32 %v1196
    %vm1205 = vweird.f32 %v1198
    %vm1206 = vmor %vm1204, %vm1205
    %v1207 = vsel %vm1206, %v1198, %v1203
    %v1208 = vrsqrt.pop %v1197
    %v1209 = vmul.f32 %v1208, %v1197
    %v1210 = vmul.f32 %v1209, %v1208
    %v1211 = vmul.f32 0.5, %v1210
    %v1212 = vsub.f32 1.5, %v1211
    %v1213 = vmul.f32 %v1208, %v1212
    %vm1214 = vweird.f32 %v1197
    %vm1215 = vweird.f32 %v1208
    %vm1216 = vmor %vm1214, %vm1215
    %v1217 = vsel %vm1216, %v1208, %v1213
    %v1218 = vmul.f32 %v1194, %v1207
    %v1219 = vmul.f32 %v1195, %v1217
    %v1220 = vperm.slane %v1170, 0
    %v1221 = vmul.f32 %v1218, %v1220
    %v1222 = vmul.f32 %v1219, %v1220
    %v1223 = vperm.slane %v1171, 0
    %v1224 = vadd.f32 %v1221, %v1223
    %v1225 = vadd.f32 %v1222, %v1223
    %v1226 = vpack.c.bf16 %v1225, %v1224
    %v1227 = vld [vmem:[#allocation10 + $0x20] sm:$0xf]
    %v1228 = vld [vmem:[#allocation10 + $0x24] sm:$0xf]
    %v1229 = vld [vmem:[#allocation10 + $0x28] sm:$0xf]
    %v1230 = vld [vmem:[#allocation10 + $0x2c] sm:$0xf]
    %v1231 = vld [vmem:[#allocation11 + $0xc] sm:$0x1]
    %v1232 = vld [vmem:[#allocation11 + $0xd] sm:$0x1]
    %v1237 = vunpack.c.l.b16 %v1227
    %v1238 = vunpack.c.l.b16 %v1228
    %v1239 = vunpack.c.l.b16 %v1229
    %v1240 = vunpack.c.l.b16 %v1230
    %v1241 = vpack.c.b16 %v1238, %v1237
    %v1242 = vpack.c.b16 %v1240, %v1239
    %v1246 = vsel %vm147, %v1226, 0
    %1248 = vmatpush.bf16.msra.mxu0 0
    %1249 = vmatpush.bf16.msra.mxu0 0
    %1250 = vmatpush.bf16.msra.mxu0 0
    %1251 = vmatpush.bf16.msra.mxu0 0
    %1252 = vmatpush.bf16.msra.mxu0 0
    %1253 = vmatpush.bf16.msra.mxu0 0
    %1254 = vmatpush.bf16.msra.mxu0 %v1242
    %1255 = vmatpush.bf16.msra.mxu0 %v1241
    %1256 = vmatmul.bf16.gmra.mxu0 %v1246
    %v1257 = vpop.f32.mrf.mxu0
    %v1258 = vadd.f32 0.0, %v1257
    %v1259 = vpop.f32.mrf.mxu0
    %v1260 = vadd.f32 0.0, %v1259
    %1261 = vdwg.mxu0
    %v1262 = vperm.slane %v1231, 0
    %v1263 = vadd.f32 %v1258, %v1262
    %v1264 = vadd.f32 %v1260, %v1262
    %v1265 = vpack.c.bf16 %v1263, %v1263
    %v1266 = vpack.c.bf16 %v1264, %v1264
    %v1269 = vunpack.c.l.b16 %v1265
    %v1270 = vunpack.c.l.b16 %v1266
    %v1271 = vpack.c.b16 %v1270, %v1269
    %1272 = vrot.lane.b32.xlu0 %v1271, 96
    %v1273 = vpop.permute.xlu0 %1272
    %v1275 = vsel %vm177, %v1271, 0
    %v1278 = vsel %vm177, %v1273, 0
    %1280 = vmatpush.bf16.xpose.msra.mxu0 0
    %1281 = vmatpush.bf16.xpose.msra.mxu0 0
    %1282 = vmatpush.bf16.xpose.msra.mxu0 0
    %1283 = vmatpush.bf16.xpose.msra.mxu0 0
    %1284 = vmatpush.bf16.xpose.msra.mxu0 0
    %1285 = vmatpush.bf16.xpose.msra.mxu0 0
    %1286 = vmatpush.bf16.xpose.msra.mxu0 0
    %1287 = vmatpush.bf16.xpose.msra.mxu0 %v1278
    %1288 = vmatmul.bf16.gmra.mxu0 %v1275
    %v1289 = vpop.f32.mrf.mxu0
    %v1290 = vadd.f32 0.0, %v1289
    %v1291 = vpop.f32.mrf.mxu0
    %v1292 = vadd.f32 0.0, %v1291
    %1293 = vdwg.mxu0
    %v1294 = vmul.f32 %v1290, 0.35355338
    %v1295 = vmul.f32 %v1292, 0.35355338
    %v1296 = vadd.f32 %v1294, %v124
    %v1297 = vadd.f32 %v1295, %v125
    %v1298 = vsel %vm202, %v1296, -inf
    %1299 = vmax.xlane.f32.xlu0 %v1298
    %v1300 = vpop.xlane.xlu0 %1299
    %v1301 = vsel %vm202, %v1297, -inf
    %1302 = vmax.xlane.f32.xlu0 %v1301
    %v1303 = vpop.xlane.xlu0 %1302
    %v1304 = vsub.f32 %v1296, %v1300
    %v1305 = vsub.f32 %v1297, %v1303
    %v1306 = vmul.f32 %v1304, 1.442695
    %v1307 = vpow.pop %v1306
    %v1308 = vmul.f32 %v1305, 1.442695
    %v1309 = vpow.pop %v1308
    %v1310 = vsel %vm202, %v1307, 0.0
    %1311 = vadd.xlane.f32.xlu0 %v1310
    %v1312 = vpop.xlane.xlu0 %1311
    %v1313 = vsel %vm202, %v1309, 0.0
    %1314 = vadd.xlane.f32.xlu0 %v1313
    %v1315 = vpop.xlane.xlu0 %1314
    %v1316 = vrcp.pop %v1312
    %v1317 = vrcp.pop %v1315
    %v1318 = vmul.f32 %v1307, %v1316
    %v1319 = vmul.f32 %v1309, %v1317
    %v1320 = vpack.c.bf16 %v1319, %v1318
    %1321 = vrot.lane.b32.xlu0 %v1271, 64
    %v1322 = vpop.permute.xlu0 %1321
    %v1325 = vsel %vm202, %v1320, 0
    %1327 = vmatpush.bf16.msra.mxu0 0
    %1328 = vmatpush.bf16.msra.mxu0 0
    %1329 = vmatpush.bf16.msra.mxu0 0
    %1330 = vmatpush.bf16.msra.mxu0 0
    %1331 = vmatpush.bf16.msra.mxu0 0
    %1332 = vmatpush.bf16.msra.mxu0 0
    %1333 = vmatpush.bf16.msra.mxu0 0
    %1334 = vmatpush.bf16.msra.mxu0 %v1322
    %1335 = vmatmul.bf16.gmra.mxu0 %v1325
    %v1336 = vpop.f32.mrf.mxu0
    %v1337 = vadd.f32 0.0, %v1336
    %v1338 = vpop.f32.mrf.mxu0
    %v1339 = vadd.f32 0.0, %v1338
    %1340 = vdwg.mxu0
    %1341 = vrot.lane.b32.xlu0 %v1271, 120
    %v1342 = vpop.permute.xlu0 %1341
    %1343 = vrot.lane.b32.xlu0 %v1271, 88
    %v1344 = vpop.permute.xlu0 %1343
    %v1346 = vsel %vm177, %v1342, 0
    %v1349 = vsel %vm177, %v1344, 0
    %1351 = vmatpush.bf16.xpose.msra.mxu0 0
    %1352 = vmatpush.bf16.xpose.msra.mxu0 0
    %1353 = vmatpush.bf16.xpose.msra.mxu0 0
    %1354 = vmatpush.bf16.xpose.msra.mxu0 0
    %1355 = vmatpush.bf16.xpose.msra.mxu0 0
    %1356 = vmatpush.bf16.xpose.msra.mxu0 0
    %1357 = vmatpush.bf16.xpose.msra.mxu0 0
    %1358 = vmatpush.bf16.xpose.msra.mxu0 %v1349
    %1359 = vmatmul.bf16.gmra.mxu0 %v1346
    %v1360 = vpop.f32.mrf.mxu0
    %v1361 = vadd.f32 0.0, %v1360
    %v1362 = vpop.f32.mrf.mxu0
    %v1363 = vadd.f32 0.0, %v1362
    %1364 = vdwg.mxu0
    %v1365 = vmul.f32 %v1361, 0.35355338
    %v1366 = vmul.f32 %v1363, 0.35355338
    %v1367 = vadd.f32 %v1365, %v124
    %v1368 = vadd.f32 %v1366, %v125
    %v1369 = vsel %vm202, %v1367, -inf
    %1370 = vmax.xlane.f32.xlu0 %v1369
    %v1371 = vpop.xlane.xlu0 %1370
    %v1372 = vsel %vm202, %v1368, -inf
    %1373 = vmax.xlane.f32.xlu0 %v1372
    %v1374 = vpop.xlane.xlu0 %1373
    %v1375 = vsub.f32 %v1367, %v1371
    %v1376 = vsub.f32 %v1368, %v1374
    %v1377 = vmul.f32 %v1375, 1.442695
    %v1378 = vpow.pop %v1377
    %v1379 = vmul.f32 %v1376, 1.442695
    %v1380 = vpow.pop %v1379
    %v1381 = vsel %vm202, %v1378, 0.0
    %1382 = vadd.xlane.f32.xlu0 %v1381
    %v1383 = vpop.xlane.xlu0 %1382
    %v1384 = vsel %vm202, %v1380, 0.0
    %1385 = vadd.xlane.f32.xlu0 %v1384
    %v1386 = vpop.xlane.xlu0 %1385
    %v1387 = vrcp.pop %v1383
    %v1388 = vrcp.pop %v1386
    %v1389 = vmul.f32 %v1378, %v1387
    %v1390 = vmul.f32 %v1380, %v1388
    %v1391 = vpack.c.bf16 %v1390, %v1389
    %1392 = vrot.lane.b32.xlu0 %v1271, 56
    %v1393 = vpop.permute.xlu0 %1392
    %v1396 = vsel %vm202, %v1391, 0
    %1398 = vmatpush.bf16.msra.mxu0 0
    %1399 = vmatpush.bf16.msra.mxu0 0
    %1400 = vmatpush.bf16.msra.mxu0 0
    %1401 = vmatpush.bf16.msra.mxu0 0
    %1402 = vmatpush.bf16.msra.mxu0 0
    %1403 = vmatpush.bf16.msra.mxu0 0
    %1404 = vmatpush.bf16.msra.mxu0 0
    %1405 = vmatpush.bf16.msra.mxu0 %v1393
    %1406 = vmatmul.bf16.gmra.mxu0 %v1396
    %v1407 = vpop.f32.mrf.mxu0
    %v1408 = vadd.f32 0.0, %v1407
    %v1409 = vpop.f32.mrf.mxu0
    %v1410 = vadd.f32 0.0, %v1409
    %1411 = vdwg.mxu0
    %1412 = vrot.lane.b32.xlu0 %v1271, 112
    %v1413 = vpop.permute.xlu0 %1412
    %1414 = vrot.lane.b32.xlu0 %v1271, 80
    %v1415 = vpop.permute.xlu0 %1414
    %v1417 = vsel %vm177, %v1413, 0
    %v1420 = vsel %vm177, %v1415, 0
    %1422 = vmatpush.bf16.xpose.msra.mxu0 0
    %1423 = vmatpush.bf16.xpose.msra.mxu0 0
    %1424 = vmatpush.bf16.xpose.msra.mxu0 0
    %1425 = vmatpush.bf16.xpose.msra.mxu0 0
    %1426 = vmatpush.bf16.xpose.msra.mxu0 0
    %1427 = vmatpush.bf16.xpose.msra.mxu0 0
    %1428 = vmatpush.bf16.xpose.msra.mxu0 0
    %1429 = vmatpush.bf16.xpose.msra.mxu0 %v1420
    %1430 = vmatmul.bf16.gmra.mxu0 %v1417
    %v1431 = vpop.f32.mrf.mxu0
    %v1432 = vadd.f32 0.0, %v1431
    %v1433 = vpop.f32.mrf.mxu0
    %v1434 = vadd.f32 0.0, %v1433
    %1435 = vdwg.mxu0
    %v1436 = vmul.f32 %v1432, 0.35355338
    %v1437 = vmul.f32 %v1434, 0.35355338
    %v1438 = vadd.f32 %v1436, %v124
    %v1439 = vadd.f32 %v1437, %v125
    %v1440 = vsel %vm202, %v1438, -inf
    %1441 = vmax.xlane.f32.xlu0 %v1440
    %v1442 = vpop.xlane.xlu0 %1441
    %v1443 = vsel %vm202, %v1439, -inf
    %1444 = vmax.xlane.f32.xlu0 %v1443
    %v1445 = vpop.xlane.xlu0 %1444
    %v1446 = vsub.f32 %v1438, %v1442
    %v1447 = vsub.f32 %v1439, %v1445
    %v1448 = vmul.f32 %v1446, 1.442695
    %v1449 = vpow.pop %v1448
    %v1450 = vmul.f32 %v1447, 1.442695
    %v1451 = vpow.pop %v1450
    %v1452 = vsel %vm202, %v1449, 0.0
    %1453 = vadd.xlane.f32.xlu0 %v1452
    %v1454 = vpop.xlane.xlu0 %1453
    %v1455 = vsel %vm202, %v1451, 0.0
    %1456 = vadd.xlane.f32.xlu0 %v1455
    %v1457 = vpop.xlane.xlu0 %1456
    %v1458 = vrcp.pop %v1454
    %v1459 = vrcp.pop %v1457
    %v1460 = vmul.f32 %v1449, %v1458
    %v1461 = vmul.f32 %v1451, %v1459
    %v1462 = vpack.c.bf16 %v1461, %v1460
    %1463 = vrot.lane.b32.xlu0 %v1271, 48
    %v1464 = vpop.permute.xlu0 %1463
    %v1467 = vsel %vm202, %v1462, 0
    %1469 = vmatpush.bf16.msra.mxu0 0
    %1470 = vmatpush.bf16.msra.mxu0 0
    %1471 = vmatpush.bf16.msra.mxu0 0
    %1472 = vmatpush.bf16.msra.mxu0 0
    %1473 = vmatpush.bf16.msra.mxu0 0
    %1474 = vmatpush.bf16.msra.mxu0 0
    %1475 = vmatpush.bf16.msra.mxu0 0
    %1476 = vmatpush.bf16.msra.mxu0 %v1464
    %1477 = vmatmul.bf16.gmra.mxu0 %v1467
    %v1478 = vpop.f32.mrf.mxu0
    %v1479 = vadd.f32 0.0, %v1478
    %v1480 = vpop.f32.mrf.mxu0
    %v1481 = vadd.f32 0.0, %v1480
    %1482 = vdwg.mxu0
    %1483 = vrot.lane.b32.xlu0 %v1271, 104
    %v1484 = vpop.permute.xlu0 %1483
    %1485 = vrot.lane.b32.xlu0 %v1271, 72
    %v1486 = vpop.permute.xlu0 %1485
    %v1488 = vsel %vm177, %v1484, 0
    %v1491 = vsel %vm177, %v1486, 0
    %1493 = vmatpush.bf16.xpose.msra.mxu0 0
    %1494 = vmatpush.bf16.xpose.msra.mxu0 0
    %1495 = vmatpush.bf16.xpose.msra.mxu0 0
    %1496 = vmatpush.bf16.xpose.msra.mxu0 0
    %1497 = vmatpush.bf16.xpose.msra.mxu0 0
    %1498 = vmatpush.bf16.xpose.msra.mxu0 0
    %1499 = vmatpush.bf16.xpose.msra.mxu0 0
    %1500 = vmatpush.bf16.xpose.msra.mxu0 %v1491
    %1501 = vmatmul.bf16.gmra.mxu0 %v1488
    %v1502 = vpop.f32.mrf.mxu0
    %v1503 = vadd.f32 0.0, %v1502
    %v1504 = vpop.f32.mrf.mxu0
    %v1505 = vadd.f32 0.0, %v1504
    %1506 = vdwg.mxu0
    %v1507 = vmul.f32 %v1503, 0.35355338
    %v1508 = vmul.f32 %v1505, 0.35355338
    %v1509 = vadd.f32 %v1507, %v124
    %v1510 = vadd.f32 %v1508, %v125
    %v1511 = vsel %vm202, %v1509, -inf
    %1512 = vmax.xlane.f32.xlu0 %v1511
    %v1513 = vpop.xlane.xlu0 %1512
    %v1514 = vsel %vm202, %v1510, -inf
    %1515 = vmax.xlane.f32.xlu0 %v1514
    %v1516 = vpop.xlane.xlu0 %1515
    %v1517 = vsub.f32 %v1509, %v1513
    %v1518 = vsub.f32 %v1510, %v1516
    %v1519 = vmul.f32 %v1517, 1.442695
    %v1520 = vpow.pop %v1519
    %v1521 = vmul.f32 %v1518, 1.442695
    %v1522 = vpow.pop %v1521
    %v1523 = vsel %vm202, %v1520, 0.0
    %1524 = vadd.xlane.f32.xlu0 %v1523
    %v1525 = vpop.xlane.xlu0 %1524
    %v1526 = vsel %vm202, %v1522, 0.0
    %1527 = vadd.xlane.f32.xlu0 %v1526
    %v1528 = vpop.xlane.xlu0 %1527
    %v1529 = vrcp.pop %v1525
    %v1530 = vrcp.pop %v1528
    %v1531 = vmul.f32 %v1520, %v1529
    %v1532 = vmul.f32 %v1522, %v1530
    %v1533 = vpack.c.bf16 %v1532, %v1531
    %1534 = vrot.lane.b32.xlu0 %v1271, 40
    %v1535 = vpop.permute.xlu0 %1534
    %v1538 = vsel %vm202, %v1533, 0
    %1540 = vmatpush.bf16.msra.mxu0 0
    %1541 = vmatpush.bf16.msra.mxu0 0
    %1542 = vmatpush.bf16.msra.mxu0 0
    %1543 = vmatpush.bf16.msra.mxu0 0
    %1544 = vmatpush.bf16.msra.mxu0 0
    %1545 = vmatpush.bf16.msra.mxu0 0
    %1546 = vmatpush.bf16.msra.mxu0 0
    %1547 = vmatpush.bf16.msra.mxu0 %v1535
    %1548 = vmatmul.bf16.gmra.mxu0 %v1538
    %v1549 = vpop.f32.mrf.mxu0
    %v1550 = vadd.f32 0.0, %v1549
    %v1551 = vpop.f32.mrf.mxu0
    %v1552 = vadd.f32 0.0, %v1551
    %1553 = vdwg.mxu0
    %1556 = vrot.lane.b32.xlu0 %v1408, 8
    %v1557 = vpop.permute.xlu0 %1556
    %1558 = vrot.lane.b32.xlu0 %v1410, 8
    %v1559 = vpop.permute.xlu0 %1558
    %1564 = vrot.lane.b32.xlu0 %v1479, 16
    %v1565 = vpop.permute.xlu0 %1564
    %1566 = vrot.lane.b32.xlu0 %v1481, 16
    %v1567 = vpop.permute.xlu0 %1566
    %1572 = vrot.lane.b32.xlu0 %v1550, 24
    %v1573 = vpop.permute.xlu0 %1572
    %1574 = vrot.lane.b32.xlu0 %v1552, 24
    %v1575 = vpop.permute.xlu0 %1574
    %v1578 = vsel %vm177, %v1337, %v1557
    %v1579 = vsel %vm177, %v1339, %v1559
    %v1580 = vsel %vm202, %v1578, %v1565
    %v1581 = vsel %vm202, %v1579, %v1567
    %v1582 = vsel %vm487, %v1580, %v1573
    %v1583 = vsel %vm487, %v1581, %v1575
    %v1584 = vpack.c.bf16 %v1583, %v1582
    %v1585 = vperm.slane %v1232, 0
    %1586 = vrot.lane.b32.xlu0 %v1241, 32
    %v1587 = vpop.permute.xlu0 %1586
    %1588 = vrot.lane.b32.xlu0 %v1242, 32
    %v1589 = vpop.permute.xlu0 %1588
    %v1593 = vsel %vm147, %v1584, 0
    %1595 = vmatpush.bf16.msra.mxu0 0
    %1596 = vmatpush.bf16.msra.mxu0 0
    %1597 = vmatpush.bf16.msra.mxu0 0
    %1598 = vmatpush.bf16.msra.mxu0 0
    %1599 = vmatpush.bf16.msra.mxu0 0
    %1600 = vmatpush.bf16.msra.mxu0 0
    %1601 = vmatpush.bf16.msra.mxu0 %v1589
    %1602 = vmatpush.bf16.msra.mxu0 %v1587
    %1603 = vmatmul.bf16.gmra.mxu0 %v1593
    %v1604 = vpop.f32.mrf.mxu0
    %v1605 = vadd.f32 %v1585, %v1604
    %v1606 = vpop.f32.mrf.mxu0
    %v1607 = vadd.f32 %v1585, %v1606
    %1608 = vdwg.mxu0
    %v1609 = vadd.f32 %v1605, %v1224
    %v1610 = vadd.f32 %v1607, %v1225
    %v1611 = vld [vmem:[#allocation11 + $0x10] sm:$0x1]
    %v1612 = vld [vmem:[#allocation11 + $0x11] sm:$0x1]
    %v1613 = vsel %vm147, %v1609, 0.0
    %1614 = vadd.xlane.f32.xlu0 %v1613
    %v1615 = vpop.xlane.xlu0 %1614
    %v1616 = vsel %vm147, %v1610, 0.0
    %1617 = vadd.xlane.f32.xlu0 %v1616
    %v1618 = vpop.xlane.xlu0 %1617
    %v1619 = vmul.f32 %v1615, %v531
    %v1620 = vmul.f32 %v1618, %v531
    %v1621 = vmul.f32 %v1609, %v1609
    %v1622 = vmul.f32 %v1610, %v1610
    %v1623 = vsel %vm147, %v1621, 0.0
    %1624 = vadd.xlane.f32.xlu0 %v1623
    %v1625 = vpop.xlane.xlu0 %1624
    %v1626 = vsel %vm147, %v1622, 0.0
    %1627 = vadd.xlane.f32.xlu0 %v1626
    %v1628 = vpop.xlane.xlu0 %1627
    %v1629 = vmul.f32 %v1625, %v531
    %v1630 = vmul.f32 %v1628, %v531
    %v1631 = vmul.f32 %v1619, %v1619
    %v1632 = vmul.f32 %v1620, %v1620
    %v1633 = vsub.f32 %v1629, %v1631
    %v1634 = vsub.f32 %v1630, %v1632
    %v1635 = vsub.f32 %v1609, %v1619
    %v1636 = vsub.f32 %v1610, %v1620
    %v1637 = vadd.f32 %v1633, 1e-05
    %v1638 = vadd.f32 %v1634, 1e-05
    %v1639 = vrsqrt.pop %v1637
    %v1640 = vmul.f32 %v1639, %v1637
    %v1641 = vmul.f32 %v1640, %v1639
    %v1642 = vmul.f32 0.5, %v1641
    %v1643 = vsub.f32 1.5, %v1642
    %v1644 = vmul.f32 %v1639, %v1643
    %vm1645 = vweird.f32 %v1637
    %vm1646 = vweird.f32 %v1639
    %vm1647 = vmor %vm1645, %vm1646
    %v1648 = vsel %vm1647, %v1639, %v1644
    %v1649 = vrsqrt.pop %v1638
    %v1650 = vmul.f32 %v1649, %v1638
    %v1651 = vmul.f32 %v1650, %v1649
    %v1652 = vmul.f32 0.5, %v1651
    %v1653 = vsub.f32 1.5, %v1652
    %v1654 = vmul.f32 %v1649, %v1653
    %vm1655 = vweird.f32 %v1638
    %vm1656 = vweird.f32 %v1649
    %vm1657 = vmor %vm1655, %vm1656
    %v1658 = vsel %vm1657, %v1649, %v1654
    %v1659 = vmul.f32 %v1635, %v1648
    %v1660 = vmul.f32 %v1636, %v1658
    %v1661 = vperm.slane %v1611, 0
    %v1662 = vmul.f32 %v1659, %v1661
    %v1663 = vmul.f32 %v1660, %v1661
    %v1664 = vperm.slane %v1612, 0
    %v1665 = vadd.f32 %v1662, %v1664
    %v1666 = vadd.f32 %v1663, %v1664
    %v1667 = vpack.c.bf16 %v1666, %v1665
    %v1668 = vld [vmem:[#allocation10 + $0x30] sm:$0xf]
    %v1669 = vld [vmem:[#allocation10 + $0x34] sm:$0xf]
    %v1670 = vld [vmem:[#allocation10 + $0x38] sm:$0xf]
    %v1671 = vld [vmem:[#allocation10 + $0x3c] sm:$0xf]
    %v1672 = vld [vmem:[#allocation11 + $0xe] sm:$0x1]
    %v1673 = vld [vmem:[#allocation11 + $0xf] sm:$0x1]
    %v1678 = vunpack.c.l.b16 %v1668
    %v1679 = vunpack.c.l.b16 %v1669
    %v1680 = vunpack.c.l.b16 %v1670
    %v1681 = vunpack.c.l.b16 %v1671
    %v1682 = vpack.c.b16 %v1679, %v1678
    %v1683 = vpack.c.b16 %v1681, %v1680
    %1686 = vmatpush.bf16.msra.mxu0 0
    %1687 = vmatpush.bf16.msra.mxu0 0
    %1688 = vmatpush.bf16.msra.mxu0 0
    %1689 = vmatpush.bf16.msra.mxu0 0
    %1690 = vmatpush.bf16.msra.mxu0 0
    %1691 = vmatpush.bf16.msra.mxu0 0
    %1692 = vmatpush.bf16.msra.mxu0 %v1683
    %1693 = vmatpush.bf16.msra.mxu0 %v1682
    %1694 = vmatmul.bf16.gmra.mxu0 %v600
    %v1695 = vpop.f32.mrf.mxu0
    %v1696 = vadd.f32 0.0, %v1695
    %v1697 = vpop.f32.mrf.mxu0
    %v1698 = vadd.f32 0.0, %v1697
    %1699 = vdwg.mxu0
    %v1700 = vperm.slane %v1672, 0
    %v1701 = vadd.f32 %v1696, %v1700
    %v1702 = vadd.f32 %v1698, %v1700
    %v1704 = vsel %vm147, %v1667, 0
    %1706 = vmatpush.bf16.msra.mxu0 0
    %1707 = vmatpush.bf16.msra.mxu0 0
    %1708 = vmatpush.bf16.msra.mxu0 0
    %1709 = vmatpush.bf16.msra.mxu0 0
    %1710 = vmatpush.bf16.msra.mxu0 0
    %1711 = vmatpush.bf16.msra.mxu0 0
    %1712 = vmatpush.bf16.msra.mxu0 %v1683
    %1713 = vmatpush.bf16.msra.mxu0 %v1682
    %1714 = vmatmul.bf16.gmra.mxu0 %v1704
    %v1715 = vpop.f32.mrf.mxu0
    %v1716 = vadd.f32 0.0, %v1715
    %v1717 = vpop.f32.mrf.mxu0
    %v1718 = vadd.f32 0.0, %v1717
    %1719 = vdwg.mxu0
    %v1720 = vadd.f32 %v1716, %v1700
    %v1721 = vadd.f32 %v1718, %v1700
    %v1722 = vpack.c.bf16 %v1720, %v1720
    %v1723 = vpack.c.bf16 %v1721, %v1721
    %v1724 = vpack.c.bf16 %v1701, %v1701
    %v1725 = vpack.c.bf16 %v1702, %v1702
    %v1728 = vunpack.c.l.b16 %v1722
    %v1729 = vunpack.c.l.b16 %v1723
    %v1730 = vpack.c.b16 %v1729, %v1728
    %v1733 = vunpack.c.l.b16 %v1724
    %v1734 = vunpack.c.l.b16 %v1725
    %v1735 = vpack.c.b16 %v1734, %v1733
    %1736 = vrot.lane.b32.xlu0 %v1735, 96
    %v1737 = vpop.permute.xlu0 %1736
    %v1739 = vsel %vm177, %v1730, 0
    %v1742 = vsel %vm177, %v1737, 0
    %1744 = vmatpush.bf16.xpose.msra.mxu0 0
    %1745 = vmatpush.bf16.xpose.msra.mxu0 0
    %1746 = vmatpush.bf16.xpose.msra.mxu0 0
    %1747 = vmatpush.bf16.xpose.msra.mxu0 0
    %1748 = vmatpush.bf16.xpose.msra.mxu0 0
    %1749 = vmatpush.bf16.xpose.msra.mxu0 0
    %1750 = vmatpush.bf16.xpose.msra.mxu0 0
    %1751 = vmatpush.bf16.xpose.msra.mxu0 %v1742
    %1752 = vmatmul.bf16.gmra.mxu0 %v1739
    %v1753 = vpop.f32.mrf.mxu0
    %v1754 = vadd.f32 0.0, %v1753
    %v1755 = vpop.f32.mrf.mxu0
    %v1756 = vadd.f32 0.0, %v1755
    %1757 = vdwg.mxu0
    %v1758 = vmul.f32 %v1754, 0.35355338
    %v1759 = vmul.f32 %v1756, 0.35355338
    %v1760 = vadd.f32 %v1758, %v126
    %v1761 = vadd.f32 %v1759, %v127
    %v1762 = vsel %vm202, %v1760, -inf
    %1763 = vmax.xlane.f32.xlu0 %v1762
    %v1764 = vpop.xlane.xlu0 %1763
    %v1765 = vsel %vm202, %v1761, -inf
    %1766 = vmax.xlane.f32.xlu0 %v1765
    %v1767 = vpop.xlane.xlu0 %1766
    %v1768 = vsub.f32 %v1760, %v1764
    %v1769 = vsub.f32 %v1761, %v1767
    %v1770 = vmul.f32 %v1768, 1.442695
    %v1771 = vpow.pop %v1770
    %v1772 = vmul.f32 %v1769, 1.442695
    %v1773 = vpow.pop %v1772
    %v1774 = vsel %vm202, %v1771, 0.0
    %1775 = vadd.xlane.f32.xlu0 %v1774
    %v1776 = vpop.xlane.xlu0 %1775
    %v1777 = vsel %vm202, %v1773, 0.0
    %1778 = vadd.xlane.f32.xlu0 %v1777
    %v1779 = vpop.xlane.xlu0 %1778
    %v1780 = vrcp.pop %v1776
    %v1781 = vrcp.pop %v1779
    %v1782 = vmul.f32 %v1771, %v1780
    %v1783 = vmul.f32 %v1773, %v1781
    %v1784 = vpack.c.bf16 %v1783, %v1782
    %1785 = vrot.lane.b32.xlu0 %v1735, 64
    %v1786 = vpop.permute.xlu0 %1785
    %v1789 = vsel %vm202, %v1784, 0
    %1791 = vmatpush.bf16.msra.mxu0 0
    %1792 = vmatpush.bf16.msra.mxu0 0
    %1793 = vmatpush.bf16.msra.mxu0 0
    %1794 = vmatpush.bf16.msra.mxu0 0
    %1795 = vmatpush.bf16.msra.mxu0 0
    %1796 = vmatpush.bf16.msra.mxu0 0
    %1797 = vmatpush.bf16.msra.mxu0 0
    %1798 = vmatpush.bf16.msra.mxu0 %v1786
    %1799 = vmatmul.bf16.gmra.mxu0 %v1789
    %v1800 = vpop.f32.mrf.mxu0
    %v1801 = vadd.f32 0.0, %v1800
    %v1802 = vpop.f32.mrf.mxu0
    %v1803 = vadd.f32 0.0, %v1802
    %1804 = vdwg.mxu0
    %1805 = vrot.lane.b32.xlu0 %v1730, 120
    %v1806 = vpop.permute.xlu0 %1805
    %1807 = vrot.lane.b32.xlu0 %v1735, 88
    %v1808 = vpop.permute.xlu0 %1807
    %v1810 = vsel %vm177, %v1806, 0
    %v1813 = vsel %vm177, %v1808, 0
    %1815 = vmatpush.bf16.xpose.msra.mxu0 0
    %1816 = vmatpush.bf16.xpose.msra.mxu0 0
    %1817 = vmatpush.bf16.xpose.msra.mxu0 0
    %1818 = vmatpush.bf16.xpose.msra.mxu0 0
    %1819 = vmatpush.bf16.xpose.msra.mxu0 0
    %1820 = vmatpush.bf16.xpose.msra.mxu0 0
    %1821 = vmatpush.bf16.xpose.msra.mxu0 0
    %1822 = vmatpush.bf16.xpose.msra.mxu0 %v1813
    %1823 = vmatmul.bf16.gmra.mxu0 %v1810
    %v1824 = vpop.f32.mrf.mxu0
    %v1825 = vadd.f32 0.0, %v1824
    %v1826 = vpop.f32.mrf.mxu0
    %v1827 = vadd.f32 0.0, %v1826
    %1828 = vdwg.mxu0
    %v1829 = vmul.f32 %v1825, 0.35355338
    %v1830 = vmul.f32 %v1827, 0.35355338
    %v1831 = vadd.f32 %v1829, %v126
    %v1832 = vadd.f32 %v1830, %v127
    %v1833 = vsel %vm202, %v1831, -inf
    %1834 = vmax.xlane.f32.xlu0 %v1833
    %v1835 = vpop.xlane.xlu0 %1834
    %v1836 = vsel %vm202, %v1832, -inf
    %1837 = vmax.xlane.f32.xlu0 %v1836
    %v1838 = vpop.xlane.xlu0 %1837
    %v1839 = vsub.f32 %v1831, %v1835
    %v1840 = vsub.f32 %v1832, %v1838
    %v1841 = vmul.f32 %v1839, 1.442695
    %v1842 = vpow.pop %v1841
    %v1843 = vmul.f32 %v1840, 1.442695
    %v1844 = vpow.pop %v1843
    %v1845 = vsel %vm202, %v1842, 0.0
    %1846 = vadd.xlane.f32.xlu0 %v1845
    %v1847 = vpop.xlane.xlu0 %1846
    %v1848 = vsel %vm202, %v1844, 0.0
    %1849 = vadd.xlane.f32.xlu0 %v1848
    %v1850 = vpop.xlane.xlu0 %1849
    %v1851 = vrcp.pop %v1847
    %v1852 = vrcp.pop %v1850
    %v1853 = vmul.f32 %v1842, %v1851
    %v1854 = vmul.f32 %v1844, %v1852
    %v1855 = vpack.c.bf16 %v1854, %v1853
    %1856 = vrot.lane.b32.xlu0 %v1735, 56
    %v1857 = vpop.permute.xlu0 %1856
    %v1860 = vsel %vm202, %v1855, 0
    %1862 = vmatpush.bf16.msra.mxu0 0
    %1863 = vmatpush.bf16.msra.mxu0 0
    %1864 = vmatpush.bf16.msra.mxu0 0
    %1865 = vmatpush.bf16.msra.mxu0 0
    %1866 = vmatpush.bf16.msra.mxu0 0
    %1867 = vmatpush.bf16.msra.mxu0 0
    %1868 = vmatpush.bf16.msra.mxu0 0
    %1869 = vmatpush.bf16.msra.mxu0 %v1857
    %1870 = vmatmul.bf16.gmra.mxu0 %v1860
    %v1871 = vpop.f32.mrf.mxu0
    %v1872 = vadd.f32 0.0, %v1871
    %v1873 = vpop.f32.mrf.mxu0
    %v1874 = vadd.f32 0.0, %v1873
    %1875 = vdwg.mxu0
    %1876 = vrot.lane.b32.xlu0 %v1730, 112
    %v1877 = vpop.permute.xlu0 %1876
    %1878 = vrot.lane.b32.xlu0 %v1735, 80
    %v1879 = vpop.permute.xlu0 %1878
    %v1881 = vsel %vm177, %v1877, 0
    %v1884 = vsel %vm177, %v1879, 0
    %1886 = vmatpush.bf16.xpose.msra.mxu0 0
    %1887 = vmatpush.bf16.xpose.msra.mxu0 0
    %1888 = vmatpush.bf16.xpose.msra.mxu0 0
    %1889 = vmatpush.bf16.xpose.msra.mxu0 0
    %1890 = vmatpush.bf16.xpose.msra.mxu0 0
    %1891 = vmatpush.bf16.xpose.msra.mxu0 0
    %1892 = vmatpush.bf16.xpose.msra.mxu0 0
    %1893 = vmatpush.bf16.xpose.msra.mxu0 %v1884
    %1894 = vmatmul.bf16.gmra.mxu0 %v1881
    %v1895 = vpop.f32.mrf.mxu0
    %v1896 = vadd.f32 0.0, %v1895
    %v1897 = vpop.f32.mrf.mxu0
    %v1898 = vadd.f32 0.0, %v1897
    %1899 = vdwg.mxu0
    %v1900 = vmul.f32 %v1896, 0.35355338
    %v1901 = vmul.f32 %v1898, 0.35355338
    %v1902 = vadd.f32 %v1900, %v126
    %v1903 = vadd.f32 %v1901, %v127
    %v1904 = vsel %vm202, %v1902, -inf
    %1905 = vmax.xlane.f32.xlu0 %v1904
    %v1906 = vpop.xlane.xlu0 %1905
    %v1907 = vsel %vm202, %v1903, -inf
    %1908 = vmax.xlane.f32.xlu0 %v1907
    %v1909 = vpop.xlane.xlu0 %1908
    %v1910 = vsub.f32 %v1902, %v1906
    %v1911 = vsub.f32 %v1903, %v1909
    %v1912 = vmul.f32 %v1910, 1.442695
    %v1913 = vpow.pop %v1912
    %v1914 = vmul.f32 %v1911, 1.442695
    %v1915 = vpow.pop %v1914
    %v1916 = vsel %vm202, %v1913, 0.0
    %1917 = vadd.xlane.f32.xlu0 %v1916
    %v1918 = vpop.xlane.xlu0 %1917
    %v1919 = vsel %vm202, %v1915, 0.0
    %1920 = vadd.xlane.f32.xlu0 %v1919
    %v1921 = vpop.xlane.xlu0 %1920
    %v1922 = vrcp.pop %v1918
    %v1923 = vrcp.pop %v1921
    %v1924 = vmul.f32 %v1913, %v1922
    %v1925 = vmul.f32 %v1915, %v1923
    %v1926 = vpack.c.bf16 %v1925, %v1924
    %1927 = vrot.lane.b32.xlu0 %v1735, 48
    %v1928 = vpop.permute.xlu0 %1927
    %v1931 = vsel %vm202, %v1926, 0
    %1933 = vmatpush.bf16.msra.mxu0 0
    %1934 = vmatpush.bf16.msra.mxu0 0
    %1935 = vmatpush.bf16.msra.mxu0 0
    %1936 = vmatpush.bf16.msra.mxu0 0
    %1937 = vmatpush.bf16.msra.mxu0 0
    %1938 = vmatpush.bf16.msra.mxu0 0
    %1939 = vmatpush.bf16.msra.mxu0 0
    %1940 = vmatpush.bf16.msra.mxu0 %v1928
    %1941 = vmatmul.bf16.gmra.mxu0 %v1931
    %v1942 = vpop.f32.mrf.mxu0
    %v1943 = vadd.f32 0.0, %v1942
    %v1944 = vpop.f32.mrf.mxu0
    %v1945 = vadd.f32 0.0, %v1944
    %1946 = vdwg.mxu0
    %1947 = vrot.lane.b32.xlu0 %v1730, 104
    %v1948 = vpop.permute.xlu0 %1947
    %1949 = vrot.lane.b32.xlu0 %v1735, 72
    %v1950 = vpop.permute.xlu0 %1949
    %v1952 = vsel %vm177, %v1948, 0
    %v1955 = vsel %vm177, %v1950, 0
    %1957 = vmatpush.bf16.xpose.msra.mxu0 0
    %1958 = vmatpush.bf16.xpose.msra.mxu0 0
    %1959 = vmatpush.bf16.xpose.msra.mxu0 0
    %1960 = vmatpush.bf16.xpose.msra.mxu0 0
    %1961 = vmatpush.bf16.xpose.msra.mxu0 0
    %1962 = vmatpush.bf16.xpose.msra.mxu0 0
    %1963 = vmatpush.bf16.xpose.msra.mxu0 0
    %1964 = vmatpush.bf16.xpose.msra.mxu0 %v1955
    %1965 = vmatmul.bf16.gmra.mxu0 %v1952
    %v1966 = vpop.f32.mrf.mxu0
    %v1967 = vadd.f32 0.0, %v1966
    %v1968 = vpop.f32.mrf.mxu0
    %v1969 = vadd.f32 0.0, %v1968
    %1970 = vdwg.mxu0
    %v1971 = vmul.f32 %v1967, 0.35355338
    %v1972 = vmul.f32 %v1969, 0.35355338
    %v1973 = vadd.f32 %v1971, %v126
    %v1974 = vadd.f32 %v1972, %v127
    %v1975 = vsel %vm202, %v1973, -inf
    %1976 = vmax.xlane.f32.xlu0 %v1975
    %v1977 = vpop.xlane.xlu0 %1976
    %v1978 = vsel %vm202, %v1974, -inf
    %1979 = vmax.xlane.f32.xlu0 %v1978
    %v1980 = vpop.xlane.xlu0 %1979
    %v1981 = vsub.f32 %v1973, %v1977
    %v1982 = vsub.f32 %v1974, %v1980
    %v1983 = vmul.f32 %v1981, 1.442695
    %v1984 = vpow.pop %v1983
    %v1985 = vmul.f32 %v1982, 1.442695
    %v1986 = vpow.pop %v1985
    %v1987 = vsel %vm202, %v1984, 0.0
    %1988 = vadd.xlane.f32.xlu0 %v1987
    %v1989 = vpop.xlane.xlu0 %1988
    %v1990 = vsel %vm202, %v1986, 0.0
    %1991 = vadd.xlane.f32.xlu0 %v1990
    %v1992 = vpop.xlane.xlu0 %1991
    %v1993 = vrcp.pop %v1989
    %v1994 = vrcp.pop %v1992
    %v1995 = vmul.f32 %v1984, %v1993
    %v1996 = vmul.f32 %v1986, %v1994
    %v1997 = vpack.c.bf16 %v1996, %v1995
    %1998 = vrot.lane.b32.xlu0 %v1735, 40
    %v1999 = vpop.permute.xlu0 %1998
    %v2002 = vsel %vm202, %v1997, 0
    %2004 = vmatpush.bf16.msra.mxu0 0
    %2005 = vmatpush.bf16.msra.mxu0 0
    %2006 = vmatpush.bf16.msra.mxu0 0
    %2007 = vmatpush.bf16.msra.mxu0 0
    %2008 = vmatpush.bf16.msra.mxu0 0
    %2009 = vmatpush.bf16.msra.mxu0 0
    %2010 = vmatpush.bf16.msra.mxu0 0
    %2011 = vmatpush.bf16.msra.mxu0 %v1999
    %2012 = vmatmul.bf16.gmra.mxu0 %v2002
    %v2013 = vpop.f32.mrf.mxu0
    %v2014 = vadd.f32 0.0, %v2013
    %v2015 = vpop.f32.mrf.mxu0
    %v2016 = vadd.f32 0.0, %v2015
    %2017 = vdwg.mxu0
    %2020 = vrot.lane.b32.xlu0 %v1872, 8
    %v2021 = vpop.permute.xlu0 %2020
    %2022 = vrot.lane.b32.xlu0 %v1874, 8
    %v2023 = vpop.permute.xlu0 %2022
    %2028 = vrot.lane.b32.xlu0 %v1943, 16
    %v2029 = vpop.permute.xlu0 %2028
    %2030 = vrot.lane.b32.xlu0 %v1945, 16
    %v2031 = vpop.permute.xlu0 %2030
    %2036 = vrot.lane.b32.xlu0 %v2014, 24
    %v2037 = vpop.permute.xlu0 %2036
    %2038 = vrot.lane.b32.xlu0 %v2016, 24
    %v2039 = vpop.permute.xlu0 %2038
    %v2042 = vsel %vm177, %v1801, %v2021
    %v2043 = vsel %vm177, %v1803, %v2023
    %v2044 = vsel %vm202, %v2042, %v2029
    %v2045 = vsel %vm202, %v2043, %v2031
    %v2046 = vsel %vm487, %v2044, %v2037
    %v2047 = vsel %vm487, %v2045, %v2039
    %v2048 = vpack.c.bf16 %v2047, %v2046
    %v2049 = vperm.slane %v1673, 0
    %2050 = vrot.lane.b32.xlu0 %v1682, 32
    %v2051 = vpop.permute.xlu0 %2050
    %2052 = vrot.lane.b32.xlu0 %v1683, 32
    %v2053 = vpop.permute.xlu0 %2052
    %v2057 = vsel %vm147, %v2048, 0
    %2059 = vmatpush.bf16.msra.mxu0 0
    %2060 = vmatpush.bf16.msra.mxu0 0
    %2061 = vmatpush.bf16.msra.mxu0 0
    %2062 = vmatpush.bf16.msra.mxu0 0
    %2063 = vmatpush.bf16.msra.mxu0 0
    %2064 = vmatpush.bf16.msra.mxu0 0
    %2065 = vmatpush.bf16.msra.mxu0 %v2053
    %2066 = vmatpush.bf16.msra.mxu0 %v2051
    %2067 = vmatmul.bf16.gmra.mxu0 %v2057
    %v2068 = vpop.f32.mrf.mxu0
    %v2069 = vadd.f32 %v2049, %v2068
    %v2070 = vpop.f32.mrf.mxu0
    %v2071 = vadd.f32 %v2049, %v2070
    %2072 = vdwg.mxu0
    %v2073 = vadd.f32 %v2069, %v1665
    %v2074 = vadd.f32 %v2071, %v1666
    %v2075 = vld [vmem:[#allocation11 + $0x12] sm:$0x1]
    %v2076 = vld [vmem:[#allocation11 + $0x13] sm:$0x1]
    %v2077 = vsel %vm147, %v2073, 0.0
    %2078 = vadd.xlane.f32.xlu0 %v2077
    %v2079 = vpop.xlane.xlu0 %2078
    %v2080 = vsel %vm147, %v2074, 0.0
    %2081 = vadd.xlane.f32.xlu0 %v2080
    %v2082 = vpop.xlane.xlu0 %2081
    %v2083 = vmul.f32 %v2079, %v531
    %v2084 = vmul.f32 %v2082, %v531
    %v2085 = vmul.f32 %v2073, %v2073
    %v2086 = vmul.f32 %v2074, %v2074
    %v2087 = vsel %vm147, %v2085, 0.0
    %2088 = vadd.xlane.f32.xlu0 %v2087
    %v2089 = vpop.xlane.xlu0 %2088
    %v2090 = vsel %vm147, %v2086, 0.0
    %2091 = vadd.xlane.f32.xlu0 %v2090
    %v2092 = vpop.xlane.xlu0 %2091
    %v2093 = vmul.f32 %v2089, %v531
    %v2094 = vmul.f32 %v2092, %v531
    %v2095 = vmul.f32 %v2083, %v2083
    %v2096 = vmul.f32 %v2084, %v2084
    %v2097 = vsub.f32 %v2093, %v2095
    %v2098 = vsub.f32 %v2094, %v2096
    %v2099 = vsub.f32 %v2073, %v2083
    %v2100 = vsub.f32 %v2074, %v2084
    %v2101 = vadd.f32 %v2097, 1e-05
    %v2102 = vadd.f32 %v2098, 1e-05
    %v2103 = vrsqrt.pop %v2101
    %v2104 = vmul.f32 %v2103, %v2101
    %v2105 = vmul.f32 %v2104, %v2103
    %v2106 = vmul.f32 0.5, %v2105
    %v2107 = vsub.f32 1.5, %v2106
    %v2108 = vmul.f32 %v2103, %v2107
    %vm2109 = vweird.f32 %v2101
    %vm2110 = vweird.f32 %v2103
    %vm2111 = vmor %vm2109, %vm2110
    %v2112 = vsel %vm2111, %v2103, %v2108
    %v2113 = vrsqrt.pop %v2102
    %v2114 = vmul.f32 %v2113, %v2102
    %v2115 = vmul.f32 %v2114, %v2113
    %v2116 = vmul.f32 0.5, %v2115
    %v2117 = vsub.f32 1.5, %v2116
    %v2118 = vmul.f32 %v2113, %v2117
    %vm2119 = vweird.f32 %v2102
    %vm2120 = vweird.f32 %v2113
    %vm2121 = vmor %vm2119, %vm2120
    %v2122 = vsel %vm2121, %v2113, %v2118
    %v2123 = vmul.f32 %v2099, %v2112
    %v2124 = vmul.f32 %v2100, %v2122
    %v2125 = vperm.slane %v2075, 0
    %v2126 = vmul.f32 %v2123, %v2125
    %v2127 = vmul.f32 %v2124, %v2125
    %v2128 = vperm.slane %v2076, 0
    %v2129 = vadd.f32 %v2126, %v2128
    %v2130 = vadd.f32 %v2127, %v2128
    %v2131 = vld [vmem:[#allocation10 + $0x50] sm:$0xf]
    %v2132 = vld [vmem:[#allocation10 + $0x54] sm:$0xf]
    %v2133 = vld [vmem:[#allocation10 + $0x58] sm:$0xf]
    %v2134 = vld [vmem:[#allocation10 + $0x5c] sm:$0xf]
    %v2135 = vld [vmem:[#allocation10 + $0xa0] sm:$0xf]
    %v2136 = vld [vmem:[#allocation10 + $0xa4] sm:$0xf]
    %v2137 = vld [vmem:[#allocation10 + $0xa8] sm:$0xf]
    %v2138 = vld [vmem:[#allocation10 + $0xac] sm:$0xf]
    %v2139 = vld [vmem:[#allocation10 + $0xb0] sm:$0xf]
    %v2140 = vld [vmem:[#allocation10 + $0xb4] sm:$0xf]
    %v2141 = vld [vmem:[#allocation10 + $0xb8] sm:$0xf]
    %v2142 = vld [vmem:[#allocation10 + $0xbc] sm:$0xf]
    %v2143 = vld [vmem:[#allocation10 + $0xc0] sm:$0xf]
    %v2144 = vld [vmem:[#allocation10 + $0xc4] sm:$0xf]
    %v2145 = vld [vmem:[#allocation10 + $0xc8] sm:$0xf]
    %v2146 = vld [vmem:[#allocation10 + $0xcc] sm:$0xf]
    %v2147 = vld [vmem:[#allocation10 + $0xd0] sm:$0xf]
    %v2148 = vld [vmem:[#allocation10 + $0xd4] sm:$0xf]
    %v2149 = vld [vmem:[#allocation10 + $0xd8] sm:$0xf]
    %v2150 = vld [vmem:[#allocation10 + $0xdc] sm:$0xf]
    %v2151 = vpack.c.bf16 %v2130, %v2129
    %v2152 = vld [vmem:[#allocation11 + $0x16] sm:$0x1]
    %v2153 = vld [vmem:[#allocation11 + $0x17] sm:$0x1]
    %v2154 = vperm.slane %v2152, 0
    %v2159 = vunpack.c.l.b16 %v2131
    %v2160 = vunpack.c.l.b16 %v2132
    %v2161 = vunpack.c.l.b16 %v2133
    %v2162 = vunpack.c.l.b16 %v2134
    %v2163 = vpack.c.b16 %v2160, %v2159
    %v2164 = vpack.c.b16 %v2162, %v2161
    %v2168 = vsel %vm147, %v2151, 0
    %2170 = vmatpush.bf16.msra.mxu0 0
    %2171 = vmatpush.bf16.msra.mxu0 0
    %2172 = vmatpush.bf16.msra.mxu0 0
    %2173 = vmatpush.bf16.msra.mxu0 0
    %2174 = vmatpush.bf16.msra.mxu0 0
    %2175 = vmatpush.bf16.msra.mxu0 0
    %2176 = vmatpush.bf16.msra.mxu0 %v2164
    %2177 = vmatpush.bf16.msra.mxu0 %v2163
    %2178 = vmatmul.bf16.gmra.mxu0 %v2168
    %v2179 = vpop.f32.mrf.mxu0
    %v2180 = vadd.f32 %v2154, %v2179
    %v2181 = vpop.f32.mrf.mxu0
    %v2182 = vadd.f32 %v2154, %v2181
    %2183 = vdwg.mxu0
    %v2184 = vmax.f32 %v2180, 0.0
    %v2185 = vmax.f32 %v2182, 0.0
    %v2186 = vpack.c.bf16 %v2185, %v2184
    %v2203 = vunpack.c.l.b16 %v2135
    %v2204 = vunpack.c.l.b16 %v2136
    %v2205 = vunpack.c.l.b16 %v2137
    %v2206 = vunpack.c.l.b16 %v2138
    %v2207 = vunpack.c.l.b16 %v2139
    %v2208 = vunpack.c.l.b16 %v2140
    %v2209 = vunpack.c.l.b16 %v2141
    %v2210 = vunpack.c.l.b16 %v2142
    %v2211 = vunpack.c.l.b16 %v2143
    %v2212 = vunpack.c.l.b16 %v2144
    %v2213 = vunpack.c.l.b16 %v2145
    %v2214 = vunpack.c.l.b16 %v2146
    %v2215 = vunpack.c.l.b16 %v2147
    %v2216 = vunpack.c.l.b16 %v2148
    %v2217 = vunpack.c.l.b16 %v2149
    %v2218 = vunpack.c.l.b16 %v2150
    %v2219 = vpack.c.b16 %v2204, %v2203
    %v2220 = vpack.c.b16 %v2206, %v2205
    %v2221 = vpack.c.b16 %v2208, %v2207
    %v2222 = vpack.c.b16 %v2210, %v2209
    %v2223 = vpack.c.b16 %v2212, %v2211
    %v2224 = vpack.c.b16 %v2214, %v2213
    %v2225 = vpack.c.b16 %v2216, %v2215
    %v2226 = vpack.c.b16 %v2218, %v2217
    %2235 = vmatpush.bf16.msra.mxu0 %v2226
    %2236 = vmatpush.bf16.msra.mxu0 %v2225
    %2237 = vmatpush.bf16.msra.mxu0 %v2224
    %2238 = vmatpush.bf16.msra.mxu0 %v2223
    %2239 = vmatpush.bf16.msra.mxu0 %v2222
    %2240 = vmatpush.bf16.msra.mxu0 %v2221
    %2241 = vmatpush.bf16.msra.mxu0 %v2220
    %2242 = vmatpush.bf16.msra.mxu0 %v2219
    %2243 = vmatmul.bf16.gmra.mxu0 %v2186
    %v2244 = vpop.f32.mrf.mxu0
    %v2245 = vadd.f32 0.0, %v2244
    %v2246 = vpop.f32.mrf.mxu0
    %v2247 = vadd.f32 0.0, %v2246
    %2248 = vdwg.mxu0
    %v2249 = vperm.slane %v2153, 0
    %v2250 = vadd.f32 %v2245, %v2249
    %v2251 = vadd.f32 %v2247, %v2249
    %v2252 = vadd.f32 %v2250, %v2129
    %v2253 = vadd.f32 %v2251, %v2130
    %v2254 = vld [vmem:[#allocation11 + $0x14] sm:$0x1]
    %v2255 = vld [vmem:[#allocation11 + $0x15] sm:$0x1]
    %v2256 = vsel %vm147, %v2252, 0.0
    %2257 = vadd.xlane.f32.xlu0 %v2256
    %v2258 = vpop.xlane.xlu0 %2257
    %v2259 = vsel %vm147, %v2253, 0.0
    %2260 = vadd.xlane.f32.xlu0 %v2259
    %v2261 = vpop.xlane.xlu0 %2260
    %v2262 = vmul.f32 %v2258, %v531
    %v2263 = vmul.f32 %v2261, %v531
    %v2264 = vmul.f32 %v2252, %v2252
    %v2265 = vmul.f32 %v2253, %v2253
    %v2266 = vsel %vm147, %v2264, 0.0
    %2267 = vadd.xlane.f32.xlu0 %v2266
    %v2268 = vpop.xlane.xlu0 %2267
    %v2269 = vsel %vm147, %v2265, 0.0
    %2270 = vadd.xlane.f32.xlu0 %v2269
    %v2271 = vpop.xlane.xlu0 %2270
    %v2272 = vmul.f32 %v2268, %v531
    %v2273 = vmul.f32 %v2271, %v531
    %v2274 = vmul.f32 %v2262, %v2262
    %v2275 = vmul.f32 %v2263, %v2263
    %v2276 = vsub.f32 %v2272, %v2274
    %v2277 = vsub.f32 %v2273, %v2275
    %v2278 = vsub.f32 %v2252, %v2262
    %v2279 = vsub.f32 %v2253, %v2263
    %v2280 = vadd.f32 %v2276, 1e-05
    %v2281 = vadd.f32 %v2277, 1e-05
    %v2282 = vrsqrt.pop %v2280
    %v2283 = vmul.f32 %v2282, %v2280
    %v2284 = vmul.f32 %v2283, %v2282
    %v2285 = vmul.f32 0.5, %v2284
    %v2286 = vsub.f32 1.5, %v2285
    %v2287 = vmul.f32 %v2282, %v2286
    %vm2288 = vweird.f32 %v2280
    %vm2289 = vweird.f32 %v2282
    %vm2290 = vmor %vm2288, %vm2289
    %v2291 = vsel %vm2290, %v2282, %v2287
    %v2292 = vrsqrt.pop %v2281
    %v2293 = vmul.f32 %v2292, %v2281
    %v2294 = vmul.f32 %v2293, %v2292
    %v2295 = vmul.f32 0.5, %v2294
    %v2296 = vsub.f32 1.5, %v2295
    %v2297 = vmul.f32 %v2292, %v2296
    %vm2298 = vweird.f32 %v2281
    %vm2299 = vweird.f32 %v2292
    %vm2300 = vmor %vm2298, %vm2299
    %v2301 = vsel %vm2300, %v2292, %v2297
    %v2302 = vmul.f32 %v2278, %v2291
    %v2303 = vmul.f32 %v2279, %v2301
    %v2304 = vperm.slane %v2254, 0
    %v2305 = vmul.f32 %v2302, %v2304
    %v2306 = vmul.f32 %v2303, %v2304
    %v2307 = vperm.slane %v2255, 0
    %v2308 = vadd.f32 %v2305, %v2307
    %v2309 = vadd.f32 %v2306, %v2307
    %v2310 = vpack.c.bf16 %v2309, %v2308
    %v2311 = vld [vmem:[#allocation10 + $0xe0] sm:$0xf]
    %v2312 = vld [vmem:[#allocation10 + $0xe4] sm:$0xf]
    %v2313 = vld [vmem:[#allocation10 + $0xe8] sm:$0xf]
    %v2314 = vld [vmem:[#allocation10 + $0xec] sm:$0xf]
    %v2315 = vld [vmem:[#allocation11 + $0x18] sm:$0x1]
    %v2316 = vperm.slane %v2315, 0
    %v2321 = vunpack.c.l.b16 %v2311
    %v2322 = vunpack.c.l.b16 %v2312
    %v2323 = vunpack.c.l.b16 %v2313
    %v2324 = vunpack.c.l.b16 %v2314
    %v2325 = vpack.c.b16 %v2322, %v2321
    %v2326 = vpack.c.b16 %v2324, %v2323
    %v2330 = vsel %vm147, %v2310, 0
    %2332 = vmatpush.bf16.msra.mxu0 0
    %2333 = vmatpush.bf16.msra.mxu0 0
    %2334 = vmatpush.bf16.msra.mxu0 0
    %2335 = vmatpush.bf16.msra.mxu0 0
    %2336 = vmatpush.bf16.msra.mxu0 0
    %2337 = vmatpush.bf16.msra.mxu0 0
    %2338 = vmatpush.bf16.msra.mxu0 %v2326
    %2339 = vmatpush.bf16.msra.mxu0 %v2325
    %2340 = vmatmul.bf16.gmra.mxu0 %v2330
    %v2341 = vpop.f32.mrf.mxu0
    %v2342 = vadd.f32 %v2316, %v2341
    %v2343 = vpop.f32.mrf.mxu0
    %v2344 = vadd.f32 %v2316, %v2343
    %2345 = vdwg.mxu0
    %2346 = vst [vmem:[#allocation13] sm:$0xff] %v2342
    %2347 = vst [vmem:[#allocation13 + $0x8] sm:$0xff] %v2344
    // Predicated region
    $region50: #{tpu_custom_call.1} parent=1 // pred_check
      _
    $region51: #{tpu_custom_call.1} parent=1 // pred_check_branch
      %2349 = sbr.rel (0) target = $region53
    $region52: #{tpu_custom_call.1} parent=1 // pred_region
      %2351 = vsyncadd [#allocation4], 0
      %s2352 = sshll.u32 [#allocation13], 4
      %s2353 = int_to_ptr.vmem [resolvable:$true] %s2352
      %s2354 = sshll.u32 %s6, 4
      %s2355 = int_to_ptr.hbm [resolvable:$true] %s2354
      %2360 = dma.vmem_to_hbm [thread:$0]  %s2353, 256, %s2355, [#allocation4], 128, 128, 8
    $region53: #{tpu_custom_call.1} parent=1 // pred_fallthru
      _
    // Predicated region
    $region54: #{tpu_custom_call.1} parent=1 // pred_check
      _
    $region55: #{tpu_custom_call.1} parent=1 // pred_check_branch
      %2362 = sbr.rel (0) target = $region57
    $region56: #{tpu_custom_call.1} parent=1 // pred_region
      %2364 = dma.done [#allocation4], 256
    $region57: #{tpu_custom_call.1} parent=1 // pred_fallthru
      _
    %2365 = vsyncpa [#allocation3], 1
    %2366 = vsyncpa [#allocation6], 1
    %2367 = vsyncpa [#allocation9], 1
    %2368 = vsyncpa [#allocation12], 1
    %2369 = vsyncpa [#allocation4], 1

</llo_original>
